<compile_context>
chip_gen: v5e
topology: v5e:2x2
jax: 0.10.0
libtpu: 0.0.40
codegen_flags: <defaults>
</compile_context>

<pallas_src>
import math
import jax
import jax.numpy as jnp
from jax import lax
from jax.experimental import pallas as pl
from jax.experimental.pallas import tpu as pltpu


def make_self_attention_kernel(S, E, H, TQ, KV_CHUNK):
    D = E // H
    eps = 1e-5
    n_q = S // TQ
    n_kv = S // KV_CHUNK
    inv_sqrt2 = float(1.0 / math.sqrt(2.0))   # Python float: not a captured const

    def layer_norm(v, g, b):
        # single-pass: var = E[x^2] - mu^2 (halves XLU reduction passes)
        mu = jnp.mean(v, axis=-1, keepdims=True)
        ms = jnp.mean(v * v, axis=-1, keepdims=True)
        var = jnp.maximum(ms - mu * mu, 0.0)
        return (v - mu) * lax.rsqrt(var + eps) * g + b

    def kernel(x_ref, mask_ref,
               g1_ref, b1_ref,                      # first LayerNorm (self.ln)
               wq_ref, wk_ref, wv_ref,              # mha in_proj weights (E, E) bf16
               bq_ref, bk_ref, bv_ref,              # mha in_proj biases  (1, E) f32
               wo_ref, bo_ref,                      # mha out_proj (E, E) bf16, (1, E)
               g2_ref, b2_ref,                      # ff LayerNorm
               w1_ref, bf1_ref,                     # ff Linear 1  (E, E) bf16, (1, E)
               w2_ref, bf2_ref,                     # ff Linear 2  (E, E) bf16, (1, E)
               o_ref,
               qh_s, kh_s, vh_s):                   # (H, S, D) bf16 caches
        qi = pl.program_id(1)

        # ---- once per batch row: LN + QKV projections, cached across q tiles ----
        def build_qkv_cache():
            x_full = x_ref[0]                                        # (S, E) f32
            xf_ln = layer_norm(x_full, g1_ref[...], b1_ref[...])
            xf_bf = xf_ln.astype(jnp.bfloat16)
            # bf16 MXU operands, f32 accumulation. 1/sqrt(D) is folded into
            # wq / bq by the wrapper, so no per-step scaling is needed.
            q = jnp.dot(xf_bf, wq_ref[...], preferred_element_type=jnp.float32) + bq_ref[...]
            k = jnp.dot(xf_bf, wk_ref[...], preferred_element_type=jnp.float32) + bk_ref[...]
            v = jnp.dot(xf_bf, wv_ref[...], preferred_element_type=jnp.float32) + bv_ref[...]
            # Layout-only per-head split (static lane slices, once per batch
            # row); avoids an in-kernel (S,H,D)->(H,S,D) relayout/transpose.
            for h in range(H):
                sl = slice(h * D, (h + 1) * D)
                qh_s[h] = q[:, sl].astype(jnp.bfloat16)
                kh_s[h] = k[:, sl].astype(jnp.bfloat16)
                vh_s[h] = v[:, sl].astype(jnp.bfloat16)

        if n_q == 1:
            build_qkv_cache()
        else:
            @pl.when(qi == 0)
            def _():
                build_qkv_cache()

        # ---- current query tile (rows come from cached projections / raw x) ----
        if n_q == 1:
            qh = qh_s[...]                                           # (H, TQ, D) bf16
            x_q = x_ref[0]                                           # (TQ, E)  f32
        else:
            q0 = pl.multiple_of(qi * TQ, TQ)
            qh = qh_s[:, pl.ds(q0, TQ), :]
            x_q = x_ref[0, pl.ds(q0, TQ), :]

        # ---- online softmax over KV chunks (head-batched MXU einsums) ----
        def attend(carry, c):
            m_i, l_i, acc = carry
            if isinstance(c, int):
                k0 = c * KV_CHUNK
            else:
                k0 = pl.multiple_of(c * KV_CHUNK, KV_CHUNK)
            kc = kh_s[:, pl.ds(k0, KV_CHUNK), :]                     # (H, KVc, D) bf16
            vc = vh_s[:, pl.ds(k0, KV_CHUNK), :]
            mc = mask_ref[0, :, pl.ds(k0, KV_CHUNK)]                 # (1, KVc)   f32
            s = jnp.einsum('hqd,hkd->hqk', qh, kc,
                           preferred_element_type=jnp.float32)       # (H, TQ, KVc)
            s = s + mc                                               # additive key mask
            m_new = jnp.maximum(m_i, jnp.max(s, axis=-1, keepdims=True))
            alpha = jnp.exp(m_i - m_new)
            p = jnp.exp(s - m_new)
            l_new = alpha * l_i + jnp.sum(p, axis=-1, keepdims=True)
            acc_new = alpha * acc + jnp.einsum('hqk,hkd->hqd',
                                               p.astype(jnp.bfloat16), vc,
                                               preferred_element_type=jnp.float32)
            return m_new, l_new, acc_new

        m0 = jnp.full((H, TQ, 1), -1e30, jnp.float32)
        l0 = jnp.zeros((H, TQ, 1), jnp.float32)
        a0 = jnp.zeros((H, TQ, D), jnp.float32)
        if n_kv == 1:
            _, l_i, acc = attend((m0, l0, a0), 0)
        else:
            _, l_i, acc = lax.fori_loop(0, n_kv,
                                        lambda c, carry: attend(carry, c),
                                        (m0, l0, a0),
                                        unroll=(n_kv <= 4))

        # exact reciprocal in the finalize (closer PyTorch parity)
        ctx = acc / l_i                                              # (H, TQ, D) f32
        ctx = jnp.concatenate([ctx[h] for h in range(H)], axis=-1)   # (TQ, E)

        attn = jnp.dot(ctx.astype(jnp.bfloat16), wo_ref[...],
                       preferred_element_type=jnp.float32) + bo_ref[...]
        h1 = attn + x_q                                              # residual 1

        # ---- ff_self: LayerNorm -> Linear -> GELU(exact) -> Linear ----
        hn = layer_norm(h1, g2_ref[...], b2_ref[...])
        z = jnp.dot(hn.astype(jnp.bfloat16), w1_ref[...],
                    preferred_element_type=jnp.float32) + bf1_ref[...]
        z = 0.5 * z * (1.0 + lax.erf(z * inv_sqrt2))                 # PyTorch-default GELU
        z = jnp.dot(z.astype(jnp.bfloat16), w2_ref[...],
                    preferred_element_type=jnp.float32) + bf2_ref[...]

        o_ref[0] = h1 + z                                            # residual 2

    return kernel


def self_attention_pallas(x, key_padding_mask, params, num_heads):
    B, S, E = x.shape
    H = num_heads
    assert E % H == 0
    D = E // H

    (g1, b1, wqkv, bqkv, wo, bo, g2, b2, w1, bf1, w2, bf2) = params

    # additive key mask (stays f32; True (pad) -> -1e30)
    # NOTE: rows whose keys are ALL masked get a uniform distribution instead
    # of PyTorch's NaN behavior (acceptable for this module's usage).
    addm = jnp.where(key_padding_mask, -1e30, 0.0).reshape(B, 1, S).astype(jnp.float32)

    # Split fused in_proj into Q/K/V; fold 1/sqrt(D) into wq/bq once here;
    # cast matmul weights to bf16 once here.
    scale = 1.0 / math.sqrt(D)
    wq = (wqkv[:, 0 * E:1 * E] * scale).astype(jnp.bfloat16)
    wk = wqkv[:, 1 * E:2 * E].astype(jnp.bfloat16)
    wv = wqkv[:, 2 * E:3 * E].astype(jnp.bfloat16)
    bq = (bqkv[:, 0 * E:1 * E] * scale).astype(jnp.float32)
    bk = bqkv[:, 1 * E:2 * E].astype(jnp.float32)
    bv = bqkv[:, 2 * E:3 * E].astype(jnp.float32)
    wo_b = wo.astype(jnp.bfloat16)
    w1_b = w1.astype(jnp.bfloat16)
    w2_b = w2.astype(jnp.bfloat16)

    kparams = (g1, b1, wq, wk, wv, bq, bk, bv,
               wo_b, bo, g2, b2, w1_b, bf1, w2_b, bf2)

    # ---- generation-aware tiling / VMEM budget ----
    try:
        vmem_cap = int(pltpu.get_tpu_info().vmem_capacity_bytes)
    except Exception:
        vmem_cap = 64 << 20                    # conservative (v7x-sized) fallback

    if vmem_cap > (96 << 20):                  # v5e / v6e: 128 MiB VMEM
        tq_cap, kv_cap = 512, 1024
    else:                                      # v7x: 64 MiB VMEM per TensorCore
        tq_cap, kv_cap = 256, 256

    TQ = S if S <= tq_cap else tq_cap
    KV_CHUNK = S if S <= kv_cap else kv_cap
    assert S % TQ == 0, "S must be a multiple of the query tile"
    assert S % KV_CHUNK == 0, "S must be a multiple of the KV chunk"
    NQ = S // TQ

    kernel = make_self_attention_kernel(S, E, H, TQ, KV_CHUNK)
    param_bytes = sum(int(p.size) * p.dtype.itemsize for p in kparams)

    def build(single_buffer_weights):
        def wspec(p):
            if single_buffer_weights:
                # grid-invariant weights: no double-buffering needed
                return pl.BlockSpec(p.shape, lambda b, q: (0, 0),
                                    pipeline_mode=pl.Buffered(1))
            return pl.BlockSpec(p.shape, lambda b, q: (0, 0))

        weight_bufs = 1 if single_buffer_weights else 2
        # live-set estimate: pipelined activation blocks + resident weights
        # + bf16 Q/K/V caches + q==0 projection intermediates + per-step
        # score/p tiles + FF intermediates, with headroom below physical VMEM.
        live = (2 * (S * E * 4 + S * 4 + TQ * E * 4)
                + weight_bufs * param_bytes
                + 3 * S * E * 2
                + 8 * S * E * 4
                + H * TQ * KV_CHUNK * 8
                + 8 * TQ * E * 4)
        vmem_limit = int(min(max(int(1.25 * live), 32 << 20),
                             int(0.85 * vmem_cap)))

        return pl.pallas_call(
            kernel,
            out_shape=jax.ShapeDtypeStruct((B, S, E), jnp.float32),
            grid=(B, NQ),
            in_specs=[
                # x: full sequence (for K/V at q==0 + residual rows); the index
                # map is constant in q, so it is only re-DMAed when b changes.
                pl.BlockSpec((1, S, E), lambda b, q: (b, 0, 0)),
                pl.BlockSpec((1, 1, S), lambda b, q: (b, 0, 0)),   # additive mask
            ] + [wspec(p) for p in kparams],
            out_specs=pl.BlockSpec((1, TQ, E), lambda b, q: (b, q, 0)),
            scratch_shapes=[pltpu.VMEM((H, S, D), jnp.bfloat16),   # qh (pre-scaled)
                            pltpu.VMEM((H, S, D), jnp.bfloat16),   # kh
                            pltpu.VMEM((H, S, D), jnp.bfloat16)],  # vh
            compiler_params=pltpu.CompilerParams(
                # B parallel (megacore split); q axis arbitrary so the cached
                # K/V scratch stays valid across the q sweep of each batch row.
                dimension_semantics=("parallel", "arbitrary"),
                vmem_limit_bytes=vmem_limit),
        )

    try:
        return build(True)(x, addm, *kparams)
    except Exception:
        # pipeline_mode=pl.Buffered(1) unsupported on this jax build: fall back
        # to default double-buffered grid-invariant weights.
        return build(False)(x, addm, *kparams)


def self_attention_reference(x, key_padding_mask, params, num_heads):
    """Pure-JAX f32 reference with identical math (for validation)."""
    (g1, b1, wqkv, bqkv, wo, bo, g2, b2, w1, bf1, w2, bf2) = params
    B, S, E = x.shape
    D = E // num_heads
    eps = 1e-5

    def ln(v, g, b):
        mu = jnp.mean(v, axis=-1, keepdims=True)
        var = jnp.mean((v - mu) ** 2, axis=-1, keepdims=True)
        return (v - mu) / jnp.sqrt(var + eps) * g + b

    x_ln = ln(x, g1[0], b1[0])
    qkv = x_ln @ wqkv + bqkv[0]
    q, k, v = jnp.split(qkv, 3, axis=-1)
    q = q.reshape(B, S, num_heads, D).transpose(0, 2, 1, 3) / math.sqrt(D)
    k = k.reshape(B, S, num_heads, D).transpose(0, 2, 1, 3)
    v = v.reshape(B, S, num_heads, D).transpose(0, 2, 1, 3)
    s = jnp.einsum('bhqd,bhkd->bhqk', q, k)
    s = s + jnp.where(key_padding_mask, -1e30, 0.0)[:, None, None, :]
    p = jax.nn.softmax(s, axis=-1)
    ctx = jnp.einsum('bhqk,bhkd->bhqd', p, v).transpose(0, 2, 1, 3).reshape(B, S, E)
    attn = ctx @ wo + bo[0]
    h1 = attn + x
    hn = ln(h1, g2[0], b2[0])
    z = hn @ w1 + bf1[0]
    z = 0.5 * z * (1.0 + lax.erf(z / math.sqrt(2.0)))
    z = z @ w2 + bf2[0]
    return h1 + z


if __name__ == "__main__":
    B, S, E, H = 2, 8, 32, 4

    key = jax.random.PRNGKey(0)
    ks = jax.random.split(key, 12)

    def rnd(k, shape, scale=0.02):
        return (scale * jax.random.normal(k, shape)).astype(jnp.float32)

    # Deterministic parameter init (shapes follow the PyTorch module).
    g1 = 1.0 + rnd(ks[0], (1, E))          # ln weight
    b1 = rnd(ks[1], (1, E))                # ln bias
    wqkv = rnd(ks[2], (E, 3 * E))          # mha in_proj_weight.T
    bqkv = rnd(ks[3], (1, 3 * E))          # mha in_proj_bias
    wo = rnd(ks[4], (E, E))                # mha out_proj.weight.T
    bo = rnd(ks[5], (1, E))                # mha out_proj.bias
    g2 = 1.0 + rnd(ks[6], (1, E))          # ff LayerNorm weight
    b2 = rnd(ks[7], (1, E))                # ff LayerNorm bias
    w1 = rnd(ks[8], (E, E))                # ff Linear1 weight.T
    bf1 = rnd(ks[9], (1, E))               # ff Linear1 bias
    w2 = rnd(ks[10], (E, E))               # ff Linear2 weight.T
    bf2 = rnd(ks[11], (1, E))              # ff Linear2 bias
    params = (g1, b1, wqkv, bqkv, wo, bo, g2, b2, w1, bf1, w2, bf2)

    xk, _ = jax.random.split(key)
    x = jax.random.normal(xk, (B, S, E), dtype=jnp.float32)

    # key_padding_mask: True = ignore. Mask the last 3 keys of batch 1.
    key_padding_mask = jnp.zeros((B, S), dtype=bool).at[1, S - 3:].set(True)

    out = self_attention_pallas(x, key_padding_mask, params, H)
    out = jax.block_until_ready(out)

    ref = self_attention_reference(x, key_padding_mask, params, H)
    assert out.shape == (B, S, E)
    # bf16 MXU operands -> loosen tolerance vs f32 reference
    assert jnp.allclose(out, ref, rtol=2e-2, atol=2e-2), \
        f"max err {jnp.max(jnp.abs(out - ref))}"

    print("KERNEL_OK")
</pallas_src>

<mosaic_0001>
module attributes {stable_mosaic.version = 11 : i64} {
  func.func @kernel(%arg0: i32, %arg1: i32, %arg2: memref<1x8x32xf32, #tpu.memory_space<vmem>>, %arg3: memref<1x1x8xf32, #tpu.memory_space<vmem>>, %arg4: memref<1x32xf32, #tpu.memory_space<vmem>>, %arg5: memref<1x32xf32, #tpu.memory_space<vmem>>, %arg6: memref<32x32xbf16, #tpu.memory_space<vmem>>, %arg7: memref<32x32xbf16, #tpu.memory_space<vmem>>, %arg8: memref<32x32xbf16, #tpu.memory_space<vmem>>, %arg9: memref<1x32xf32, #tpu.memory_space<vmem>>, %arg10: memref<1x32xf32, #tpu.memory_space<vmem>>, %arg11: memref<1x32xf32, #tpu.memory_space<vmem>>, %arg12: memref<32x32xbf16, #tpu.memory_space<vmem>>, %arg13: memref<1x32xf32, #tpu.memory_space<vmem>>, %arg14: memref<1x32xf32, #tpu.memory_space<vmem>>, %arg15: memref<1x32xf32, #tpu.memory_space<vmem>>, %arg16: memref<32x32xbf16, #tpu.memory_space<vmem>>, %arg17: memref<1x32xf32, #tpu.memory_space<vmem>>, %arg18: memref<32x32xbf16, #tpu.memory_space<vmem>>, %arg19: memref<1x32xf32, #tpu.memory_space<vmem>>, %arg20: memref<1x8x32xf32, #tpu.memory_space<vmem>>, %arg21: memref<4x8x8xbf16, #tpu.memory_space<vmem>>, %arg22: memref<4x8x8xbf16, #tpu.memory_space<vmem>>, %arg23: memref<4x8x8xbf16, #tpu.memory_space<vmem>>) attributes {dimension_semantics = [#tpu.dimension_semantics<parallel>, #tpu.dimension_semantics<arbitrary>], iteration_bounds = array<i64: 2, 1>, scalar_prefetch = 0 : i64, scratch_operands = 3 : i64, tpu.core_type = #tpu.core_type<tc>, window_params = [{transform_indices = @transform_0, window_bounds = array<i64: 1, 8, 32>}, {transform_indices = @transform_1, window_bounds = array<i64: 1, 1, 8>}, {pipeline_mode = #tpu.pipeline_mode<synchronous>, transform_indices = @transform_2, window_bounds = array<i64: 1, 32>}, {pipeline_mode = #tpu.pipeline_mode<synchronous>, transform_indices = @transform_3, window_bounds = array<i64: 1, 32>}, {pipeline_mode = #tpu.pipeline_mode<synchronous>, transform_indices = @transform_4, window_bounds = array<i64: 32, 32>}, {pipeline_mode = #tpu.pipeline_mode<synchronous>, transform_indices = @transform_5, window_bounds = array<i64: 32, 32>}, {pipeline_mode = #tpu.pipeline_mode<synchronous>, transform_indices = @transform_6, window_bounds = array<i64: 32, 32>}, {pipeline_mode = #tpu.pipeline_mode<synchronous>, transform_indices = @transform_7, window_bounds = array<i64: 1, 32>}, {pipeline_mode = #tpu.pipeline_mode<synchronous>, transform_indices = @transform_8, window_bounds = array<i64: 1, 32>}, {pipeline_mode = #tpu.pipeline_mode<synchronous>, transform_indices = @transform_9, window_bounds = array<i64: 1, 32>}, {pipeline_mode = #tpu.pipeline_mode<synchronous>, transform_indices = @transform_10, window_bounds = array<i64: 32, 32>}, {pipeline_mode = #tpu.pipeline_mode<synchronous>, transform_indices = @transform_11, window_bounds = array<i64: 1, 32>}, {pipeline_mode = #tpu.pipeline_mode<synchronous>, transform_indices = @transform_12, window_bounds = array<i64: 1, 32>}, {pipeline_mode = #tpu.pipeline_mode<synchronous>, transform_indices = @transform_13, window_bounds = array<i64: 1, 32>}, {pipeline_mode = #tpu.pipeline_mode<synchronous>, transform_indices = @transform_14, window_bounds = array<i64: 32, 32>}, {pipeline_mode = #tpu.pipeline_mode<synchronous>, transform_indices = @transform_15, window_bounds = array<i64: 1, 32>}, {pipeline_mode = #tpu.pipeline_mode<synchronous>, transform_indices = @transform_16, window_bounds = array<i64: 32, 32>}, {pipeline_mode = #tpu.pipeline_mode<synchronous>, transform_indices = @transform_17, window_bounds = array<i64: 1, 32>}, {transform_indices = @transform_18, window_bounds = array<i64: 1, 8, 32>}]} {
    %c0 = arith.constant 0 : index
    %c0_0 = arith.constant 0 : index
    %c0_1 = arith.constant 0 : index
    %0 = vector.load %arg2[%c0, %c0_0, %c0_1] : memref<1x8x32xf32, #tpu.memory_space<vmem>>, vector<1x8x32xf32>
    %1 = vector.shape_cast %0 : vector<1x8x32xf32> to vector<8x32xf32>
    %c0_2 = arith.constant 0 : index
    %c0_3 = arith.constant 0 : index
    %2 = vector.load %arg4[%c0_2, %c0_3] : memref<1x32xf32, #tpu.memory_space<vmem>>, vector<1x32xf32>
    %c0_4 = arith.constant 0 : index
    %c0_5 = arith.constant 0 : index
    %3 = vector.load %arg5[%c0_4, %c0_5] : memref<1x32xf32, #tpu.memory_space<vmem>>, vector<1x32xf32>
    %cst = arith.constant dense<0.000000e+00> : vector<8xf32>
    %4 = vector.multi_reduction <add>, %1, %cst [1] : vector<8x32xf32> to vector<8xf32>
    %5 = vector.shape_cast %4 : vector<8xf32> to vector<8x1xf32>
    %cst_6 = arith.constant 3.200000e+01 : f32
    %6 = vector.broadcast %cst_6 : f32 to vector<8x1xf32>
    %7 = arith.divf %5, %6 : vector<8x1xf32>
    %8 = arith.mulf %1, %1 : vector<8x32xf32>
    %cst_7 = arith.constant dense<0.000000e+00> : vector<8xf32>
    %9 = vector.multi_reduction <add>, %8, %cst_7 [1] : vector<8x32xf32> to vector<8xf32>
    %10 = vector.shape_cast %9 : vector<8xf32> to vector<8x1xf32>
    %cst_8 = arith.constant 3.200000e+01 : f32
    %11 = vector.broadcast %cst_8 : f32 to vector<8x1xf32>
    %12 = arith.divf %10, %11 : vector<8x1xf32>
    %13 = arith.mulf %7, %7 : vector<8x1xf32>
    %14 = arith.subf %12, %13 : vector<8x1xf32>
    %cst_9 = arith.constant 0.000000e+00 : f32
    %15 = vector.broadcast %cst_9 : f32 to vector<8x1xf32>
    %16 = arith.maximumf %14, %15 : vector<8x1xf32>
    %17 = vector.broadcast %7 : vector<8x1xf32> to vector<8x32xf32>
    %18 = arith.subf %1, %17 : vector<8x32xf32>
    %cst_10 = arith.constant 9.99999974E-6 : f32
    %19 = vector.broadcast %cst_10 : f32 to vector<8x1xf32>
    %20 = arith.addf %16, %19 : vector<8x1xf32>
    %21 = math.rsqrt %20 : vector<8x1xf32>
    %22 = vector.broadcast %21 : vector<8x1xf32> to vector<8x32xf32>
    %23 = arith.mulf %18, %22 : vector<8x32xf32>
    %24 = vector.broadcast %2 : vector<1x32xf32> to vector<8x32xf32>
    %25 = arith.mulf %23, %24 : vector<8x32xf32>
    %26 = vector.broadcast %3 : vector<1x32xf32> to vector<8x32xf32>
    %27 = arith.addf %25, %26 : vector<8x32xf32>
    %28 = arith.truncf %27 : vector<8x32xf32> to vector<8x32xbf16>
    %c0_11 = arith.constant 0 : index
    %c0_12 = arith.constant 0 : index
    %29 = vector.load %arg6[%c0_11, %c0_12] : memref<32x32xbf16, #tpu.memory_space<vmem>>, vector<32x32xbf16>
    %cst_13 = arith.constant dense<0.000000e+00> : vector<8x32xf32>
    %30 = tpu.matmul %28, %29, %cst_13 {dimension_numbers = #tpu.dot_dimension_numbers<[1], [0], [0], [1], [0, 0, 1, 1], [], []>} : vector<8x32xbf16>, vector<32x32xbf16>, vector<8x32xf32> -> vector<8x32xf32>
    %c0_14 = arith.constant 0 : index
    %c0_15 = arith.constant 0 : index
    %31 = vector.load %arg9[%c0_14, %c0_15] : memref<1x32xf32, #tpu.memory_space<vmem>>, vector<1x32xf32>
    %32 = vector.broadcast %31 : vector<1x32xf32> to vector<8x32xf32>
    %33 = arith.addf %30, %32 : vector<8x32xf32>
    %c0_16 = arith.constant 0 : index
    %c0_17 = arith.constant 0 : index
    %34 = vector.load %arg7[%c0_16, %c0_17] : memref<32x32xbf16, #tpu.memory_space<vmem>>, vector<32x32xbf16>
    %cst_18 = arith.constant dense<0.000000e+00> : vector<8x32xf32>
    %35 = tpu.matmul %28, %34, %cst_18 {dimension_numbers = #tpu.dot_dimension_numbers<[1], [0], [0], [1], [0, 0, 1, 1], [], []>} : vector<8x32xbf16>, vector<32x32xbf16>, vector<8x32xf32> -> vector<8x32xf32>
    %c0_19 = arith.constant 0 : index
    %c0_20 = arith.constant 0 : index
    %36 = vector.load %arg10[%c0_19, %c0_20] : memref<1x32xf32, #tpu.memory_space<vmem>>, vector<1x32xf32>
    %37 = vector.broadcast %36 : vector<1x32xf32> to vector<8x32xf32>
    %38 = arith.addf %35, %37 : vector<8x32xf32>
    %c0_21 = arith.constant 0 : index
    %c0_22 = arith.constant 0 : index
    %39 = vector.load %arg8[%c0_21, %c0_22] : memref<32x32xbf16, #tpu.memory_space<vmem>>, vector<32x32xbf16>
    %cst_23 = arith.constant dense<0.000000e+00> : vector<8x32xf32>
    %40 = tpu.matmul %28, %39, %cst_23 {dimension_numbers = #tpu.dot_dimension_numbers<[1], [0], [0], [1], [0, 0, 1, 1], [], []>} : vector<8x32xbf16>, vector<32x32xbf16>, vector<8x32xf32> -> vector<8x32xf32>
    %c0_24 = arith.constant 0 : index
    %c0_25 = arith.constant 0 : index
    %41 = vector.load %arg11[%c0_24, %c0_25] : memref<1x32xf32, #tpu.memory_space<vmem>>, vector<1x32xf32>
    %42 = vector.broadcast %41 : vector<1x32xf32> to vector<8x32xf32>
    %43 = arith.addf %40, %42 : vector<8x32xf32>
    %44 = vector.extract_strided_slice %33 {offsets = [0, 0], sizes = [8, 8], strides = [1, 1]} : vector<8x32xf32> to vector<8x8xf32>
    %45 = arith.truncf %44 : vector<8x8xf32> to vector<8x8xbf16>
    %c0_26 = arith.constant 0 : index
    %c0_27 = arith.constant 0 : index
    %c0_28 = arith.constant 0 : index
    %46 = vector.load %arg21[%c0_26, %c0_27, %c0_28] : memref<4x8x8xbf16, #tpu.memory_space<vmem>>, vector<1x8x8xbf16>
    %47 = vector.shape_cast %46 : vector<1x8x8xbf16> to vector<8x8xbf16>
    %48 = vector.shape_cast %45 : vector<8x8xbf16> to vector<1x8x8xbf16>
    tpu.vector_store %arg21[%c0_26, %c0_27, %c0_28], %48 {strides = array<i32>} : memref<4x8x8xbf16, #tpu.memory_space<vmem>>, vector<1x8x8xbf16>,
    %49 = vector.extract_strided_slice %38 {offsets = [0, 0], sizes = [8, 8], strides = [1, 1]} : vector<8x32xf32> to vector<8x8xf32>
    %50 = arith.truncf %49 : vector<8x8xf32> to vector<8x8xbf16>
    %c0_29 = arith.constant 0 : index
    %c0_30 = arith.constant 0 : index
    %c0_31 = arith.constant 0 : index
    %51 = vector.load %arg22[%c0_29, %c0_30, %c0_31] : memref<4x8x8xbf16, #tpu.memory_space<vmem>>, vector<1x8x8xbf16>
    %52 = vector.shape_cast %51 : vector<1x8x8xbf16> to vector<8x8xbf16>
    %53 = vector.shape_cast %50 : vector<8x8xbf16> to vector<1x8x8xbf16>
    tpu.vector_store %arg22[%c0_29, %c0_30, %c0_31], %53 {strides = array<i32>} : memref<4x8x8xbf16, #tpu.memory_space<vmem>>, vector<1x8x8xbf16>,
    %54 = vector.extract_strided_slice %43 {offsets = [0, 0], sizes = [8, 8], strides = [1, 1]} : vector<8x32xf32> to vector<8x8xf32>
    %55 = arith.truncf %54 : vector<8x8xf32> to vector<8x8xbf16>
    %c0_32 = arith.constant 0 : index
    %c0_33 = arith.constant 0 : index
    %c0_34 = arith.constant 0 : index
    %56 = vector.load %arg23[%c0_32, %c0_33, %c0_34] : memref<4x8x8xbf16, #tpu.memory_space<vmem>>, vector<1x8x8xbf16>
    %57 = vector.shape_cast %56 : vector<1x8x8xbf16> to vector<8x8xbf16>
    %58 = vector.shape_cast %55 : vector<8x8xbf16> to vector<1x8x8xbf16>
    tpu.vector_store %arg23[%c0_32, %c0_33, %c0_34], %58 {strides = array<i32>} : memref<4x8x8xbf16, #tpu.memory_space<vmem>>, vector<1x8x8xbf16>,
    %59 = vector.extract_strided_slice %33 {offsets = [0, 8], sizes = [8, 8], strides = [1, 1]} : vector<8x32xf32> to vector<8x8xf32>
    %60 = arith.truncf %59 : vector<8x8xf32> to vector<8x8xbf16>
    %c1 = arith.constant 1 : index
    %c0_35 = arith.constant 0 : index
    %c0_36 = arith.constant 0 : index
    %61 = vector.load %arg21[%c1, %c0_35, %c0_36] : memref<4x8x8xbf16, #tpu.memory_space<vmem>>, vector<1x8x8xbf16>
    %62 = vector.shape_cast %61 : vector<1x8x8xbf16> to vector<8x8xbf16>
    %63 = vector.shape_cast %60 : vector<8x8xbf16> to vector<1x8x8xbf16>
    tpu.vector_store %arg21[%c1, %c0_35, %c0_36], %63 {strides = array<i32>} : memref<4x8x8xbf16, #tpu.memory_space<vmem>>, vector<1x8x8xbf16>,
    %64 = vector.extract_strided_slice %38 {offsets = [0, 8], sizes = [8, 8], strides = [1, 1]} : vector<8x32xf32> to vector<8x8xf32>
    %65 = arith.truncf %64 : vector<8x8xf32> to vector<8x8xbf16>
    %c1_37 = arith.constant 1 : index
    %c0_38 = arith.constant 0 : index
    %c0_39 = arith.constant 0 : index
    %66 = vector.load %arg22[%c1_37, %c0_38, %c0_39] : memref<4x8x8xbf16, #tpu.memory_space<vmem>>, vector<1x8x8xbf16>
    %67 = vector.shape_cast %66 : vector<1x8x8xbf16> to vector<8x8xbf16>
    %68 = vector.shape_cast %65 : vector<8x8xbf16> to vector<1x8x8xbf16>
    tpu.vector_store %arg22[%c1_37, %c0_38, %c0_39], %68 {strides = array<i32>} : memref<4x8x8xbf16, #tpu.memory_space<vmem>>, vector<1x8x8xbf16>,
    %69 = vector.extract_strided_slice %43 {offsets = [0, 8], sizes = [8, 8], strides = [1, 1]} : vector<8x32xf32> to vector<8x8xf32>
    %70 = arith.truncf %69 : vector<8x8xf32> to vector<8x8xbf16>
    %c1_40 = arith.constant 1 : index
    %c0_41 = arith.constant 0 : index
    %c0_42 = arith.constant 0 : index
    %71 = vector.load %arg23[%c1_40, %c0_41, %c0_42] : memref<4x8x8xbf16, #tpu.memory_space<vmem>>, vector<1x8x8xbf16>
    %72 = vector.shape_cast %71 : vector<1x8x8xbf16> to vector<8x8xbf16>
    %73 = vector.shape_cast %70 : vector<8x8xbf16> to vector<1x8x8xbf16>
    tpu.vector_store %arg23[%c1_40, %c0_41, %c0_42], %73 {strides = array<i32>} : memref<4x8x8xbf16, #tpu.memory_space<vmem>>, vector<1x8x8xbf16>,
    %74 = vector.extract_strided_slice %33 {offsets = [0, 16], sizes = [8, 8], strides = [1, 1]} : vector<8x32xf32> to vector<8x8xf32>
    %75 = arith.truncf %74 : vector<8x8xf32> to vector<8x8xbf16>
    %c2 = arith.constant 2 : index
    %c0_43 = arith.constant 0 : index
    %c0_44 = arith.constant 0 : index
    %76 = vector.load %arg21[%c2, %c0_43, %c0_44] : memref<4x8x8xbf16, #tpu.memory_space<vmem>>, vector<1x8x8xbf16>
    %77 = vector.shape_cast %76 : vector<1x8x8xbf16> to vector<8x8xbf16>
    %78 = vector.shape_cast %75 : vector<8x8xbf16> to vector<1x8x8xbf16>
    tpu.vector_store %arg21[%c2, %c0_43, %c0_44], %78 {strides = array<i32>} : memref<4x8x8xbf16, #tpu.memory_space<vmem>>, vector<1x8x8xbf16>,
    %79 = vector.extract_strided_slice %38 {offsets = [0, 16], sizes = [8, 8], strides = [1, 1]} : vector<8x32xf32> to vector<8x8xf32>
    %80 = arith.truncf %79 : vector<8x8xf32> to vector<8x8xbf16>
    %c2_45 = arith.constant 2 : index
    %c0_46 = arith.constant 0 : index
    %c0_47 = arith.constant 0 : index
    %81 = vector.load %arg22[%c2_45, %c0_46, %c0_47] : memref<4x8x8xbf16, #tpu.memory_space<vmem>>, vector<1x8x8xbf16>
    %82 = vector.shape_cast %81 : vector<1x8x8xbf16> to vector<8x8xbf16>
    %83 = vector.shape_cast %80 : vector<8x8xbf16> to vector<1x8x8xbf16>
    tpu.vector_store %arg22[%c2_45, %c0_46, %c0_47], %83 {strides = array<i32>} : memref<4x8x8xbf16, #tpu.memory_space<vmem>>, vector<1x8x8xbf16>,
    %84 = vector.extract_strided_slice %43 {offsets = [0, 16], sizes = [8, 8], strides = [1, 1]} : vector<8x32xf32> to vector<8x8xf32>
    %85 = arith.truncf %84 : vector<8x8xf32> to vector<8x8xbf16>
    %c2_48 = arith.constant 2 : index
    %c0_49 = arith.constant 0 : index
    %c0_50 = arith.constant 0 : index
    %86 = vector.load %arg23[%c2_48, %c0_49, %c0_50] : memref<4x8x8xbf16, #tpu.memory_space<vmem>>, vector<1x8x8xbf16>
    %87 = vector.shape_cast %86 : vector<1x8x8xbf16> to vector<8x8xbf16>
    %88 = vector.shape_cast %85 : vector<8x8xbf16> to vector<1x8x8xbf16>
    tpu.vector_store %arg23[%c2_48, %c0_49, %c0_50], %88 {strides = array<i32>} : memref<4x8x8xbf16, #tpu.memory_space<vmem>>, vector<1x8x8xbf16>,
    %89 = vector.extract_strided_slice %33 {offsets = [0, 24], sizes = [8, 8], strides = [1, 1]} : vector<8x32xf32> to vector<8x8xf32>
    %90 = arith.truncf %89 : vector<8x8xf32> to vector<8x8xbf16>
    %c3 = arith.constant 3 : index
    %c0_51 = arith.constant 0 : index
    %c0_52 = arith.constant 0 : index
    %91 = vector.load %arg21[%c3, %c0_51, %c0_52] : memref<4x8x8xbf16, #tpu.memory_space<vmem>>, vector<1x8x8xbf16>
    %92 = vector.shape_cast %91 : vector<1x8x8xbf16> to vector<8x8xbf16>
    %93 = vector.shape_cast %90 : vector<8x8xbf16> to vector<1x8x8xbf16>
    tpu.vector_store %arg21[%c3, %c0_51, %c0_52], %93 {strides = array<i32>} : memref<4x8x8xbf16, #tpu.memory_space<vmem>>, vector<1x8x8xbf16>,
    %94 = vector.extract_strided_slice %38 {offsets = [0, 24], sizes = [8, 8], strides = [1, 1]} : vector<8x32xf32> to vector<8x8xf32>
    %95 = arith.truncf %94 : vector<8x8xf32> to vector<8x8xbf16>
    %c3_53 = arith.constant 3 : index
    %c0_54 = arith.constant 0 : index
    %c0_55 = arith.constant 0 : index
    %96 = vector.load %arg22[%c3_53, %c0_54, %c0_55] : memref<4x8x8xbf16, #tpu.memory_space<vmem>>, vector<1x8x8xbf16>
    %97 = vector.shape_cast %96 : vector<1x8x8xbf16> to vector<8x8xbf16>
    %98 = vector.shape_cast %95 : vector<8x8xbf16> to vector<1x8x8xbf16>
    tpu.vector_store %arg22[%c3_53, %c0_54, %c0_55], %98 {strides = array<i32>} : memref<4x8x8xbf16, #tpu.memory_space<vmem>>, vector<1x8x8xbf16>,
    %99 = vector.extract_strided_slice %43 {offsets = [0, 24], sizes = [8, 8], strides = [1, 1]} : vector<8x32xf32> to vector<8x8xf32>
    %100 = arith.truncf %99 : vector<8x8xf32> to vector<8x8xbf16>
    %c3_56 = arith.constant 3 : index
    %c0_57 = arith.constant 0 : index
    %c0_58 = arith.constant 0 : index
    %101 = vector.load %arg23[%c3_56, %c0_57, %c0_58] : memref<4x8x8xbf16, #tpu.memory_space<vmem>>, vector<1x8x8xbf16>
    %102 = vector.shape_cast %101 : vector<1x8x8xbf16> to vector<8x8xbf16>
    %103 = vector.shape_cast %100 : vector<8x8xbf16> to vector<1x8x8xbf16>
    tpu.vector_store %arg23[%c3_56, %c0_57, %c0_58], %103 {strides = array<i32>} : memref<4x8x8xbf16, #tpu.memory_space<vmem>>, vector<1x8x8xbf16>,
    %c0_59 = arith.constant 0 : index
    %c0_60 = arith.constant 0 : index
    %c0_61 = arith.constant 0 : index
    %104 = vector.load %arg21[%c0_59, %c0_60, %c0_61] : memref<4x8x8xbf16, #tpu.memory_space<vmem>>, vector<4x8x8xbf16>
    %c0_62 = arith.constant 0 : index
    %c0_63 = arith.constant 0 : index
    %c0_64 = arith.constant 0 : index
    %105 = vector.load %arg2[%c0_62, %c0_63, %c0_64] : memref<1x8x32xf32, #tpu.memory_space<vmem>>, vector<1x8x32xf32>
    %106 = vector.shape_cast %105 : vector<1x8x32xf32> to vector<8x32xf32>
    %cst_65 = arith.constant -1.000000e+30 : f32
    %107 = vector.broadcast %cst_65 : f32 to vector<4x8x1xf32>
    %cst_66 = arith.constant 0.000000e+00 : f32
    %108 = vector.broadcast %cst_66 : f32 to vector<4x8x1xf32>
    %cst_67 = arith.constant 0.000000e+00 : f32
    %109 = vector.broadcast %cst_67 : f32 to vector<4x8x8xf32>
    %c0_68 = arith.constant 0 : index
    %c0_69 = arith.constant 0 : index
    %c0_70 = arith.constant 0 : index
    %110 = vector.load %arg22[%c0_68, %c0_69, %c0_70] : memref<4x8x8xbf16, #tpu.memory_space<vmem>>, vector<4x8x8xbf16>
    %c0_71 = arith.constant 0 : index
    %c0_72 = arith.constant 0 : index
    %c0_73 = arith.constant 0 : index
    %111 = vector.load %arg23[%c0_71, %c0_72, %c0_73] : memref<4x8x8xbf16, #tpu.memory_space<vmem>>, vector<4x8x8xbf16>
    %c0_74 = arith.constant 0 : index
    %c0_75 = arith.constant 0 : index
    %c0_76 = arith.constant 0 : index
    %112 = vector.load %arg3[%c0_74, %c0_75, %c0_76] : memref<1x1x8xf32, #tpu.memory_space<vmem>>, vector<1x1x8xf32>
    %113 = vector.shape_cast %112 : vector<1x1x8xf32> to vector<1x8xf32>
    "tpu.trace_start"() <{level = 10 : i32, message = "hqd,hkd->hqk"}> : () -> ()
    %cst_77 = arith.constant dense<0.000000e+00> : vector<4x8x8xf32>
    %114 = tpu.matmul %104, %110, %cst_77 {dimension_numbers = #tpu.dot_dimension_numbers<[2], [2], [1], [1], [0, 0, 0, 1, 1, 1], [0], [0]>} : vector<4x8x8xbf16>, vector<4x8x8xbf16>, vector<4x8x8xf32> -> vector<4x8x8xf32>
    "tpu.trace_stop"() : () -> ()
    %115 = vector.shape_cast %113 : vector<1x8xf32> to vector<1x1x8xf32>
    %116 = vector.broadcast %115 : vector<1x1x8xf32> to vector<4x8x8xf32>
    %117 = arith.addf %114, %116 : vector<4x8x8xf32>
    %cst_78 = arith.constant dense<0xFF800000> : vector<4x8xf32>
    %118 = vector.multi_reduction <maximumf>, %117, %cst_78 [2] : vector<4x8x8xf32> to vector<4x8xf32>
    %119 = vector.shape_cast %118 : vector<4x8xf32> to vector<4x8x1xf32>
    %120 = arith.maximumf %107, %119 : vector<4x8x1xf32>
    %121 = arith.subf %107, %120 : vector<4x8x1xf32>
    %122 = math.exp %121 : vector<4x8x1xf32>
    %123 = vector.broadcast %120 : vector<4x8x1xf32> to vector<4x8x8xf32>
    %124 = arith.subf %117, %123 : vector<4x8x8xf32>
    %125 = math.exp %124 : vector<4x8x8xf32>
    %126 = arith.mulf %122, %108 : vector<4x8x1xf32>
    %cst_79 = arith.constant dense<0.000000e+00> : vector<4x8xf32>
    %127 = vector.multi_reduction <add>, %125, %cst_79 [2] : vector<4x8x8xf32> to vector<4x8xf32>
    %128 = vector.shape_cast %127 : vector<4x8xf32> to vector<4x8x1xf32>
    %129 = arith.addf %126, %128 : vector<4x8x1xf32>
    %130 = vector.broadcast %122 : vector<4x8x1xf32> to vector<4x8x8xf32>
    %131 = arith.mulf %130, %109 : vector<4x8x8xf32>
    %132 = arith.truncf %125 : vector<4x8x8xf32> to vector<4x8x8xbf16>
    "tpu.trace_start"() <{level = 10 : i32, message = "hqk,hkd->hqd"}> : () -> ()
    %cst_80 = arith.constant dense<0.000000e+00> : vector<4x8x8xf32>
    %133 = tpu.matmul %132, %111, %cst_80 {dimension_numbers = #tpu.dot_dimension_numbers<[2], [1], [1], [2], [0, 0, 0, 1, 1, 2], [0], [0]>} : vector<4x8x8xbf16>, vector<4x8x8xbf16>, vector<4x8x8xf32> -> vector<4x8x8xf32>
    "tpu.trace_stop"() : () -> ()
    %134 = arith.addf %131, %133 : vector<4x8x8xf32>
    %135 = vector.broadcast %129 : vector<4x8x1xf32> to vector<4x8x8xf32>
    %136 = arith.divf %134, %135 : vector<4x8x8xf32>
    %137 = vector.extract_strided_slice %136 {offsets = [0, 0, 0], sizes = [1, 8, 8], strides = [1, 1, 1]} : vector<4x8x8xf32> to vector<1x8x8xf32>
    %138 = vector.shape_cast %137 : vector<1x8x8xf32> to vector<8x8xf32>
    %139 = vector.extract_strided_slice %136 {offsets = [1, 0, 0], sizes = [1, 8, 8], strides = [1, 1, 1]} : vector<4x8x8xf32> to vector<1x8x8xf32>
    %140 = vector.shape_cast %139 : vector<1x8x8xf32> to vector<8x8xf32>
    %141 = vector.extract_strided_slice %136 {offsets = [2, 0, 0], sizes = [1, 8, 8], strides = [1, 1, 1]} : vector<4x8x8xf32> to vector<1x8x8xf32>
    %142 = vector.shape_cast %141 : vector<1x8x8xf32> to vector<8x8xf32>
    %143 = vector.extract_strided_slice %136 {offsets = [3, 0, 0], sizes = [1, 8, 8], strides = [1, 1, 1]} : vector<4x8x8xf32> to vector<1x8x8xf32>
    %144 = vector.shape_cast %143 : vector<1x8x8xf32> to vector<8x8xf32>
    %145 = tpu.concatenate %138, %140, %142, %144 in 1 : vector<8x8xf32>, vector<8x8xf32>, vector<8x8xf32>, vector<8x8xf32> -> vector<8x32xf32>
    %146 = arith.truncf %145 : vector<8x32xf32> to vector<8x32xbf16>
    %c0_81 = arith.constant 0 : index
    %c0_82 = arith.constant 0 : index
    %147 = vector.load %arg12[%c0_81, %c0_82] : memref<32x32xbf16, #tpu.memory_space<vmem>>, vector<32x32xbf16>
    %cst_83 = arith.constant dense<0.000000e+00> : vector<8x32xf32>
    %148 = tpu.matmul %146, %147, %cst_83 {dimension_numbers = #tpu.dot_dimension_numbers<[1], [0], [0], [1], [0, 0, 1, 1], [], []>} : vector<8x32xbf16>, vector<32x32xbf16>, vector<8x32xf32> -> vector<8x32xf32>
    %c0_84 = arith.constant 0 : index
    %c0_85 = arith.constant 0 : index
    %149 = vector.load %arg13[%c0_84, %c0_85] : memref<1x32xf32, #tpu.memory_space<vmem>>, vector<1x32xf32>
    %150 = vector.broadcast %149 : vector<1x32xf32> to vector<8x32xf32>
    %151 = arith.addf %148, %150 : vector<8x32xf32>
    %152 = arith.addf %151, %106 : vector<8x32xf32>
    %c0_86 = arith.constant 0 : index
    %c0_87 = arith.constant 0 : index
    %153 = vector.load %arg14[%c0_86, %c0_87] : memref<1x32xf32, #tpu.memory_space<vmem>>, vector<1x32xf32>
    %c0_88 = arith.constant 0 : index
    %c0_89 = arith.constant 0 : index
    %154 = vector.load %arg15[%c0_88, %c0_89] : memref<1x32xf32, #tpu.memory_space<vmem>>, vector<1x32xf32>
    %cst_90 = arith.constant dense<0.000000e+00> : vector<8xf32>
    %155 = vector.multi_reduction <add>, %152, %cst_90 [1] : vector<8x32xf32> to vector<8xf32>
    %156 = vector.shape_cast %155 : vector<8xf32> to vector<8x1xf32>
    %cst_91 = arith.constant 3.200000e+01 : f32
    %157 = vector.broadcast %cst_91 : f32 to vector<8x1xf32>
    %158 = arith.divf %156, %157 : vector<8x1xf32>
    %159 = arith.mulf %152, %152 : vector<8x32xf32>
    %cst_92 = arith.constant dense<0.000000e+00> : vector<8xf32>
    %160 = vector.multi_reduction <add>, %159, %cst_92 [1] : vector<8x32xf32> to vector<8xf32>
    %161 = vector.shape_cast %160 : vector<8xf32> to vector<8x1xf32>
    %cst_93 = arith.constant 3.200000e+01 : f32
    %162 = vector.broadcast %cst_93 : f32 to vector<8x1xf32>
    %163 = arith.divf %161, %162 : vector<8x1xf32>
    %164 = arith.mulf %158, %158 : vector<8x1xf32>
    %165 = arith.subf %163, %164 : vector<8x1xf32>
    %cst_94 = arith.constant 0.000000e+00 : f32
    %166 = vector.broadcast %cst_94 : f32 to vector<8x1xf32>
    %167 = arith.maximumf %165, %166 : vector<8x1xf32>
    %168 = vector.broadcast %158 : vector<8x1xf32> to vector<8x32xf32>
    %169 = arith.subf %152, %168 : vector<8x32xf32>
    %cst_95 = arith.constant 9.99999974E-6 : f32
    %170 = vector.broadcast %cst_95 : f32 to vector<8x1xf32>
    %171 = arith.addf %167, %170 : vector<8x1xf32>
    %172 = math.rsqrt %171 : vector<8x1xf32>
    %173 = vector.broadcast %172 : vector<8x1xf32> to vector<8x32xf32>
    %174 = arith.mulf %169, %173 : vector<8x32xf32>
    %175 = vector.broadcast %153 : vector<1x32xf32> to vector<8x32xf32>
    %176 = arith.mulf %174, %175 : vector<8x32xf32>
    %177 = vector.broadcast %154 : vector<1x32xf32> to vector<8x32xf32>
    %178 = arith.addf %176, %177 : vector<8x32xf32>
    %179 = arith.truncf %178 : vector<8x32xf32> to vector<8x32xbf16>
    %c0_96 = arith.constant 0 : index
    %c0_97 = arith.constant 0 : index
    %180 = vector.load %arg16[%c0_96, %c0_97] : memref<32x32xbf16, #tpu.memory_space<vmem>>, vector<32x32xbf16>
    %cst_98 = arith.constant dense<0.000000e+00> : vector<8x32xf32>
    %181 = tpu.matmul %179, %180, %cst_98 {dimension_numbers = #tpu.dot_dimension_numbers<[1], [0], [0], [1], [0, 0, 1, 1], [], []>} : vector<8x32xbf16>, vector<32x32xbf16>, vector<8x32xf32> -> vector<8x32xf32>
    %c0_99 = arith.constant 0 : index
    %c0_100 = arith.constant 0 : index
    %182 = vector.load %arg17[%c0_99, %c0_100] : memref<1x32xf32, #tpu.memory_space<vmem>>, vector<1x32xf32>
    %183 = vector.broadcast %182 : vector<1x32xf32> to vector<8x32xf32>
    %184 = arith.addf %181, %183 : vector<8x32xf32>
    %cst_101 = arith.constant 5.000000e-01 : f32
    %185 = vector.broadcast %cst_101 : f32 to vector<8x32xf32>
    %186 = arith.mulf %185, %184 : vector<8x32xf32>
    %cst_102 = arith.constant 0.707106769 : f32
    %187 = vector.broadcast %cst_102 : f32 to vector<8x32xf32>
    %188 = arith.mulf %184, %187 : vector<8x32xf32>
    %189 = math.erf %188 : vector<8x32xf32>
    %cst_103 = arith.constant 1.000000e+00 : f32
    %190 = vector.broadcast %cst_103 : f32 to vector<8x32xf32>
    %191 = arith.addf %190, %189 : vector<8x32xf32>
    %192 = arith.mulf %186, %191 : vector<8x32xf32>
    %193 = arith.truncf %192 : vector<8x32xf32> to vector<8x32xbf16>
    %c0_104 = arith.constant 0 : index
    %c0_105 = arith.constant 0 : index
    %194 = vector.load %arg18[%c0_104, %c0_105] : memref<32x32xbf16, #tpu.memory_space<vmem>>, vector<32x32xbf16>
    %cst_106 = arith.constant dense<0.000000e+00> : vector<8x32xf32>
    %195 = tpu.matmul %193, %194, %cst_106 {dimension_numbers = #tpu.dot_dimension_numbers<[1], [0], [0], [1], [0, 0, 1, 1], [], []>} : vector<8x32xbf16>, vector<32x32xbf16>, vector<8x32xf32> -> vector<8x32xf32>
    %c0_107 = arith.constant 0 : index
    %c0_108 = arith.constant 0 : index
    %196 = vector.load %arg19[%c0_107, %c0_108] : memref<1x32xf32, #tpu.memory_space<vmem>>, vector<1x32xf32>
    %197 = vector.broadcast %196 : vector<1x32xf32> to vector<8x32xf32>
    %198 = arith.addf %195, %197 : vector<8x32xf32>
    %199 = arith.addf %152, %198 : vector<8x32xf32>
    %c0_109 = arith.constant 0 : index
    %c0_110 = arith.constant 0 : index
    %c0_111 = arith.constant 0 : index
    %200 = vector.load %arg20[%c0_109, %c0_110, %c0_111] : memref<1x8x32xf32, #tpu.memory_space<vmem>>, vector<1x8x32xf32>
    %201 = vector.shape_cast %200 : vector<1x8x32xf32> to vector<8x32xf32>
    %202 = vector.shape_cast %199 : vector<8x32xf32> to vector<1x8x32xf32>
    tpu.vector_store %arg20[%c0_109, %c0_110, %c0_111], %202 {strides = array<i32>} : memref<1x8x32xf32, #tpu.memory_space<vmem>>, vector<1x8x32xf32>,
    return
  }
  func.func @transform_0(%arg0: i32, %arg1: i32) -> (i32, i32, i32) {
    %c0_i32 = arith.constant 0 : i32
    %c0_i32_0 = arith.constant 0 : i32
    %c0_i32_1 = arith.constant 0 : i32
    return %arg0, %c0_i32, %c0_i32_0 : i32, i32, i32
  }
  func.func @transform_1(%arg0: i32, %arg1: i32) -> (i32, i32, i32) {
    %c0_i32 = arith.constant 0 : i32
    %c0_i32_0 = arith.constant 0 : i32
    %c0_i32_1 = arith.constant 0 : i32
    return %arg0, %c0_i32, %c0_i32_0 : i32, i32, i32
  }
  func.func @transform_2(%arg0: i32, %arg1: i32) -> (i32, i32) {
    %c0_i32 = arith.constant 0 : i32
    %c0_i32_0 = arith.constant 0 : i32
    %c0_i32_1 = arith.constant 0 : i32
    return %c0_i32, %c0_i32_0 : i32, i32
  }
  func.func @transform_3(%arg0: i32, %arg1: i32) -> (i32, i32) {
    %c0_i32 = arith.constant 0 : i32
    %c0_i32_0 = arith.constant 0 : i32
    %c0_i32_1 = arith.constant 0 : i32
    return %c0_i32, %c0_i32_0 : i32, i32
  }
  func.func @transform_4(%arg0: i32, %arg1: i32) -> (i32, i32) {
    %c0_i32 = arith.constant 0 : i32
    %c0_i32_0 = arith.constant 0 : i32
    %c0_i32_1 = arith.constant 0 : i32
    return %c0_i32, %c0_i32_0 : i32, i32
  }
  func.func @transform_5(%arg0: i32, %arg1: i32) -> (i32, i32) {
    %c0_i32 = arith.constant 0 : i32
    %c0_i32_0 = arith.constant 0 : i32
    %c0_i32_1 = arith.constant 0 : i32
    return %c0_i32, %c0_i32_0 : i32, i32
  }
  func.func @transform_6(%arg0: i32, %arg1: i32) -> (i32, i32) {
    %c0_i32 = arith.constant 0 : i32
    %c0_i32_0 = arith.constant 0 : i32
    %c0_i32_1 = arith.constant 0 : i32
    return %c0_i32, %c0_i32_0 : i32, i32
  }
  func.func @transform_7(%arg0: i32, %arg1: i32) -> (i32, i32) {
    %c0_i32 = arith.constant 0 : i32
    %c0_i32_0 = arith.constant 0 : i32
    %c0_i32_1 = arith.constant 0 : i32
    return %c0_i32, %c0_i32_0 : i32, i32
  }
  func.func @transform_8(%arg0: i32, %arg1: i32) -> (i32, i32) {
    %c0_i32 = arith.constant 0 : i32
    %c0_i32_0 = arith.constant 0 : i32
    %c0_i32_1 = arith.constant 0 : i32
    return %c0_i32, %c0_i32_0 : i32, i32
  }
  func.func @transform_9(%arg0: i32, %arg1: i32) -> (i32, i32) {
    %c0_i32 = arith.constant 0 : i32
    %c0_i32_0 = arith.constant 0 : i32
    %c0_i32_1 = arith.constant 0 : i32
    return %c0_i32, %c0_i32_0 : i32, i32
  }
  func.func @transform_10(%arg0: i32, %arg1: i32) -> (i32, i32) {
    %c0_i32 = arith.constant 0 : i32
    %c0_i32_0 = arith.constant 0 : i32
    %c0_i32_1 = arith.constant 0 : i32
    return %c0_i32, %c0_i32_0 : i32, i32
  }
  func.func @transform_11(%arg0: i32, %arg1: i32) -> (i32, i32) {
    %c0_i32 = arith.constant 0 : i32
    %c0_i32_0 = arith.constant 0 : i32
    %c0_i32_1 = arith.constant 0 : i32
    return %c0_i32, %c0_i32_0 : i32, i32
  }
  func.func @transform_12(%arg0: i32, %arg1: i32) -> (i32, i32) {
    %c0_i32 = arith.constant 0 : i32
    %c0_i32_0 = arith.constant 0 : i32
    %c0_i32_1 = arith.constant 0 : i32
    return %c0_i32, %c0_i32_0 : i32, i32
  }
  func.func @transform_13(%arg0: i32, %arg1: i32) -> (i32, i32) {
    %c0_i32 = arith.constant 0 : i32
    %c0_i32_0 = arith.constant 0 : i32
    %c0_i32_1 = arith.constant 0 : i32
    return %c0_i32, %c0_i32_0 : i32, i32
  }
  func.func @transform_14(%arg0: i32, %arg1: i32) -> (i32, i32) {
    %c0_i32 = arith.constant 0 : i32
    %c0_i32_0 = arith.constant 0 : i32
    %c0_i32_1 = arith.constant 0 : i32
    return %c0_i32, %c0_i32_0 : i32, i32
  }
  func.func @transform_15(%arg0: i32, %arg1: i32) -> (i32, i32) {
    %c0_i32 = arith.constant 0 : i32
    %c0_i32_0 = arith.constant 0 : i32
    %c0_i32_1 = arith.constant 0 : i32
    return %c0_i32, %c0_i32_0 : i32, i32
  }
  func.func @transform_16(%arg0: i32, %arg1: i32) -> (i32, i32) {
    %c0_i32 = arith.constant 0 : i32
    %c0_i32_0 = arith.constant 0 : i32
    %c0_i32_1 = arith.constant 0 : i32
    return %c0_i32, %c0_i32_0 : i32, i32
  }
  func.func @transform_17(%arg0: i32, %arg1: i32) -> (i32, i32) {
    %c0_i32 = arith.constant 0 : i32
    %c0_i32_0 = arith.constant 0 : i32
    %c0_i32_1 = arith.constant 0 : i32
    return %c0_i32, %c0_i32_0 : i32, i32
  }
  func.func @transform_18(%arg0: i32, %arg1: i32) -> (i32, i32, i32) {
    %c0_i32 = arith.constant 0 : i32
    %c0_i32_0 = arith.constant 0 : i32
    return %arg0, %arg1, %c0_i32 : i32, i32, i32
  }
}

module attributes {stable_mosaic.version = 11 : i64} {
  func.func @kernel(%arg0: i32, %arg1: i32, %arg2: memref<1x8x32xf32, #tpu.memory_space<vmem>>, %arg3: memref<1x1x8xf32, #tpu.memory_space<vmem>>, %arg4: memref<1x32xf32, #tpu.memory_space<vmem>>, %arg5: memref<1x32xf32, #tpu.memory_space<vmem>>, %arg6: memref<32x32xbf16, #tpu.memory_space<vmem>>, %arg7: memref<32x32xbf16, #tpu.memory_space<vmem>>, %arg8: memref<32x32xbf16, #tpu.memory_space<vmem>>, %arg9: memref<1x32xf32, #tpu.memory_space<vmem>>, %arg10: memref<1x32xf32, #tpu.memory_space<vmem>>, %arg11: memref<1x32xf32, #tpu.memory_space<vmem>>, %arg12: memref<32x32xbf16, #tpu.memory_space<vmem>>, %arg13: memref<1x32xf32, #tpu.memory_space<vmem>>, %arg14: memref<1x32xf32, #tpu.memory_space<vmem>>, %arg15: memref<1x32xf32, #tpu.memory_space<vmem>>, %arg16: memref<32x32xbf16, #tpu.memory_space<vmem>>, %arg17: memref<1x32xf32, #tpu.memory_space<vmem>>, %arg18: memref<32x32xbf16, #tpu.memory_space<vmem>>, %arg19: memref<1x32xf32, #tpu.memory_space<vmem>>, %arg20: memref<1x8x32xf32, #tpu.memory_space<vmem>>, %arg21: memref<4x8x8xbf16, #tpu.memory_space<vmem>>, %arg22: memref<4x8x8xbf16, #tpu.memory_space<vmem>>, %arg23: memref<4x8x8xbf16, #tpu.memory_space<vmem>>) attributes {dimension_semantics = [#tpu.dimension_semantics<parallel>, #tpu.dimension_semantics<arbitrary>], iteration_bounds = array<i64: 2, 1>, scalar_prefetch = 0 : i64, scratch_operands = 3 : i64, tpu.core_type = #tpu.core_type<tc>, window_params = [{transform_indices = @transform_0, window_bounds = array<i64: 1, 8, 32>}, {transform_indices = @transform_1, window_bounds = array<i64: 1, 1, 8>}, {pipeline_mode = #tpu.pipeline_mode<synchronous>, transform_indices = @transform_2, window_bounds = array<i64: 1, 32>}, {pipeline_mode = #tpu.pipeline_mode<synchronous>, transform_indices = @transform_3, window_bounds = array<i64: 1, 32>}, {pipeline_mode = #tpu.pipeline_mode<synchronous>, transform_indices = @transform_4, window_bounds = array<i64: 32, 32>}, {pipeline_mode = #tpu.pipeline_mode<synchronous>, transform_indices = @transform_5, window_bounds = array<i64: 32, 32>}, {pipeline_mode = #tpu.pipeline_mode<synchronous>, transform_indices = @transform_6, window_bounds = array<i64: 32, 32>}, {pipeline_mode = #tpu.pipeline_mode<synchronous>, transform_indices = @transform_7, window_bounds = array<i64: 1, 32>}, {pipeline_mode = #tpu.pipeline_mode<synchronous>, transform_indices = @transform_8, window_bounds = array<i64: 1, 32>}, {pipeline_mode = #tpu.pipeline_mode<synchronous>, transform_indices = @transform_9, window_bounds = array<i64: 1, 32>}, {pipeline_mode = #tpu.pipeline_mode<synchronous>, transform_indices = @transform_10, window_bounds = array<i64: 32, 32>}, {pipeline_mode = #tpu.pipeline_mode<synchronous>, transform_indices = @transform_11, window_bounds = array<i64: 1, 32>}, {pipeline_mode = #tpu.pipeline_mode<synchronous>, transform_indices = @transform_12, window_bounds = array<i64: 1, 32>}, {pipeline_mode = #tpu.pipeline_mode<synchronous>, transform_indices = @transform_13, window_bounds = array<i64: 1, 32>}, {pipeline_mode = #tpu.pipeline_mode<synchronous>, transform_indices = @transform_14, window_bounds = array<i64: 32, 32>}, {pipeline_mode = #tpu.pipeline_mode<synchronous>, transform_indices = @transform_15, window_bounds = array<i64: 1, 32>}, {pipeline_mode = #tpu.pipeline_mode<synchronous>, transform_indices = @transform_16, window_bounds = array<i64: 32, 32>}, {pipeline_mode = #tpu.pipeline_mode<synchronous>, transform_indices = @transform_17, window_bounds = array<i64: 1, 32>}, {transform_indices = @transform_18, window_bounds = array<i64: 1, 8, 32>}]} {
    %c0 = arith.constant 0 : index
    %c0_0 = arith.constant 0 : index
    %c0_1 = arith.constant 0 : index
    %0 = vector.load %arg2[%c0, %c0_0, %c0_1] : memref<1x8x32xf32, #tpu.memory_space<vmem>>, vector<1x8x32xf32>
    %1 = vector.shape_cast %0 : vector<1x8x32xf32> to vector<8x32xf32>
    %c0_2 = arith.constant 0 : index
    %c0_3 = arith.constant 0 : index
    %2 = vector.load %arg4[%c0_2, %c0_3] : memref<1x32xf32, #tpu.memory_space<vmem>>, vector<1x32xf32>
    %c0_4 = arith.constant 0 : index
    %c0_5 = arith.constant 0 : index
    %3 = vector.load %arg5[%c0_4, %c0_5] : memref<1x32xf32, #tpu.memory_space<vmem>>, vector<1x32xf32>
    %cst = arith.constant dense<0.000000e+00> : vector<8xf32>
    %4 = vector.multi_reduction <add>, %1, %cst [1] : vector<8x32xf32> to vector<8xf32>
    %5 = vector.shape_cast %4 : vector<8xf32> to vector<8x1xf32>
    %cst_6 = arith.constant 3.200000e+01 : f32
    %6 = vector.broadcast %cst_6 : f32 to vector<8x1xf32>
    %7 = arith.divf %5, %6 : vector<8x1xf32>
    %8 = arith.mulf %1, %1 : vector<8x32xf32>
    %cst_7 = arith.constant dense<0.000000e+00> : vector<8xf32>
    %9 = vector.multi_reduction <add>, %8, %cst_7 [1] : vector<8x32xf32> to vector<8xf32>
    %10 = vector.shape_cast %9 : vector<8xf32> to vector<8x1xf32>
    %cst_8 = arith.constant 3.200000e+01 : f32
    %11 = vector.broadcast %cst_8 : f32 to vector<8x1xf32>
    %12 = arith.divf %10, %11 : vector<8x1xf32>
    %13 = arith.mulf %7, %7 : vector<8x1xf32>
    %14 = arith.subf %12, %13 : vector<8x1xf32>
    %cst_9 = arith.constant 0.000000e+00 : f32
    %15 = vector.broadcast %cst_9 : f32 to vector<8x1xf32>
    %16 = arith.maximumf %14, %15 : vector<8x1xf32>
    %17 = vector.broadcast %7 : vector<8x1xf32> to vector<8x32xf32>
    %18 = arith.subf %1, %17 : vector<8x32xf32>
    %cst_10 = arith.constant 9.99999974E-6 : f32
    %19 = vector.broadcast %cst_10 : f32 to vector<8x1xf32>
    %20 = arith.addf %16, %19 : vector<8x1xf32>
    %21 = math.rsqrt %20 : vector<8x1xf32>
    %22 = vector.broadcast %21 : vector<8x1xf32> to vector<8x32xf32>
    %23 = arith.mulf %18, %22 : vector<8x32xf32>
    %24 = vector.broadcast %2 : vector<1x32xf32> to vector<8x32xf32>
    %25 = arith.mulf %23, %24 : vector<8x32xf32>
    %26 = vector.broadcast %3 : vector<1x32xf32> to vector<8x32xf32>
    %27 = arith.addf %25, %26 : vector<8x32xf32>
    %28 = arith.truncf %27 : vector<8x32xf32> to vector<8x32xbf16>
    %c0_11 = arith.constant 0 : index
    %c0_12 = arith.constant 0 : index
    %29 = vector.load %arg6[%c0_11, %c0_12] : memref<32x32xbf16, #tpu.memory_space<vmem>>, vector<32x32xbf16>
    %cst_13 = arith.constant dense<0.000000e+00> : vector<8x32xf32>
    %30 = tpu.matmul %28, %29, %cst_13 {dimension_numbers = #tpu.dot_dimension_numbers<[1], [0], [0], [1], [0, 0, 1, 1], [], []>} : vector<8x32xbf16>, vector<32x32xbf16>, vector<8x32xf32> -> vector<8x32xf32>
    %c0_14 = arith.constant 0 : index
    %c0_15 = arith.constant 0 : index
    %31 = vector.load %arg9[%c0_14, %c0_15] : memref<1x32xf32, #tpu.memory_space<vmem>>, vector<1x32xf32>
    %32 = vector.broadcast %31 : vector<1x32xf32> to vector<8x32xf32>
    %33 = arith.addf %30, %32 : vector<8x32xf32>
    %c0_16 = arith.constant 0 : index
    %c0_17 = arith.constant 0 : index
    %34 = vector.load %arg7[%c0_16, %c0_17] : memref<32x32xbf16, #tpu.memory_space<vmem>>, vector<32x32xbf16>
    %cst_18 = arith.constant dense<0.000000e+00> : vector<8x32xf32>
    %35 = tpu.matmul %28, %34, %cst_18 {dimension_numbers = #tpu.dot_dimension_numbers<[1], [0], [0], [1], [0, 0, 1, 1], [], []>} : vector<8x32xbf16>, vector<32x32xbf16>, vector<8x32xf32> -> vector<8x32xf32>
    %c0_19 = arith.constant 0 : index
    %c0_20 = arith.constant 0 : index
    %36 = vector.load %arg10[%c0_19, %c0_20] : memref<1x32xf32, #tpu.memory_space<vmem>>, vector<1x32xf32>
    %37 = vector.broadcast %36 : vector<1x32xf32> to vector<8x32xf32>
    %38 = arith.addf %35, %37 : vector<8x32xf32>
    %c0_21 = arith.constant 0 : index
    %c0_22 = arith.constant 0 : index
    %39 = vector.load %arg8[%c0_21, %c0_22] : memref<32x32xbf16, #tpu.memory_space<vmem>>, vector<32x32xbf16>
    %cst_23 = arith.constant dense<0.000000e+00> : vector<8x32xf32>
    %40 = tpu.matmul %28, %39, %cst_23 {dimension_numbers = #tpu.dot_dimension_numbers<[1], [0], [0], [1], [0, 0, 1, 1], [], []>} : vector<8x32xbf16>, vector<32x32xbf16>, vector<8x32xf32> -> vector<8x32xf32>
    %c0_24 = arith.constant 0 : index
    %c0_25 = arith.constant 0 : index
    %41 = vector.load %arg11[%c0_24, %c0_25] : memref<1x32xf32, #tpu.memory_space<vmem>>, vector<1x32xf32>
    %42 = vector.broadcast %41 : vector<1x32xf32> to vector<8x32xf32>
    %43 = arith.addf %40, %42 : vector<8x32xf32>
    %44 = vector.extract_strided_slice %33 {offsets = [0, 0], sizes = [8, 8], strides = [1, 1]} : vector<8x32xf32> to vector<8x8xf32>
    %45 = arith.truncf %44 : vector<8x8xf32> to vector<8x8xbf16>
    %c0_26 = arith.constant 0 : index
    %c0_27 = arith.constant 0 : index
    %c0_28 = arith.constant 0 : index
    %46 = vector.load %arg21[%c0_26, %c0_27, %c0_28] : memref<4x8x8xbf16, #tpu.memory_space<vmem>>, vector<1x8x8xbf16>
    %47 = vector.shape_cast %46 : vector<1x8x8xbf16> to vector<8x8xbf16>
    %48 = vector.shape_cast %45 : vector<8x8xbf16> to vector<1x8x8xbf16>
    tpu.vector_store %arg21[%c0_26, %c0_27, %c0_28], %48 {strides = array<i32>} : memref<4x8x8xbf16, #tpu.memory_space<vmem>>, vector<1x8x8xbf16>,
    %49 = vector.extract_strided_slice %38 {offsets = [0, 0], sizes = [8, 8], strides = [1, 1]} : vector<8x32xf32> to vector<8x8xf32>
    %50 = arith.truncf %49 : vector<8x8xf32> to vector<8x8xbf16>
    %c0_29 = arith.constant 0 : index
    %c0_30 = arith.constant 0 : index
    %c0_31 = arith.constant 0 : index
    %51 = vector.load %arg22[%c0_29, %c0_30, %c0_31] : memref<4x8x8xbf16, #tpu.memory_space<vmem>>, vector<1x8x8xbf16>
    %52 = vector.shape_cast %51 : vector<1x8x8xbf16> to vector<8x8xbf16>
    %53 = vector.shape_cast %50 : vector<8x8xbf16> to vector<1x8x8xbf16>
    tpu.vector_store %arg22[%c0_29, %c0_30, %c0_31], %53 {strides = array<i32>} : memref<4x8x8xbf16, #tpu.memory_space<vmem>>, vector<1x8x8xbf16>,
    %54 = vector.extract_strided_slice %43 {offsets = [0, 0], sizes = [8, 8], strides = [1, 1]} : vector<8x32xf32> to vector<8x8xf32>
    %55 = arith.truncf %54 : vector<8x8xf32> to vector<8x8xbf16>
    %c0_32 = arith.constant 0 : index
    %c0_33 = arith.constant 0 : index
    %c0_34 = arith.constant 0 : index
    %56 = vector.load %arg23[%c0_32, %c0_33, %c0_34] : memref<4x8x8xbf16, #tpu.memory_space<vmem>>, vector<1x8x8xbf16>
    %57 = vector.shape_cast %56 : vector<1x8x8xbf16> to vector<8x8xbf16>
    %58 = vector.shape_cast %55 : vector<8x8xbf16> to vector<1x8x8xbf16>
    tpu.vector_store %arg23[%c0_32, %c0_33, %c0_34], %58 {strides = array<i32>} : memref<4x8x8xbf16, #tpu.memory_space<vmem>>, vector<1x8x8xbf16>,
    %59 = vector.extract_strided_slice %33 {offsets = [0, 8], sizes = [8, 8], strides = [1, 1]} : vector<8x32xf32> to vector<8x8xf32>
    %60 = arith.truncf %59 : vector<8x8xf32> to vector<8x8xbf16>
    %c1 = arith.constant 1 : index
    %c0_35 = arith.constant 0 : index
    %c0_36 = arith.constant 0 : index
    %61 = vector.load %arg21[%c1, %c0_35, %c0_36] : memref<4x8x8xbf16, #tpu.memory_space<vmem>>, vector<1x8x8xbf16>
    %62 = vector.shape_cast %61 : vector<1x8x8xbf16> to vector<8x8xbf16>
    %63 = vector.shape_cast %60 : vector<8x8xbf16> to vector<1x8x8xbf16>
    tpu.vector_store %arg21[%c1, %c0_35, %c0_36], %63 {strides = array<i32>} : memref<4x8x8xbf16, #tpu.memory_space<vmem>>, vector<1x8x8xbf16>,
    %64 = vector.extract_strided_slice %38 {offsets = [0, 8], sizes = [8, 8], strides = [1, 1]} : vector<8x32xf32> to vector<8x8xf32>
    %65 = arith.truncf %64 : vector<8x8xf32> to vector<8x8xbf16>
    %c1_37 = arith.constant 1 : index
    %c0_38 = arith.constant 0 : index
    %c0_39 = arith.constant 0 : index
    %66 = vector.load %arg22[%c1_37, %c0_38, %c0_39] : memref<4x8x8xbf16, #tpu.memory_space<vmem>>, vector<1x8x8xbf16>
    %67 = vector.shape_cast %66 : vector<1x8x8xbf16> to vector<8x8xbf16>
    %68 = vector.shape_cast %65 : vector<8x8xbf16> to vector<1x8x8xbf16>
    tpu.vector_store %arg22[%c1_37, %c0_38, %c0_39], %68 {strides = array<i32>} : memref<4x8x8xbf16, #tpu.memory_space<vmem>>, vector<1x8x8xbf16>,
    %69 = vector.extract_strided_slice %43 {offsets = [0, 8], sizes = [8, 8], strides = [1, 1]} : vector<8x32xf32> to vector<8x8xf32>
    %70 = arith.truncf %69 : vector<8x8xf32> to vector<8x8xbf16>
    %c1_40 = arith.constant 1 : index
    %c0_41 = arith.constant 0 : index
    %c0_42 = arith.constant 0 : index
    %71 = vector.load %arg23[%c1_40, %c0_41, %c0_42] : memref<4x8x8xbf16, #tpu.memory_space<vmem>>, vector<1x8x8xbf16>
    %72 = vector.shape_cast %71 : vector<1x8x8xbf16> to vector<8x8xbf16>
    %73 = vector.shape_cast %70 : vector<8x8xbf16> to vector<1x8x8xbf16>
    tpu.vector_store %arg23[%c1_40, %c0_41, %c0_42], %73 {strides = array<i32>} : memref<4x8x8xbf16, #tpu.memory_space<vmem>>, vector<1x8x8xbf16>,
    %74 = vector.extract_strided_slice %33 {offsets = [0, 16], sizes = [8, 8], strides = [1, 1]} : vector<8x32xf32> to vector<8x8xf32>
    %75 = arith.truncf %74 : vector<8x8xf32> to vector<8x8xbf16>
    %c2 = arith.constant 2 : index
    %c0_43 = arith.constant 0 : index
    %c0_44 = arith.constant 0 : index
    %76 = vector.load %arg21[%c2, %c0_43, %c0_44] : memref<4x8x8xbf16, #tpu.memory_space<vmem>>, vector<1x8x8xbf16>
    %77 = vector.shape_cast %76 : vector<1x8x8xbf16> to vector<8x8xbf16>
    %78 = vector.shape_cast %75 : vector<8x8xbf16> to vector<1x8x8xbf16>
    tpu.vector_store %arg21[%c2, %c0_43, %c0_44], %78 {strides = array<i32>} : memref<4x8x8xbf16, #tpu.memory_space<vmem>>, vector<1x8x8xbf16>,
    %79 = vector.extract_strided_slice %38 {offsets = [0, 16], sizes = [8, 8], strides = [1, 1]} : vector<8x32xf32> to vector<8x8xf32>
    %80 = arith.truncf %79 : vector<8x8xf32> to vector<8x8xbf16>
    %c2_45 = arith.constant 2 : index
    %c0_46 = arith.constant 0 : index
    %c0_47 = arith.constant 0 : index
    %81 = vector.load %arg22[%c2_45, %c0_46, %c0_47] : memref<4x8x8xbf16, #tpu.memory_space<vmem>>, vector<1x8x8xbf16>
    %82 = vector.shape_cast %81 : vector<1x8x8xbf16> to vector<8x8xbf16>
    %83 = vector.shape_cast %80 : vector<8x8xbf16> to vector<1x8x8xbf16>
    tpu.vector_store %arg22[%c2_45, %c0_46, %c0_47], %83 {strides = array<i32>} : memref<4x8x8xbf16, #tpu.memory_space<vmem>>, vector<1x8x8xbf16>,
    %84 = vector.extract_strided_slice %43 {offsets = [0, 16], sizes = [8, 8], strides = [1, 1]} : vector<8x32xf32> to vector<8x8xf32>
    %85 = arith.truncf %84 : vector<8x8xf32> to vector<8x8xbf16>
    %c2_48 = arith.constant 2 : index
    %c0_49 = arith.constant 0 : index
    %c0_50 = arith.constant 0 : index
    %86 = vector.load %arg23[%c2_48, %c0_49, %c0_50] : memref<4x8x8xbf16, #tpu.memory_space<vmem>>, vector<1x8x8xbf16>
    %87 = vector.shape_cast %86 : vector<1x8x8xbf16> to vector<8x8xbf16>
    %88 = vector.shape_cast %85 : vector<8x8xbf16> to vector<1x8x8xbf16>
    tpu.vector_store %arg23[%c2_48, %c0_49, %c0_50], %88 {strides = array<i32>} : memref<4x8x8xbf16, #tpu.memory_space<vmem>>, vector<1x8x8xbf16>,
    %89 = vector.extract_strided_slice %33 {offsets = [0, 24], sizes = [8, 8], strides = [1, 1]} : vector<8x32xf32> to vector<8x8xf32>
    %90 = arith.truncf %89 : vector<8x8xf32> to vector<8x8xbf16>
    %c3 = arith.constant 3 : index
    %c0_51 = arith.constant 0 : index
    %c0_52 = arith.constant 0 : index
    %91 = vector.load %arg21[%c3, %c0_51, %c0_52] : memref<4x8x8xbf16, #tpu.memory_space<vmem>>, vector<1x8x8xbf16>
    %92 = vector.shape_cast %91 : vector<1x8x8xbf16> to vector<8x8xbf16>
    %93 = vector.shape_cast %90 : vector<8x8xbf16> to vector<1x8x8xbf16>
    tpu.vector_store %arg21[%c3, %c0_51, %c0_52], %93 {strides = array<i32>} : memref<4x8x8xbf16, #tpu.memory_space<vmem>>, vector<1x8x8xbf16>,
    %94 = vector.extract_strided_slice %38 {offsets = [0, 24], sizes = [8, 8], strides = [1, 1]} : vector<8x32xf32> to vector<8x8xf32>
    %95 = arith.truncf %94 : vector<8x8xf32> to vector<8x8xbf16>
    %c3_53 = arith.constant 3 : index
    %c0_54 = arith.constant 0 : index
    %c0_55 = arith.constant 0 : index
    %96 = vector.load %arg22[%c3_53, %c0_54, %c0_55] : memref<4x8x8xbf16, #tpu.memory_space<vmem>>, vector<1x8x8xbf16>
    %97 = vector.shape_cast %96 : vector<1x8x8xbf16> to vector<8x8xbf16>
    %98 = vector.shape_cast %95 : vector<8x8xbf16> to vector<1x8x8xbf16>
    tpu.vector_store %arg22[%c3_53, %c0_54, %c0_55], %98 {strides = array<i32>} : memref<4x8x8xbf16, #tpu.memory_space<vmem>>, vector<1x8x8xbf16>,
    %99 = vector.extract_strided_slice %43 {offsets = [0, 24], sizes = [8, 8], strides = [1, 1]} : vector<8x32xf32> to vector<8x8xf32>
    %100 = arith.truncf %99 : vector<8x8xf32> to vector<8x8xbf16>
    %c3_56 = arith.constant 3 : index
    %c0_57 = arith.constant 0 : index
    %c0_58 = arith.constant 0 : index
    %101 = vector.load %arg23[%c3_56, %c0_57, %c0_58] : memref<4x8x8xbf16, #tpu.memory_space<vmem>>, vector<1x8x8xbf16>
    %102 = vector.shape_cast %101 : vector<1x8x8xbf16> to vector<8x8xbf16>
    %103 = vector.shape_cast %100 : vector<8x8xbf16> to vector<1x8x8xbf16>
    tpu.vector_store %arg23[%c3_56, %c0_57, %c0_58], %103 {strides = array<i32>} : memref<4x8x8xbf16, #tpu.memory_space<vmem>>, vector<1x8x8xbf16>,
    %c0_59 = arith.constant 0 : index
    %c0_60 = arith.constant 0 : index
    %c0_61 = arith.constant 0 : index
    %104 = vector.load %arg21[%c0_59, %c0_60, %c0_61] : memref<4x8x8xbf16, #tpu.memory_space<vmem>>, vector<4x8x8xbf16>
    %c0_62 = arith.constant 0 : index
    %c0_63 = arith.constant 0 : index
    %c0_64 = arith.constant 0 : index
    %105 = vector.load %arg2[%c0_62, %c0_63, %c0_64] : memref<1x8x32xf32, #tpu.memory_space<vmem>>, vector<1x8x32xf32>
    %106 = vector.shape_cast %105 : vector<1x8x32xf32> to vector<8x32xf32>
    %cst_65 = arith.constant -1.000000e+30 : f32
    %107 = vector.broadcast %cst_65 : f32 to vector<4x8x1xf32>
    %cst_66 = arith.constant 0.000000e+00 : f32
    %108 = vector.broadcast %cst_66 : f32 to vector<4x8x1xf32>
    %cst_67 = arith.constant 0.000000e+00 : f32
    %109 = vector.broadcast %cst_67 : f32 to vector<4x8x8xf32>
    %c0_68 = arith.constant 0 : index
    %c0_69 = arith.constant 0 : index
    %c0_70 = arith.constant 0 : index
    %110 = vector.load %arg22[%c0_68, %c0_69, %c0_70] : memref<4x8x8xbf16, #tpu.memory_space<vmem>>, vector<4x8x8xbf16>
    %c0_71 = arith.constant 0 : index
    %c0_72 = arith.constant 0 : index
    %c0_73 = arith.constant 0 : index
    %111 = vector.load %arg23[%c0_71, %c0_72, %c0_73] : memref<4x8x8xbf16, #tpu.memory_space<vmem>>, vector<4x8x8xbf16>
    %c0_74 = arith.constant 0 : index
    %c0_75 = arith.constant 0 : index
    %c0_76 = arith.constant 0 : index
    %112 = vector.load %arg3[%c0_74, %c0_75, %c0_76] : memref<1x1x8xf32, #tpu.memory_space<vmem>>, vector<1x1x8xf32>
    %113 = vector.shape_cast %112 : vector<1x1x8xf32> to vector<1x8xf32>
    "tpu.trace_start"() <{level = 10 : i32, message = "hqd,hkd->hqk"}> : () -> ()
    %cst_77 = arith.constant dense<0.000000e+00> : vector<4x8x8xf32>
    %114 = tpu.matmul %104, %110, %cst_77 {dimension_numbers = #tpu.dot_dimension_numbers<[2], [2], [1], [1], [0, 0, 0, 1, 1, 1], [0], [0]>} : vector<4x8x8xbf16>, vector<4x8x8xbf16>, vector<4x8x8xf32> -> vector<4x8x8xf32>
    "tpu.trace_stop"() : () -> ()
    %115 = vector.shape_cast %113 : vector<1x8xf32> to vector<1x1x8xf32>
    %116 = vector.broadcast %115 : vector<1x1x8xf32> to vector<4x8x8xf32>
    %117 = arith.addf %114, %116 : vector<4x8x8xf32>
    %cst_78 = arith.constant dense<0xFF800000> : vector<4x8xf32>
    %118 = vector.multi_reduction <maximumf>, %117, %cst_78 [2] : vector<4x8x8xf32> to vector<4x8xf32>
    %119 = vector.shape_cast %118 : vector<4x8xf32> to vector<4x8x1xf32>
    %120 = arith.maximumf %107, %119 : vector<4x8x1xf32>
    %121 = arith.subf %107, %120 : vector<4x8x1xf32>
    %122 = math.exp %121 : vector<4x8x1xf32>
    %123 = vector.broadcast %120 : vector<4x8x1xf32> to vector<4x8x8xf32>
    %124 = arith.subf %117, %123 : vector<4x8x8xf32>
    %125 = math.exp %124 : vector<4x8x8xf32>
    %126 = arith.mulf %122, %108 : vector<4x8x1xf32>
    %cst_79 = arith.constant dense<0.000000e+00> : vector<4x8xf32>
    %127 = vector.multi_reduction <add>, %125, %cst_79 [2] : vector<4x8x8xf32> to vector<4x8xf32>
    %128 = vector.shape_cast %127 : vector<4x8xf32> to vector<4x8x1xf32>
    %129 = arith.addf %126, %128 : vector<4x8x1xf32>
    %130 = vector.broadcast %122 : vector<4x8x1xf32> to vector<4x8x8xf32>
    %131 = arith.mulf %130, %109 : vector<4x8x8xf32>
    %132 = arith.truncf %125 : vector<4x8x8xf32> to vector<4x8x8xbf16>
    "tpu.trace_start"() <{level = 10 : i32, message = "hqk,hkd->hqd"}> : () -> ()
    %cst_80 = arith.constant dense<0.000000e+00> : vector<4x8x8xf32>
    %133 = tpu.matmul %132, %111, %cst_80 {dimension_numbers = #tpu.dot_dimension_numbers<[2], [1], [1], [2], [0, 0, 0, 1, 1, 2], [0], [0]>} : vector<4x8x8xbf16>, vector<4x8x8xbf16>, vector<4x8x8xf32> -> vector<4x8x8xf32>
    "tpu.trace_stop"() : () -> ()
    %134 = arith.addf %131, %133 : vector<4x8x8xf32>
    %135 = vector.broadcast %129 : vector<4x8x1xf32> to vector<4x8x8xf32>
    %136 = arith.divf %134, %135 : vector<4x8x8xf32>
    %137 = vector.extract_strided_slice %136 {offsets = [0, 0, 0], sizes = [1, 8, 8], strides = [1, 1, 1]} : vector<4x8x8xf32> to vector<1x8x8xf32>
    %138 = vector.shape_cast %137 : vector<1x8x8xf32> to vector<8x8xf32>
    %139 = vector.extract_strided_slice %136 {offsets = [1, 0, 0], sizes = [1, 8, 8], strides = [1, 1, 1]} : vector<4x8x8xf32> to vector<1x8x8xf32>
    %140 = vector.shape_cast %139 : vector<1x8x8xf32> to vector<8x8xf32>
    %141 = vector.extract_strided_slice %136 {offsets = [2, 0, 0], sizes = [1, 8, 8], strides = [1, 1, 1]} : vector<4x8x8xf32> to vector<1x8x8xf32>
    %142 = vector.shape_cast %141 : vector<1x8x8xf32> to vector<8x8xf32>
    %143 = vector.extract_strided_slice %136 {offsets = [3, 0, 0], sizes = [1, 8, 8], strides = [1, 1, 1]} : vector<4x8x8xf32> to vector<1x8x8xf32>
    %144 = vector.shape_cast %143 : vector<1x8x8xf32> to vector<8x8xf32>
    %145 = tpu.concatenate %138, %140, %142, %144 in 1 : vector<8x8xf32>, vector<8x8xf32>, vector<8x8xf32>, vector<8x8xf32> -> vector<8x32xf32>
    %146 = arith.truncf %145 : vector<8x32xf32> to vector<8x32xbf16>
    %c0_81 = arith.constant 0 : index
    %c0_82 = arith.constant 0 : index
    %147 = vector.load %arg12[%c0_81, %c0_82] : memref<32x32xbf16, #tpu.memory_space<vmem>>, vector<32x32xbf16>
    %cst_83 = arith.constant dense<0.000000e+00> : vector<8x32xf32>
    %148 = tpu.matmul %146, %147, %cst_83 {dimension_numbers = #tpu.dot_dimension_numbers<[1], [0], [0], [1], [0, 0, 1, 1], [], []>} : vector<8x32xbf16>, vector<32x32xbf16>, vector<8x32xf32> -> vector<8x32xf32>
    %c0_84 = arith.constant 0 : index
    %c0_85 = arith.constant 0 : index
    %149 = vector.load %arg13[%c0_84, %c0_85] : memref<1x32xf32, #tpu.memory_space<vmem>>, vector<1x32xf32>
    %150 = vector.broadcast %149 : vector<1x32xf32> to vector<8x32xf32>
    %151 = arith.addf %148, %150 : vector<8x32xf32>
    %152 = arith.addf %151, %106 : vector<8x32xf32>
    %c0_86 = arith.constant 0 : index
    %c0_87 = arith.constant 0 : index
    %153 = vector.load %arg14[%c0_86, %c0_87] : memref<1x32xf32, #tpu.memory_space<vmem>>, vector<1x32xf32>
    %c0_88 = arith.constant 0 : index
    %c0_89 = arith.constant 0 : index
    %154 = vector.load %arg15[%c0_88, %c0_89] : memref<1x32xf32, #tpu.memory_space<vmem>>, vector<1x32xf32>
    %cst_90 = arith.constant dense<0.000000e+00> : vector<8xf32>
    %155 = vector.multi_reduction <add>, %152, %cst_90 [1] : vector<8x32xf32> to vector<8xf32>
    %156 = vector.shape_cast %155 : vector<8xf32> to vector<8x1xf32>
    %cst_91 = arith.constant 3.200000e+01 : f32
    %157 = vector.broadcast %cst_91 : f32 to vector<8x1xf32>
    %158 = arith.divf %156, %157 : vector<8x1xf32>
    %159 = arith.mulf %152, %152 : vector<8x32xf32>
    %cst_92 = arith.constant dense<0.000000e+00> : vector<8xf32>
    %160 = vector.multi_reduction <add>, %159, %cst_92 [1] : vector<8x32xf32> to vector<8xf32>
    %161 = vector.shape_cast %160 : vector<8xf32> to vector<8x1xf32>
    %cst_93 = arith.constant 3.200000e+01 : f32
    %162 = vector.broadcast %cst_93 : f32 to vector<8x1xf32>
    %163 = arith.divf %161, %162 : vector<8x1xf32>
    %164 = arith.mulf %158, %158 : vector<8x1xf32>
    %165 = arith.subf %163, %164 : vector<8x1xf32>
    %cst_94 = arith.constant 0.000000e+00 : f32
    %166 = vector.broadcast %cst_94 : f32 to vector<8x1xf32>
    %167 = arith.maximumf %165, %166 : vector<8x1xf32>
    %168 = vector.broadcast %158 : vector<8x1xf32> to vector<8x32xf32>
    %169 = arith.subf %152, %168 : vector<8x32xf32>
    %cst_95 = arith.constant 9.99999974E-6 : f32
    %170 = vector.broadcast %cst_95 : f32 to vector<8x1xf32>
    %171 = arith.addf %167, %170 : vector<8x1xf32>
    %172 = math.rsqrt %171 : vector<8x1xf32>
    %173 = vector.broadcast %172 : vector<8x1xf32> to vector<8x32xf32>
    %174 = arith.mulf %169, %173 : vector<8x32xf32>
    %175 = vector.broadcast %153 : vector<1x32xf32> to vector<8x32xf32>
    %176 = arith.mulf %174, %175 : vector<8x32xf32>
    %177 = vector.broadcast %154 : vector<1x32xf32> to vector<8x32xf32>
    %178 = arith.addf %176, %177 : vector<8x32xf32>
    %179 = arith.truncf %178 : vector<8x32xf32> to vector<8x32xbf16>
    %c0_96 = arith.constant 0 : index
    %c0_97 = arith.constant 0 : index
    %180 = vector.load %arg16[%c0_96, %c0_97] : memref<32x32xbf16, #tpu.memory_space<vmem>>, vector<32x32xbf16>
    %cst_98 = arith.constant dense<0.000000e+00> : vector<8x32xf32>
    %181 = tpu.matmul %179, %180, %cst_98 {dimension_numbers = #tpu.dot_dimension_numbers<[1], [0], [0], [1], [0, 0, 1, 1], [], []>} : vector<8x32xbf16>, vector<32x32xbf16>, vector<8x32xf32> -> vector<8x32xf32>
    %c0_99 = arith.constant 0 : index
    %c0_100 = arith.constant 0 : index
    %182 = vector.load %arg17[%c0_99, %c0_100] : memref<1x32xf32, #tpu.memory_space<vmem>>, vector<1x32xf32>
    %183 = vector.broadcast %182 : vector<1x32xf32> to vector<8x32xf32>
    %184 = arith.addf %181, %183 : vector<8x32xf32>
    %cst_101 = arith.constant 5.000000e-01 : f32
    %185 = vector.broadcast %cst_101 : f32 to vector<8x32xf32>
    %186 = arith.mulf %185, %184 : vector<8x32xf32>
    %cst_102 = arith.constant 0.707106769 : f32
    %187 = vector.broadcast %cst_102 : f32 to vector<8x32xf32>
    %188 = arith.mulf %184, %187 : vector<8x32xf32>
    %189 = math.erf %188 : vector<8x32xf32>
    %cst_103 = arith.constant 1.000000e+00 : f32
    %190 = vector.broadcast %cst_103 : f32 to vector<8x32xf32>
    %191 = arith.addf %190, %189 : vector<8x32xf32>
    %192 = arith.mulf %186, %191 : vector<8x32xf32>
    %193 = arith.truncf %192 : vector<8x32xf32> to vector<8x32xbf16>
    %c0_104 = arith.constant 0 : index
    %c0_105 = arith.constant 0 : index
    %194 = vector.load %arg18[%c0_104, %c0_105] : memref<32x32xbf16, #tpu.memory_space<vmem>>, vector<32x32xbf16>
    %cst_106 = arith.constant dense<0.000000e+00> : vector<8x32xf32>
    %195 = tpu.matmul %193, %194, %cst_106 {dimension_numbers = #tpu.dot_dimension_numbers<[1], [0], [0], [1], [0, 0, 1, 1], [], []>} : vector<8x32xbf16>, vector<32x32xbf16>, vector<8x32xf32> -> vector<8x32xf32>
    %c0_107 = arith.constant 0 : index
    %c0_108 = arith.constant 0 : index
    %196 = vector.load %arg19[%c0_107, %c0_108] : memref<1x32xf32, #tpu.memory_space<vmem>>, vector<1x32xf32>
    %197 = vector.broadcast %196 : vector<1x32xf32> to vector<8x32xf32>
    %198 = arith.addf %195, %197 : vector<8x32xf32>
    %199 = arith.addf %152, %198 : vector<8x32xf32>
    %c0_109 = arith.constant 0 : index
    %c0_110 = arith.constant 0 : index
    %c0_111 = arith.constant 0 : index
    %200 = vector.load %arg20[%c0_109, %c0_110, %c0_111] : memref<1x8x32xf32, #tpu.memory_space<vmem>>, vector<1x8x32xf32>
    %201 = vector.shape_cast %200 : vector<1x8x32xf32> to vector<8x32xf32>
    %202 = vector.shape_cast %199 : vector<8x32xf32> to vector<1x8x32xf32>
    tpu.vector_store %arg20[%c0_109, %c0_110, %c0_111], %202 {strides = array<i32>} : memref<1x8x32xf32, #tpu.memory_space<vmem>>, vector<1x8x32xf32>,
    return
  }
  func.func @transform_0(%arg0: i32, %arg1: i32) -> (i32, i32, i32) {
    %c0_i32 = arith.constant 0 : i32
    %c0_i32_0 = arith.constant 0 : i32
    %c0_i32_1 = arith.constant 0 : i32
    return %arg0, %c0_i32, %c0_i32_0 : i32, i32, i32
  }
  func.func @transform_1(%arg0: i32, %arg1: i32) -> (i32, i32, i32) {
    %c0_i32 = arith.constant 0 : i32
    %c0_i32_0 = arith.constant 0 : i32
    %c0_i32_1 = arith.constant 0 : i32
    return %arg0, %c0_i32, %c0_i32_0 : i32, i32, i32
  }
  func.func @transform_2(%arg0: i32, %arg1: i32) -> (i32, i32) {
    %c0_i32 = arith.constant 0 : i32
    %c0_i32_0 = arith.constant 0 : i32
    %c0_i32_1 = arith.constant 0 : i32
    return %c0_i32, %c0_i32_0 : i32, i32
  }
  func.func @transform_3(%arg0: i32, %arg1: i32) -> (i32, i32) {
    %c0_i32 = arith.constant 0 : i32
    %c0_i32_0 = arith.constant 0 : i32
    %c0_i32_1 = arith.constant 0 : i32
    return %c0_i32, %c0_i32_0 : i32, i32
  }
  func.func @transform_4(%arg0: i32, %arg1: i32) -> (i32, i32) {
    %c0_i32 = arith.constant 0 : i32
    %c0_i32_0 = arith.constant 0 : i32
    %c0_i32_1 = arith.constant 0 : i32
    return %c0_i32, %c0_i32_0 : i32, i32
  }
  func.func @transform_5(%arg0: i32, %arg1: i32) -> (i32, i32) {
    %c0_i32 = arith.constant 0 : i32
    %c0_i32_0 = arith.constant 0 : i32
    %c0_i32_1 = arith.constant 0 : i32
    return %c0_i32, %c0_i32_0 : i32, i32
  }
  func.func @transform_6(%arg0: i32, %arg1: i32) -> (i32, i32) {
    %c0_i32 = arith.constant 0 : i32
    %c0_i32_0 = arith.constant 0 : i32
    %c0_i32_1 = arith.constant 0 : i32
    return %c0_i32, %c0_i32_0 : i32, i32
  }
  func.func @transform_7(%arg0: i32, %arg1: i32) -> (i32, i32) {
    %c0_i32 = arith.constant 0 : i32
    %c0_i32_0 = arith.constant 0 : i32
    %c0_i32_1 = arith.constant 0 : i32
    return %c0_i32, %c0_i32_0 : i32, i32
  }
  func.func @transform_8(%arg0: i32, %arg1: i32) -> (i32, i32) {
    %c0_i32 = arith.constant 0 : i32
    %c0_i32_0 = arith.constant 0 : i32
    %c0_i32_1 = arith.constant 0 : i32
    return %c0_i32, %c0_i32_0 : i32, i32
  }
  func.func @transform_9(%arg0: i32, %arg1: i32) -> (i32, i32) {
    %c0_i32 = arith.constant 0 : i32
    %c0_i32_0 = arith.constant 0 : i32
    %c0_i32_1 = arith.constant 0 : i32
    return %c0_i32, %c0_i32_0 : i32, i32
  }
  func.func @transform_10(%arg0: i32, %arg1: i32) -> (i32, i32) {
    %c0_i32 = arith.constant 0 : i32
    %c0_i32_0 = arith.constant 0 : i32
    %c0_i32_1 = arith.constant 0 : i32
    return %c0_i32, %c0_i32_0 : i32, i32
  }
  func.func @transform_11(%arg0: i32, %arg1: i32) -> (i32, i32) {
    %c0_i32 = arith.constant 0 : i32
    %c0_i32_0 = arith.constant 0 : i32
    %c0_i32_1 = arith.constant 0 : i32
    return %c0_i32, %c0_i32_0 : i32, i32
  }
  func.func @transform_12(%arg0: i32, %arg1: i32) -> (i32, i32) {
    %c0_i32 = arith.constant 0 : i32
    %c0_i32_0 = arith.constant 0 : i32
    %c0_i32_1 = arith.constant 0 : i32
    return %c0_i32, %c0_i32_0 : i32, i32
  }
  func.func @transform_13(%arg0: i32, %arg1: i32) -> (i32, i32) {
    %c0_i32 = arith.constant 0 : i32
    %c0_i32_0 = arith.constant 0 : i32
    %c0_i32_1 = arith.constant 0 : i32
    return %c0_i32, %c0_i32_0 : i32, i32
  }
  func.func @transform_14(%arg0: i32, %arg1: i32) -> (i32, i32) {
    %c0_i32 = arith.constant 0 : i32
    %c0_i32_0 = arith.constant 0 : i32
    %c0_i32_1 = arith.constant 0 : i32
    return %c0_i32, %c0_i32_0 : i32, i32
  }
  func.func @transform_15(%arg0: i32, %arg1: i32) -> (i32, i32) {
    %c0_i32 = arith.constant 0 : i32
    %c0_i32_0 = arith.constant 0 : i32
    %c0_i32_1 = arith.constant 0 : i32
    return %c0_i32, %c0_i32_0 : i32, i32
  }
  func.func @transform_16(%arg0: i32, %arg1: i32) -> (i32, i32) {
    %c0_i32 = arith.constant 0 : i32
    %c0_i32_0 = arith.constant 0 : i32
    %c0_i32_1 = arith.constant 0 : i32
    return %c0_i32, %c0_i32_0 : i32, i32
  }
  func.func @transform_17(%arg0: i32, %arg1: i32) -> (i32, i32) {
    %c0_i32 = arith.constant 0 : i32
    %c0_i32_0 = arith.constant 0 : i32
    %c0_i32_1 = arith.constant 0 : i32
    return %c0_i32, %c0_i32_0 : i32, i32
  }
  func.func @transform_18(%arg0: i32, %arg1: i32) -> (i32, i32, i32) {
    %c0_i32 = arith.constant 0 : i32
    %c0_i32_0 = arith.constant 0 : i32
    return %arg0, %arg1, %c0_i32 : i32, i32, i32
  }
}

</mosaic_0001>

<llo_original>
// kernel: tpu_custom_call.1
$region0: #{tpu_custom_call.1}
  #allocation0 [shape = 'u32[]', space=smem, size = 0x4, offset = 0x4, fixed_abs, tag = 'smem constant byte address 0x4 - core index']
  #allocation1 [shape = 'u32[72,128]{1,0:T(1,128)}', space=vmem, size = 0x9000, scoped, tag = 'internal scratch']
  #allocation2 [shape = 'bf16[4,8,8]{2,1,0:T(8,128)(2,1)}', space=vmem, size = 0x2000, scoped, tag = 'scratch operand']
  #allocation3 [shape = 'bf16[4,8,8]{2,1,0:T(8,128)(2,1)}', space=vmem, size = 0x2000, scoped, tag = 'scratch operand']
  #allocation4 [shape = 'bf16[4,8,8]{2,1,0:T(8,128)(2,1)}', space=vmem, size = 0x2000, scoped, tag = 'scratch operand']
  %s0 = inlined_call_operand.hbm [shape: f32[2,8,32], index: 0, kind: input, shape index: {}]
  %s1 = inlined_call_operand.hbm [shape: f32[2,1,8], index: 1, kind: input, shape index: {}]
  %s2 = inlined_call_operand.vmem [shape: f32[1,32], index: 2, kind: input, shape index: {}]
  %s3 = inlined_call_operand.vmem [shape: f32[1,32], index: 3, kind: input, shape index: {}]
  %s4 = inlined_call_operand.hbm [shape: bf16[32,32], index: 4, kind: input, shape index: {}]
  %s5 = inlined_call_operand.hbm [shape: bf16[32,32], index: 5, kind: input, shape index: {}]
  %s6 = inlined_call_operand.hbm [shape: bf16[32,32], index: 6, kind: input, shape index: {}]
  %s7 = inlined_call_operand.vmem [shape: f32[1,32], index: 7, kind: input, shape index: {}]
  %s8 = inlined_call_operand.vmem [shape: f32[1,32], index: 8, kind: input, shape index: {}]
  %s9 = inlined_call_operand.vmem [shape: f32[1,32], index: 9, kind: input, shape index: {}]
  %s10 = inlined_call_operand.hbm [shape: bf16[32,32], index: 10, kind: input, shape index: {}]
  %s11 = inlined_call_operand.vmem [shape: f32[1,32], index: 11, kind: input, shape index: {}]
  %s12 = inlined_call_operand.vmem [shape: f32[1,32], index: 12, kind: input, shape index: {}]
  %s13 = inlined_call_operand.vmem [shape: f32[1,32], index: 13, kind: input, shape index: {}]
  %s14 = inlined_call_operand.hbm [shape: bf16[32,32], index: 14, kind: input, shape index: {}]
  %s15 = inlined_call_operand.vmem [shape: f32[1,32], index: 15, kind: input, shape index: {}]
  %s16 = inlined_call_operand.hbm [shape: bf16[32,32], index: 16, kind: input, shape index: {}]
  %s17 = inlined_call_operand.vmem [shape: f32[1,32], index: 17, kind: input, shape index: {}]
  %s18 = inlined_call_operand.hbm [shape: f32[2,8,32], index: 18, kind: output, shape index: {}]
  %s19 = sld [smem:[#allocation0]]
  $region137: #{tpu_custom_call.1} parent=0
    _
  %s21 = ssub.s32 1, %s19
  %s22 = scalar_select 0, %s21, %s19
  $region1: #{tpu_custom_call.1} parent=0
    #allocation5 [shape = 'u8[8192]{0}', space=vmem, size = 0x2000, scoped, tag = 'input window, operand 0']
    #allocation6 [shape = 's32[2]{0}', space=sflag, size = 0x8, scoped, tag = 'scoped memory for tpu_custom_call.1']
    #allocation7 [shape = 's32[2]{0}', space=sflag, size = 0x8, scoped, tag = 'scoped memory for tpu_custom_call.1']
    #allocation8 [shape = 'u8[1024]{0}', space=vmem, size = 0x400, scoped, tag = 'input window, operand 1']
    #allocation9 [shape = 's32[2]{0}', space=sflag, size = 0x8, scoped, tag = 'scoped memory for tpu_custom_call.1']
    #allocation10 [shape = 'u8[8192]{0}', space=vmem, size = 0x2000, scoped, tag = 'input window, operand 4, single buffered']
    #allocation11 [shape = 'u8[8192]{0}', space=vmem, size = 0x2000, scoped, tag = 'input window, operand 5, single buffered']
    #allocation12 [shape = 's32[1]{0}', space=sflag, size = 0x4, scoped, tag = 'scoped memory for tpu_custom_call.1']
    #allocation13 [shape = 'u8[8192]{0}', space=vmem, size = 0x2000, scoped, tag = 'input window, operand 6, single buffered']
    #allocation14 [shape = 'u8[8192]{0}', space=vmem, size = 0x2000, scoped, tag = 'input window, operand 10, single buffered']
    #allocation15 [shape = 's32[1]{0}', space=sflag, size = 0x4, scoped, tag = 'scoped memory for tpu_custom_call.1']
    #allocation16 [shape = 'u8[8192]{0}', space=vmem, size = 0x2000, scoped, tag = 'input window, operand 14, single buffered']
    #allocation17 [shape = 'u8[8192]{0}', space=vmem, size = 0x2000, scoped, tag = 'input window, operand 16, single buffered']
    #allocation18 [shape = 's32[1]{0}', space=sflag, size = 0x4, scoped, tag = 'scoped memory for tpu_custom_call.1']
    #allocation19 [shape = 'u8[8192]{0}', space=vmem, size = 0x2000, scoped, tag = 'output window, operand 0']
    %23 = vsyncpa [#allocation6], 0
    %s24 = scalar_lea.sflag [#allocation6], 1
    %25 = vsyncpa %s24, 0
    %26 = vsyncpa [#allocation9], 0
    %s27 = scalar_lea.sflag [#allocation9], 1
    %28 = vsyncpa %s27, 0
    %29 = vsyncpa [#allocation12], 0
    %30 = vsyncpa [#allocation15], 0
    %31 = vsyncpa [#allocation18], 0
    %32 = vsyncpa [#allocation7], 0
    %s33 = scalar_lea.sflag [#allocation7], 1
    %34 = vsyncpa %s33, 0
    loop: start=0, step=1, limit=4
    $region2: #{tpu_custom_call.1} parent=1 // loop_pre_header
      _
    $region3: #{tpu_custom_call.1} parent=1 // loop_header
      %s36 = sphi 0, %s40
      %p37 = scmp.ge.s32.totalorder %s36, 4
      %s43 = sphi 0, %s55
      %s44 = sphi 0, %s51
      %s45 = sphi 0, %s43
      %s46 = sphi 0, %s44
      %s47 = sphi 0, %s45
      %s48 = sphi 0, %s46
      %s58 = sphi 0, %s60
      %s61 = sphi 0, %s58
      %s62 = sphi 0, %s61
      %s78 = sphi 0, %s62
      %s84 = sphi 0, %s86
      %s87 = sphi 0, %s84
      %s88 = sphi 0, %s87
      %s104 = sphi 0, %s88
      %s108 = sphi 0, %s108
      %s110 = sphi 0, %s108
      %s111 = sphi 0, %s110
      %s125 = sphi 0, %s111
      %s129 = sphi 0, %s129
      %s131 = sphi 0, %s129
      %s132 = sphi 0, %s131
      %s146 = sphi 0, %s132
      %s150 = sphi 0, %s150
      %s152 = sphi 0, %s150
      %s153 = sphi 0, %s152
      %s167 = sphi 0, %s153
      %s171 = sphi 0, %s171
      %s173 = sphi 0, %s171
      %s174 = sphi 0, %s173
      %s188 = sphi 0, %s174
      %s192 = sphi 0, %s192
      %s194 = sphi 0, %s192
      %s195 = sphi 0, %s194
      %s209 = sphi 0, %s195
      %s213 = sphi 0, %s213
      %s215 = sphi 0, %s213
      %s216 = sphi 0, %s215
      %s230 = sphi 0, %s216
      %s234 = sphi 0, %s234
      %s236 = sphi 0, %s234
      %s237 = sphi 0, %s236
      %s251 = sphi 0, %s237
      %s255 = sphi 0, %s255
      %s257 = sphi 0, %s255
      %s258 = sphi 0, %s257
      %s272 = sphi 0, %s258
      %s276 = sphi 0, %s276
      %s278 = sphi 0, %s276
      %s279 = sphi 0, %s278
      %s293 = sphi 0, %s279
      %s297 = sphi 0, %s297
      %s299 = sphi 0, %s297
      %s300 = sphi 0, %s299
      %s314 = sphi 0, %s300
      %s318 = sphi 0, %s318
      %s320 = sphi 0, %s318
      %s321 = sphi 0, %s320
      %s335 = sphi 0, %s321
      %s339 = sphi 0, %s339
      %s341 = sphi 0, %s339
      %s342 = sphi 0, %s341
      %s356 = sphi 0, %s342
      %s360 = sphi 0, %s360
      %s362 = sphi 0, %s360
      %s363 = sphi 0, %s362
      %s377 = sphi 0, %s363
      %s381 = sphi 0, %s381
      %s383 = sphi 0, %s381
      %s384 = sphi 0, %s383
      %s398 = sphi 0, %s384
      %s402 = sphi 0, %s402
      %s404 = sphi 0, %s402
      %s405 = sphi 0, %s404
      %s419 = sphi 0, %s405
      %s423 = sphi 0, %s423
      %s425 = sphi 0, %s423
      %s426 = sphi 0, %s425
      %s440 = sphi 0, %s426
      %s448 = sphi 0, %s450
      %s451 = sphi 0, %s448
      %s452 = sphi 0, %s451
      %s468 = sphi 0, %s452
    $region4: #{tpu_custom_call.1} parent=1 // loop_header_branch
      %39 = sbr.rel (%p37) target = $region8
    $region5: #{tpu_custom_call.1} parent=1 // loop_body
      %s41 = ssub.s32 %s36, 1
      %s42 = ssub.s32 %s36, 2
      %s49 = sadd.s32 1, %s44
      %p50 = scmp.ge.s32.totalorder %s49, 1
      %s51 = scalar_select %p50, 0, %s49
      %s52 = sadd.s32 1, %s43
      %s53 = scalar_select %p50, %s52, %s43
      %p54 = scmp.ge.s32.totalorder %s53, 2
      %s55 = scalar_select %p54, 0, %s53
      %s56 = ssub.s32 %s43, %s55
      %p57 = scmp.eq.s32.totalorder %s56, 0
      %s59 = sadd.s32 %s58, 1
      %s60 = scalar_select %p57, %s58, %s59
      %p63 = pneg %p57
      %p64 = scmp.eq.s32.totalorder %s36, 1
      %p65 = por %p63, %p64
      %p66 = scmp.ne.s32.totalorder %s58, %s61
      %p67 = scmp.eq.s32.totalorder %s36, 0
      %p68 = por %p66, %p67
      %p69 = scmp.ne.s32.totalorder %s58, %s61
      %p70 = scmp.eq.s32.totalorder %s41, 1
      %p71 = por %p69, %p70
      %p72 = scmp.ne.s32.totalorder %s61, %s62
      %p73 = scmp.eq.s32.totalorder %s41, 0
      %p74 = por %p72, %p73
      %p75 = scmp.ne.s32.totalorder %s61, %s62
      %p76 = scmp.eq.s32.totalorder %s42, 1
      %p77 = por %p75, %p76
      %p79 = scmp.ne.s32.totalorder %s62, %s78
      %p80 = scmp.eq.s32.totalorder %s42, 0
      %p81 = por %p79, %p80
      %s82 = ssub.s32 %s43, %s55
      %p83 = scmp.eq.s32.totalorder %s82, 0
      %s85 = sadd.s32 %s84, 1
      %s86 = scalar_select %p83, %s84, %s85
      %p89 = pneg %p83
      %p90 = scmp.eq.s32.totalorder %s36, 1
      %p91 = por %p89, %p90
      %p92 = scmp.ne.s32.totalorder %s84, %s87
      %p93 = scmp.eq.s32.totalorder %s36, 0
      %p94 = por %p92, %p93
      %p95 = scmp.ne.s32.totalorder %s84, %s87
      %p96 = scmp.eq.s32.totalorder %s41, 1
      %p97 = por %p95, %p96
      %p98 = scmp.ne.s32.totalorder %s87, %s88
      %p99 = scmp.eq.s32.totalorder %s41, 0
      %p100 = por %p98, %p99
      %p101 = scmp.ne.s32.totalorder %s87, %s88
      %p102 = scmp.eq.s32.totalorder %s42, 1
      %p103 = por %p101, %p102
      %p105 = scmp.ne.s32.totalorder %s88, %s104
      %p106 = scmp.eq.s32.totalorder %s42, 0
      %p107 = por %p105, %p106
      %s109 = sadd.s32 %s108, 1
      %p112 = scmp.eq.s32.totalorder %s36, 1
      %p113 = scmp.ne.s32.totalorder %s108, %s110
      %p114 = scmp.eq.s32.totalorder %s36, 0
      %p115 = por %p113, %p114
      %p116 = scmp.ne.s32.totalorder %s108, %s110
      %p117 = scmp.eq.s32.totalorder %s41, 1
      %p118 = por %p116, %p117
      %p119 = scmp.ne.s32.totalorder %s110, %s111
      %p120 = scmp.eq.s32.totalorder %s41, 0
      %p121 = por %p119, %p120
      %p122 = scmp.ne.s32.totalorder %s110, %s111
      %p123 = scmp.eq.s32.totalorder %s42, 1
      %p124 = por %p122, %p123
      %p126 = scmp.ne.s32.totalorder %s111, %s125
      %p127 = scmp.eq.s32.totalorder %s42, 0
      %p128 = por %p126, %p127
      %s130 = sadd.s32 %s129, 1
      %p133 = scmp.eq.s32.totalorder %s36, 1
      %p134 = scmp.ne.s32.totalorder %s129, %s131
      %p135 = scmp.eq.s32.totalorder %s36, 0
      %p136 = por %p134, %p135
      %p137 = scmp.ne.s32.totalorder %s129, %s131
      %p138 = scmp.eq.s32.totalorder %s41, 1
      %p139 = por %p137, %p138
      %p140 = scmp.ne.s32.totalorder %s131, %s132
      %p141 = scmp.eq.s32.totalorder %s41, 0
      %p142 = por %p140, %p141
      %p143 = scmp.ne.s32.totalorder %s131, %s132
      %p144 = scmp.eq.s32.totalorder %s42, 1
      %p145 = por %p143, %p144
      %p147 = scmp.ne.s32.totalorder %s132, %s146
      %p148 = scmp.eq.s32.totalorder %s42, 0
      %p149 = por %p147, %p148
      %s151 = sadd.s32 %s150, 1
      %p154 = scmp.eq.s32.totalorder %s36, 1
      %p155 = scmp.ne.s32.totalorder %s150, %s152
      %p156 = scmp.eq.s32.totalorder %s36, 0
      %p157 = por %p155, %p156
      %p158 = scmp.ne.s32.totalorder %s150, %s152
      %p159 = scmp.eq.s32.totalorder %s41, 1
      %p160 = por %p158, %p159
      %p161 = scmp.ne.s32.totalorder %s152, %s153
      %p162 = scmp.eq.s32.totalorder %s41, 0
      %p163 = por %p161, %p162
      %p164 = scmp.ne.s32.totalorder %s152, %s153
      %p165 = scmp.eq.s32.totalorder %s42, 1
      %p166 = por %p164, %p165
      %p168 = scmp.ne.s32.totalorder %s153, %s167
      %p169 = scmp.eq.s32.totalorder %s42, 0
      %p170 = por %p168, %p169
      %s172 = sadd.s32 %s171, 1
      %p175 = scmp.eq.s32.totalorder %s36, 1
      %p176 = scmp.ne.s32.totalorder %s171, %s173
      %p177 = scmp.eq.s32.totalorder %s36, 0
      %p178 = por %p176, %p177
      %p179 = scmp.ne.s32.totalorder %s171, %s173
      %p180 = scmp.eq.s32.totalorder %s41, 1
      %p181 = por %p179, %p180
      %p182 = scmp.ne.s32.totalorder %s173, %s174
      %p183 = scmp.eq.s32.totalorder %s41, 0
      %p184 = por %p182, %p183
      %p185 = scmp.ne.s32.totalorder %s173, %s174
      %p186 = scmp.eq.s32.totalorder %s42, 1
      %p187 = por %p185, %p186
      %p189 = scmp.ne.s32.totalorder %s174, %s188
      %p190 = scmp.eq.s32.totalorder %s42, 0
      %p191 = por %p189, %p190
      %s193 = sadd.s32 %s192, 1
      %p196 = scmp.eq.s32.totalorder %s36, 1
      %p197 = scmp.ne.s32.totalorder %s192, %s194
      %p198 = scmp.eq.s32.totalorder %s36, 0
      %p199 = por %p197, %p198
      %p200 = scmp.ne.s32.totalorder %s192, %s194
      %p201 = scmp.eq.s32.totalorder %s41, 1
      %p202 = por %p200, %p201
      %p203 = scmp.ne.s32.totalorder %s194, %s195
      %p204 = scmp.eq.s32.totalorder %s41, 0
      %p205 = por %p203, %p204
      %p206 = scmp.ne.s32.totalorder %s194, %s195
      %p207 = scmp.eq.s32.totalorder %s42, 1
      %p208 = por %p206, %p207
      %p210 = scmp.ne.s32.totalorder %s195, %s209
      %p211 = scmp.eq.s32.totalorder %s42, 0
      %p212 = por %p210, %p211
      %s214 = sadd.s32 %s213, 1
      %p217 = scmp.eq.s32.totalorder %s36, 1
      %p218 = scmp.ne.s32.totalorder %s213, %s215
      %p219 = scmp.eq.s32.totalorder %s36, 0
      %p220 = por %p218, %p219
      %p221 = scmp.ne.s32.totalorder %s213, %s215
      %p222 = scmp.eq.s32.totalorder %s41, 1
      %p223 = por %p221, %p222
      %p224 = scmp.ne.s32.totalorder %s215, %s216
      %p225 = scmp.eq.s32.totalorder %s41, 0
      %p226 = por %p224, %p225
      %p227 = scmp.ne.s32.totalorder %s215, %s216
      %p228 = scmp.eq.s32.totalorder %s42, 1
      %p229 = por %p227, %p228
      %p231 = scmp.ne.s32.totalorder %s216, %s230
      %p232 = scmp.eq.s32.totalorder %s42, 0
      %p233 = por %p231, %p232
      %s235 = sadd.s32 %s234, 1
      %p238 = scmp.eq.s32.totalorder %s36, 1
      %p239 = scmp.ne.s32.totalorder %s234, %s236
      %p240 = scmp.eq.s32.totalorder %s36, 0
      %p241 = por %p239, %p240
      %p242 = scmp.ne.s32.totalorder %s234, %s236
      %p243 = scmp.eq.s32.totalorder %s41, 1
      %p244 = por %p242, %p243
      %p245 = scmp.ne.s32.totalorder %s236, %s237
      %p246 = scmp.eq.s32.totalorder %s41, 0
      %p247 = por %p245, %p246
      %p248 = scmp.ne.s32.totalorder %s236, %s237
      %p249 = scmp.eq.s32.totalorder %s42, 1
      %p250 = por %p248, %p249
      %p252 = scmp.ne.s32.totalorder %s237, %s251
      %p253 = scmp.eq.s32.totalorder %s42, 0
      %p254 = por %p252, %p253
      %s256 = sadd.s32 %s255, 1
      %p259 = scmp.eq.s32.totalorder %s36, 1
      %p260 = scmp.ne.s32.totalorder %s255, %s257
      %p261 = scmp.eq.s32.totalorder %s36, 0
      %p262 = por %p260, %p261
      %p263 = scmp.ne.s32.totalorder %s255, %s257
      %p264 = scmp.eq.s32.totalorder %s41, 1
      %p265 = por %p263, %p264
      %p266 = scmp.ne.s32.totalorder %s257, %s258
      %p267 = scmp.eq.s32.totalorder %s41, 0
      %p268 = por %p266, %p267
      %p269 = scmp.ne.s32.totalorder %s257, %s258
      %p270 = scmp.eq.s32.totalorder %s42, 1
      %p271 = por %p269, %p270
      %p273 = scmp.ne.s32.totalorder %s258, %s272
      %p274 = scmp.eq.s32.totalorder %s42, 0
      %p275 = por %p273, %p274
      %s277 = sadd.s32 %s276, 1
      %p280 = scmp.eq.s32.totalorder %s36, 1
      %p281 = scmp.ne.s32.totalorder %s276, %s278
      %p282 = scmp.eq.s32.totalorder %s36, 0
      %p283 = por %p281, %p282
      %p284 = scmp.ne.s32.totalorder %s276, %s278
      %p285 = scmp.eq.s32.totalorder %s41, 1
      %p286 = por %p284, %p285
      %p287 = scmp.ne.s32.totalorder %s278, %s279
      %p288 = scmp.eq.s32.totalorder %s41, 0
      %p289 = por %p287, %p288
      %p290 = scmp.ne.s32.totalorder %s278, %s279
      %p291 = scmp.eq.s32.totalorder %s42, 1
      %p292 = por %p290, %p291
      %p294 = scmp.ne.s32.totalorder %s279, %s293
      %p295 = scmp.eq.s32.totalorder %s42, 0
      %p296 = por %p294, %p295
      %s298 = sadd.s32 %s297, 1
      %p301 = scmp.eq.s32.totalorder %s36, 1
      %p302 = scmp.ne.s32.totalorder %s297, %s299
      %p303 = scmp.eq.s32.totalorder %s36, 0
      %p304 = por %p302, %p303
      %p305 = scmp.ne.s32.totalorder %s297, %s299
      %p306 = scmp.eq.s32.totalorder %s41, 1
      %p307 = por %p305, %p306
      %p308 = scmp.ne.s32.totalorder %s299, %s300
      %p309 = scmp.eq.s32.totalorder %s41, 0
      %p310 = por %p308, %p309
      %p311 = scmp.ne.s32.totalorder %s299, %s300
      %p312 = scmp.eq.s32.totalorder %s42, 1
      %p313 = por %p311, %p312
      %p315 = scmp.ne.s32.totalorder %s300, %s314
      %p316 = scmp.eq.s32.totalorder %s42, 0
      %p317 = por %p315, %p316
      %s319 = sadd.s32 %s318, 1
      %p322 = scmp.eq.s32.totalorder %s36, 1
      %p323 = scmp.ne.s32.totalorder %s318, %s320
      %p324 = scmp.eq.s32.totalorder %s36, 0
      %p325 = por %p323, %p324
      %p326 = scmp.ne.s32.totalorder %s318, %s320
      %p327 = scmp.eq.s32.totalorder %s41, 1
      %p328 = por %p326, %p327
      %p329 = scmp.ne.s32.totalorder %s320, %s321
      %p330 = scmp.eq.s32.totalorder %s41, 0
      %p331 = por %p329, %p330
      %p332 = scmp.ne.s32.totalorder %s320, %s321
      %p333 = scmp.eq.s32.totalorder %s42, 1
      %p334 = por %p332, %p333
      %p336 = scmp.ne.s32.totalorder %s321, %s335
      %p337 = scmp.eq.s32.totalorder %s42, 0
      %p338 = por %p336, %p337
      %s340 = sadd.s32 %s339, 1
      %p343 = scmp.eq.s32.totalorder %s36, 1
      %p344 = scmp.ne.s32.totalorder %s339, %s341
      %p345 = scmp.eq.s32.totalorder %s36, 0
      %p346 = por %p344, %p345
      %p347 = scmp.ne.s32.totalorder %s339, %s341
      %p348 = scmp.eq.s32.totalorder %s41, 1
      %p349 = por %p347, %p348
      %p350 = scmp.ne.s32.totalorder %s341, %s342
      %p351 = scmp.eq.s32.totalorder %s41, 0
      %p352 = por %p350, %p351
      %p353 = scmp.ne.s32.totalorder %s341, %s342
      %p354 = scmp.eq.s32.totalorder %s42, 1
      %p355 = por %p353, %p354
      %p357 = scmp.ne.s32.totalorder %s342, %s356
      %p358 = scmp.eq.s32.totalorder %s42, 0
      %p359 = por %p357, %p358
      %s361 = sadd.s32 %s360, 1
      %p364 = scmp.eq.s32.totalorder %s36, 1
      %p365 = scmp.ne.s32.totalorder %s360, %s362
      %p366 = scmp.eq.s32.totalorder %s36, 0
      %p367 = por %p365, %p366
      %p368 = scmp.ne.s32.totalorder %s360, %s362
      %p369 = scmp.eq.s32.totalorder %s41, 1
      %p370 = por %p368, %p369
      %p371 = scmp.ne.s32.totalorder %s362, %s363
      %p372 = scmp.eq.s32.totalorder %s41, 0
      %p373 = por %p371, %p372
      %p374 = scmp.ne.s32.totalorder %s362, %s363
      %p375 = scmp.eq.s32.totalorder %s42, 1
      %p376 = por %p374, %p375
      %p378 = scmp.ne.s32.totalorder %s363, %s377
      %p379 = scmp.eq.s32.totalorder %s42, 0
      %p380 = por %p378, %p379
      %s382 = sadd.s32 %s381, 1
      %p385 = scmp.eq.s32.totalorder %s36, 1
      %p386 = scmp.ne.s32.totalorder %s381, %s383
      %p387 = scmp.eq.s32.totalorder %s36, 0
      %p388 = por %p386, %p387
      %p389 = scmp.ne.s32.totalorder %s381, %s383
      %p390 = scmp.eq.s32.totalorder %s41, 1
      %p391 = por %p389, %p390
      %p392 = scmp.ne.s32.totalorder %s383, %s384
      %p393 = scmp.eq.s32.totalorder %s41, 0
      %p394 = por %p392, %p393
      %p395 = scmp.ne.s32.totalorder %s383, %s384
      %p396 = scmp.eq.s32.totalorder %s42, 1
      %p397 = por %p395, %p396
      %p399 = scmp.ne.s32.totalorder %s384, %s398
      %p400 = scmp.eq.s32.totalorder %s42, 0
      %p401 = por %p399, %p400
      %s403 = sadd.s32 %s402, 1
      %p406 = scmp.eq.s32.totalorder %s36, 1
      %p407 = scmp.ne.s32.totalorder %s402, %s404
      %p408 = scmp.eq.s32.totalorder %s36, 0
      %p409 = por %p407, %p408
      %p410 = scmp.ne.s32.totalorder %s402, %s404
      %p411 = scmp.eq.s32.totalorder %s41, 1
      %p412 = por %p410, %p411
      %p413 = scmp.ne.s32.totalorder %s404, %s405
      %p414 = scmp.eq.s32.totalorder %s41, 0
      %p415 = por %p413, %p414
      %p416 = scmp.ne.s32.totalorder %s404, %s405
      %p417 = scmp.eq.s32.totalorder %s42, 1
      %p418 = por %p416, %p417
      %p420 = scmp.ne.s32.totalorder %s405, %s419
      %p421 = scmp.eq.s32.totalorder %s42, 0
      %p422 = por %p420, %p421
      %s424 = sadd.s32 %s423, 1
      %p427 = scmp.eq.s32.totalorder %s36, 1
      %p428 = scmp.ne.s32.totalorder %s423, %s425
      %p429 = scmp.eq.s32.totalorder %s36, 0
      %p430 = por %p428, %p429
      %p431 = scmp.ne.s32.totalorder %s423, %s425
      %p432 = scmp.eq.s32.totalorder %s41, 1
      %p433 = por %p431, %p432
      %p434 = scmp.ne.s32.totalorder %s425, %s426
      %p435 = scmp.eq.s32.totalorder %s41, 0
      %p436 = por %p434, %p435
      %p437 = scmp.ne.s32.totalorder %s425, %s426
      %p438 = scmp.eq.s32.totalorder %s42, 1
      %p439 = por %p437, %p438
      %p441 = scmp.ne.s32.totalorder %s426, %s440
      %p442 = scmp.eq.s32.totalorder %s42, 0
      %p443 = por %p441, %p442
      %s444 = ssub.s32 %s43, %s55
      %s445 = ssub.s32 %s44, %s51
      %s446 = sor.u32 %s444, %s445
      %p447 = scmp.eq.s32.totalorder %s446, 0
      %s449 = sadd.s32 %s448, 1
      %s450 = scalar_select %p447, %s448, %s449
      %p453 = pneg %p447
      %p454 = scmp.eq.s32.totalorder %s36, 1
      %p455 = por %p453, %p454
      %p456 = scmp.ne.s32.totalorder %s448, %s451
      %p457 = scmp.eq.s32.totalorder %s36, 0
      %p458 = por %p456, %p457
      %p459 = scmp.ne.s32.totalorder %s448, %s451
      %p460 = scmp.eq.s32.totalorder %s41, 1
      %p461 = por %p459, %p460
      %p462 = scmp.ne.s32.totalorder %s451, %s452
      %p463 = scmp.eq.s32.totalorder %s41, 0
      %p464 = por %p462, %p463
      %p465 = scmp.ne.s32.totalorder %s451, %s452
      %p466 = scmp.eq.s32.totalorder %s42, 1
      %p467 = por %p465, %p466
      %p469 = scmp.ne.s32.totalorder %s452, %s468
      %p470 = scmp.eq.s32.totalorder %s42, 0
      %p471 = por %p469, %p470
      %p472 = scmp.le.s32.totalorder 1, %s36
      %p473 = scmp.lt.s32.totalorder %s36, 3
      %p474 = pnand %p472, %p473
      %p475 = pneg %p474
      // Predicated region
      $region9: #{tpu_custom_call.1} parent=5 // pred_check
        _
      $region10: #{tpu_custom_call.1} parent=5 // pred_check_branch
        %477 = sbr.rel (%p474) target = $region12
      $region11: #{tpu_custom_call.1} parent=5 // pred_region
        %s478 = ssub.s32 %s36, 1
        // Predicated region
        $region13: #{tpu_custom_call.1} parent=11 // pred_check
          %p479 = pneg %p121
        $region14: #{tpu_custom_call.1} parent=11 // pred_check_branch
          %481 = sbr.rel (%p479) target = $region16
        $region15: #{tpu_custom_call.1} parent=11 // pred_region
          _
        $region16: #{tpu_custom_call.1} parent=11 // pred_fallthru
          _
        // Predicated region
        $region17: #{tpu_custom_call.1} parent=11 // pred_check
          %p482 = pneg %p142
        $region18: #{tpu_custom_call.1} parent=11 // pred_check_branch
          %484 = sbr.rel (%p482) target = $region20
        $region19: #{tpu_custom_call.1} parent=11 // pred_region
          _
        $region20: #{tpu_custom_call.1} parent=11 // pred_fallthru
          _
        // Predicated region
        $region21: #{tpu_custom_call.1} parent=11 // pred_check
          %p485 = pneg %p163
        $region22: #{tpu_custom_call.1} parent=11 // pred_check_branch
          %487 = sbr.rel (%p485) target = $region24
        $region23: #{tpu_custom_call.1} parent=11 // pred_region
          %489 = vsyncadd [#allocation9], 0
          %s490 = sshll.u32 %s4, 4
          %s491 = int_to_ptr.hbm [resolvable:$true] %s490
          %s492 = sshll.u32 [#allocation10], 4
          %s493 = int_to_ptr.vmem [resolvable:$true] %s492
          %498 = dma.hbm_to_vmem [thread:$0]  %s491, 256, %s493, [#allocation9], 64, 64, 4
        $region24: #{tpu_custom_call.1} parent=11 // pred_fallthru
          _
        // Predicated region
        $region25: #{tpu_custom_call.1} parent=11 // pred_check
          %p499 = pneg %p184
        $region26: #{tpu_custom_call.1} parent=11 // pred_check_branch
          %501 = sbr.rel (%p499) target = $region28
        $region27: #{tpu_custom_call.1} parent=11 // pred_region
          %503 = vsyncadd [#allocation12], 0
          %s504 = sshll.u32 %s5, 4
          %s505 = int_to_ptr.hbm [resolvable:$true] %s504
          %s506 = sshll.u32 [#allocation11], 4
          %s507 = int_to_ptr.vmem [resolvable:$true] %s506
          %512 = dma.hbm_to_vmem [thread:$0]  %s505, 256, %s507, [#allocation12], 64, 64, 4
        $region28: #{tpu_custom_call.1} parent=11 // pred_fallthru
          _
        // Predicated region
        $region29: #{tpu_custom_call.1} parent=11 // pred_check
          %p513 = pneg %p205
        $region30: #{tpu_custom_call.1} parent=11 // pred_check_branch
          %515 = sbr.rel (%p513) target = $region32
        $region31: #{tpu_custom_call.1} parent=11 // pred_region
          %517 = vsyncadd [#allocation12], 0
          %s518 = sshll.u32 %s6, 4
          %s519 = int_to_ptr.hbm [resolvable:$true] %s518
          %s520 = sshll.u32 [#allocation13], 4
          %s521 = int_to_ptr.vmem [resolvable:$true] %s520
          %526 = dma.hbm_to_vmem [thread:$0]  %s519, 256, %s521, [#allocation12], 64, 64, 4
        $region32: #{tpu_custom_call.1} parent=11 // pred_fallthru
          _
        // Predicated region
        $region33: #{tpu_custom_call.1} parent=11 // pred_check
          %p527 = pneg %p226
        $region34: #{tpu_custom_call.1} parent=11 // pred_check_branch
          %529 = sbr.rel (%p527) target = $region36
        $region35: #{tpu_custom_call.1} parent=11 // pred_region
          _
        $region36: #{tpu_custom_call.1} parent=11 // pred_fallthru
          _
        // Predicated region
        $region37: #{tpu_custom_call.1} parent=11 // pred_check
          %p530 = pneg %p247
        $region38: #{tpu_custom_call.1} parent=11 // pred_check_branch
          %532 = sbr.rel (%p530) target = $region40
        $region39: #{tpu_custom_call.1} parent=11 // pred_region
          _
        $region40: #{tpu_custom_call.1} parent=11 // pred_fallthru
          _
        // Predicated region
        $region41: #{tpu_custom_call.1} parent=11 // pred_check
          %p533 = pneg %p268
        $region42: #{tpu_custom_call.1} parent=11 // pred_check_branch
          %535 = sbr.rel (%p533) target = $region44
        $region43: #{tpu_custom_call.1} parent=11 // pred_region
          _
        $region44: #{tpu_custom_call.1} parent=11 // pred_fallthru
          _
        // Predicated region
        $region45: #{tpu_custom_call.1} parent=11 // pred_check
          %p536 = pneg %p289
        $region46: #{tpu_custom_call.1} parent=11 // pred_check_branch
          %538 = sbr.rel (%p536) target = $region48
        $region47: #{tpu_custom_call.1} parent=11 // pred_region
          %540 = vsyncadd [#allocation15], 0
          %s541 = sshll.u32 %s10, 4
          %s542 = int_to_ptr.hbm [resolvable:$true] %s541
          %s543 = sshll.u32 [#allocation14], 4
          %s544 = int_to_ptr.vmem [resolvable:$true] %s543
          %549 = dma.hbm_to_vmem [thread:$0]  %s542, 256, %s544, [#allocation15], 64, 64, 4
        $region48: #{tpu_custom_call.1} parent=11 // pred_fallthru
          _
        // Predicated region
        $region49: #{tpu_custom_call.1} parent=11 // pred_check
          %p550 = pneg %p310
        $region50: #{tpu_custom_call.1} parent=11 // pred_check_branch
          %552 = sbr.rel (%p550) target = $region52
        $region51: #{tpu_custom_call.1} parent=11 // pred_region
          _
        $region52: #{tpu_custom_call.1} parent=11 // pred_fallthru
          _
        // Predicated region
        $region53: #{tpu_custom_call.1} parent=11 // pred_check
          %p553 = pneg %p331
        $region54: #{tpu_custom_call.1} parent=11 // pred_check_branch
          %555 = sbr.rel (%p553) target = $region56
        $region55: #{tpu_custom_call.1} parent=11 // pred_region
          _
        $region56: #{tpu_custom_call.1} parent=11 // pred_fallthru
          _
        // Predicated region
        $region57: #{tpu_custom_call.1} parent=11 // pred_check
          %p556 = pneg %p352
        $region58: #{tpu_custom_call.1} parent=11 // pred_check_branch
          %558 = sbr.rel (%p556) target = $region60
        $region59: #{tpu_custom_call.1} parent=11 // pred_region
          _
        $region60: #{tpu_custom_call.1} parent=11 // pred_fallthru
          _
        // Predicated region
        $region61: #{tpu_custom_call.1} parent=11 // pred_check
          %p559 = pneg %p373
        $region62: #{tpu_custom_call.1} parent=11 // pred_check_branch
          %561 = sbr.rel (%p559) target = $region64
        $region63: #{tpu_custom_call.1} parent=11 // pred_region
          %563 = vsyncadd [#allocation15], 0
          %s564 = sshll.u32 %s14, 4
          %s565 = int_to_ptr.hbm [resolvable:$true] %s564
          %s566 = sshll.u32 [#allocation16], 4
          %s567 = int_to_ptr.vmem [resolvable:$true] %s566
          %572 = dma.hbm_to_vmem [thread:$0]  %s565, 256, %s567, [#allocation15], 64, 64, 4
        $region64: #{tpu_custom_call.1} parent=11 // pred_fallthru
          _
        // Predicated region
        $region65: #{tpu_custom_call.1} parent=11 // pred_check
          %p573 = pneg %p394
        $region66: #{tpu_custom_call.1} parent=11 // pred_check_branch
          %575 = sbr.rel (%p573) target = $region68
        $region67: #{tpu_custom_call.1} parent=11 // pred_region
          _
        $region68: #{tpu_custom_call.1} parent=11 // pred_fallthru
          _
        // Predicated region
        $region69: #{tpu_custom_call.1} parent=11 // pred_check
          %p576 = pneg %p415
        $region70: #{tpu_custom_call.1} parent=11 // pred_check_branch
          %578 = sbr.rel (%p576) target = $region72
        $region71: #{tpu_custom_call.1} parent=11 // pred_region
          %580 = vsyncadd [#allocation18], 0
          %s581 = sshll.u32 %s16, 4
          %s582 = int_to_ptr.hbm [resolvable:$true] %s581
          %s583 = sshll.u32 [#allocation17], 4
          %s584 = int_to_ptr.vmem [resolvable:$true] %s583
          %589 = dma.hbm_to_vmem [thread:$0]  %s582, 256, %s584, [#allocation18], 64, 64, 4
        $region72: #{tpu_custom_call.1} parent=11 // pred_fallthru
          _
        // Predicated region
        $region73: #{tpu_custom_call.1} parent=11 // pred_check
          %p590 = pneg %p436
        $region74: #{tpu_custom_call.1} parent=11 // pred_check_branch
          %592 = sbr.rel (%p590) target = $region76
        $region75: #{tpu_custom_call.1} parent=11 // pred_region
          _
        $region76: #{tpu_custom_call.1} parent=11 // pred_fallthru
          _
      $region12: #{tpu_custom_call.1} parent=5 // pred_fallthru
        _
      %p593 = scmp.lt.s32.totalorder %s36, 2
      // Predicated region
      $region77: #{tpu_custom_call.1} parent=5 // pred_check
        %p594 = pneg %p593
      $region78: #{tpu_custom_call.1} parent=5 // pred_check_branch
        %596 = sbr.rel (%p594) target = $region80
      $region79: #{tpu_custom_call.1} parent=5 // pred_region
        // Predicated region
        $region81: #{tpu_custom_call.1} parent=79 // pred_check
          %p597 = pneg %p68
        $region82: #{tpu_custom_call.1} parent=79 // pred_check_branch
          %599 = sbr.rel (%p597) target = $region84
        $region83: #{tpu_custom_call.1} parent=79 // pred_region
          %s600 = sand.u32 %s58, 1
          %s601 = scalar_lea.sflag [#allocation6], %s600
          %s602 = sand.u32 %s58, 1
          %s603 = smul.addr %s602, 8
          %s604 = scalar_lea.vmem [#allocation5], %s603
          %606 = vsyncadd %s601, 0
          %s607 = smul.addr %s43, 8
          %s608 = scalar_lea.hbm %s0, %s607
          %s610 = sshll.u32 %s608, 4
          %s611 = int_to_ptr.hbm [resolvable:$true] %s610
          %s612 = sshll.u32 %s604, 4
          %s613 = int_to_ptr.vmem [resolvable:$true] %s612
          %615 = dma.hbm_to_vmem [thread:$0]  %s611, 128, %s613, %s601
        $region84: #{tpu_custom_call.1} parent=79 // pred_fallthru
          _
        // Predicated region
        $region85: #{tpu_custom_call.1} parent=79 // pred_check
          %p616 = pneg %p94
        $region86: #{tpu_custom_call.1} parent=79 // pred_check_branch
          %618 = sbr.rel (%p616) target = $region88
        $region87: #{tpu_custom_call.1} parent=79 // pred_region
          %s619 = sand.u32 %s36, 1
          %s620 = scalar_lea.sflag [#allocation9], %s619
          %s621 = sand.u32 %s84, 1
          %s622 = scalar_lea.vmem [#allocation8], %s621
          %624 = vsyncadd %s620, 0
          %s625 = scalar_lea.hbm %s1, %s43
          %s627 = sshll.u32 %s625, 4
          %s628 = int_to_ptr.hbm [resolvable:$true] %s627
          %s629 = sshll.u32 %s622, 4
          %s630 = int_to_ptr.vmem [resolvable:$true] %s629
          %632 = dma.hbm_to_vmem [thread:$0]  %s628, 16, %s630, %s620
        $region88: #{tpu_custom_call.1} parent=79 // pred_fallthru
          _
      $region80: #{tpu_custom_call.1} parent=5 // pred_fallthru
        _
      %p633 = scmp.le.s32.totalorder 1, %s36
      %p634 = scmp.lt.s32.totalorder %s36, 3
      %p635 = pnand %p633, %p634
      %p636 = pneg %p635
      // Predicated region
      $region89: #{tpu_custom_call.1} parent=5 // pred_check
        _
      $region90: #{tpu_custom_call.1} parent=5 // pred_check_branch
        %638 = sbr.rel (%p635) target = $region92
      $region91: #{tpu_custom_call.1} parent=5 // pred_region
        %s639 = ssub.s32 %s36, 1
        %s640 = sand.u32 %s61, 1
        %s641 = scalar_lea.sflag [#allocation6], %s640
        %s642 = sand.u32 %s61, 1
        %s643 = smul.addr %s642, 8
        %s644 = scalar_lea.vmem [#allocation5], %s643
        // Predicated region
        $region93: #{tpu_custom_call.1} parent=91 // pred_check
          %p645 = pneg %p74
        $region94: #{tpu_custom_call.1} parent=91 // pred_check_branch
          %647 = sbr.rel (%p645) target = $region96
        $region95: #{tpu_custom_call.1} parent=91 // pred_region
          %649 = dma.done %s641, 128
        $region96: #{tpu_custom_call.1} parent=91 // pred_fallthru
          _
        %s650 = sand.u32 %s41, 1
        %s651 = scalar_lea.sflag [#allocation9], %s650
        %s652 = sand.u32 %s87, 1
        %s653 = scalar_lea.vmem [#allocation8], %s652
        // Predicated region
        $region97: #{tpu_custom_call.1} parent=91 // pred_check
          %p654 = pneg %p100
        $region98: #{tpu_custom_call.1} parent=91 // pred_check_branch
          %656 = sbr.rel (%p654) target = $region100
        $region99: #{tpu_custom_call.1} parent=91 // pred_region
          %658 = dma.done %s651, 16
        $region100: #{tpu_custom_call.1} parent=91 // pred_fallthru
          _
        // Predicated region
        $region101: #{tpu_custom_call.1} parent=91 // pred_check
          %p659 = pneg %p163
        $region102: #{tpu_custom_call.1} parent=91 // pred_check_branch
          %661 = sbr.rel (%p659) target = $region104
        $region103: #{tpu_custom_call.1} parent=91 // pred_region
          %663 = dma.done [#allocation9], 256
        $region104: #{tpu_custom_call.1} parent=91 // pred_fallthru
          _
        // Predicated region
        $region105: #{tpu_custom_call.1} parent=91 // pred_check
          %p664 = pneg %p184
        $region106: #{tpu_custom_call.1} parent=91 // pred_check_branch
          %666 = sbr.rel (%p664) target = $region108
        $region107: #{tpu_custom_call.1} parent=91 // pred_region
          %668 = dma.done [#allocation12], 256
        $region108: #{tpu_custom_call.1} parent=91 // pred_fallthru
          _
        // Predicated region
        $region109: #{tpu_custom_call.1} parent=91 // pred_check
          %p669 = pneg %p205
        $region110: #{tpu_custom_call.1} parent=91 // pred_check_branch
          %671 = sbr.rel (%p669) target = $region112
        $region111: #{tpu_custom_call.1} parent=91 // pred_region
          %673 = dma.done [#allocation12], 256
        $region112: #{tpu_custom_call.1} parent=91 // pred_fallthru
          _
        // Predicated region
        $region113: #{tpu_custom_call.1} parent=91 // pred_check
          %p674 = pneg %p289
        $region114: #{tpu_custom_call.1} parent=91 // pred_check_branch
          %676 = sbr.rel (%p674) target = $region116
        $region115: #{tpu_custom_call.1} parent=91 // pred_region
          %678 = dma.done [#allocation15], 256
        $region116: #{tpu_custom_call.1} parent=91 // pred_fallthru
          _
        // Predicated region
        $region117: #{tpu_custom_call.1} parent=91 // pred_check
          %p679 = pneg %p373
        $region118: #{tpu_custom_call.1} parent=91 // pred_check_branch
          %681 = sbr.rel (%p679) target = $region120
        $region119: #{tpu_custom_call.1} parent=91 // pred_region
          %683 = dma.done [#allocation15], 256
        $region120: #{tpu_custom_call.1} parent=91 // pred_fallthru
          _
        // Predicated region
        $region121: #{tpu_custom_call.1} parent=91 // pred_check
          %p684 = pneg %p415
        $region122: #{tpu_custom_call.1} parent=91 // pred_check_branch
          %686 = sbr.rel (%p684) target = $region124
        $region123: #{tpu_custom_call.1} parent=91 // pred_region
          %688 = dma.done [#allocation18], 256
        $region124: #{tpu_custom_call.1} parent=91 // pred_fallthru
          _
        %s689 = sand.u32 %s61, 1
        %s690 = scalar_lea.sflag [#allocation6], %s689
        %s691 = sand.u32 %s61, 1
        %s692 = smul.addr %s691, 8
        %s693 = scalar_lea.vmem [#allocation5], %s692
        %p694 = pneg %p74
        %p695 = pneg %p71
        %s696 = sand.u32 %s41, 1
        %s697 = scalar_lea.sflag [#allocation9], %s696
        %s698 = sand.u32 %s87, 1
        %s699 = scalar_lea.vmem [#allocation8], %s698
        %p700 = pneg %p100
        %p701 = pneg %p97
        %p702 = pneg %p121
        %p703 = pneg %p118
        %p704 = pneg %p142
        %p705 = pneg %p139
        %p706 = pneg %p163
        %p707 = pneg %p160
        %p708 = pneg %p184
        %p709 = pneg %p181
        %p710 = pneg %p205
        %p711 = pneg %p202
        %p712 = pneg %p226
        %p713 = pneg %p223
        %p714 = pneg %p247
        %p715 = pneg %p244
        %p716 = pneg %p268
        %p717 = pneg %p265
        %p718 = pneg %p289
        %p719 = pneg %p286
        %p720 = pneg %p310
        %p721 = pneg %p307
        %p722 = pneg %p331
        %p723 = pneg %p328
        %p724 = pneg %p352
        %p725 = pneg %p349
        %p726 = pneg %p373
        %p727 = pneg %p370
        %p728 = pneg %p394
        %p729 = pneg %p391
        %p730 = pneg %p415
        %p731 = pneg %p412
        %p732 = pneg %p436
        %p733 = pneg %p433
        %p734 = pneg %p464
        %p735 = pneg %p461
        %s736 = sand.u32 %s451, 1
        %s737 = scalar_lea.sflag [#allocation7], %s736
        %s738 = sand.u32 %s451, 1
        %s739 = smul.addr %s738, 8
        %s740 = scalar_lea.vmem [#allocation19], %s739
        %v742 = vld [vmem:[%s644] sm:$0xff]
        %v743 = vld [vmem:[%s2] sm:$0x1]
        %v744 = vld [vmem:[%s3] sm:$0x1]
        %vm745 = vcmask 261120
        %v746 = vsel %vm745, %v742, 0.0
        %747 = vadd.xlane.f32.xlu0 %v746
        %v748 = vpop.xlane.xlu0 %747
        %v749 = vrcp.pop 32.0
        %v750 = vmul.f32 32.0, %v749
        %v751 = vsub.f32 1.0, %v750
        %v752 = vmul.f32 %v749, %v751
        %v753 = vadd.f32 %v749, %v752
        %vm754 = vweird.f32 %v749
        %v755 = vsel %vm754, %v749, %v753
        %v756 = vmul.f32 %v748, %v755
        %v757 = vmul.f32 %v742, %v742
        %v758 = vsel %vm745, %v757, 0.0
        %759 = vadd.xlane.f32.xlu0 %v758
        %v760 = vpop.xlane.xlu0 %759
        %v761 = vmul.f32 %v760, %v755
        %v762 = vmul.f32 %v756, %v756
        %v763 = vsub.f32 %v761, %v762
        %v764 = vmax.f32 %v763, 0.0
        %v765 = vsub.f32 %v742, %v756
        %v766 = vadd.f32 %v764, 1e-05
        %v767 = vrsqrt.pop %v766
        %v768 = vmul.f32 %v767, %v766
        %v769 = vmul.f32 %v768, %v767
        %v770 = vmul.f32 0.5, %v769
        %v771 = vsub.f32 1.5, %v770
        %v772 = vmul.f32 %v767, %v771
        %vm773 = vweird.f32 %v766
        %vm774 = vweird.f32 %v767
        %vm775 = vmor %vm773, %vm774
        %v776 = vsel %vm775, %v767, %v772
        %v777 = vmul.f32 %v765, %v776
        %v779 = vperm.slane %v743, 0
        %v781 = vmul.f32 %v777, %v779
        %v783 = vperm.slane %v744, 0
        %v785 = vadd.f32 %v781, %v783
        %v786 = vpack.c.bf16 %v785, %v785
        %v787 = vld [vmem:[#allocation10] sm:$0xf]
        %v788 = vld [vmem:[#allocation10 + $0x4] sm:$0xf]
        %v789 = vld [vmem:[#allocation10 + $0x8] sm:$0xf]
        %v790 = vld [vmem:[#allocation10 + $0xc] sm:$0xf]
        %v791 = vld [vmem:[%s7] sm:$0x1]
        %v793 = vperm.slane %v791, 0
        %v799 = vunpack.c.l.b16 %v787
        %v800 = vunpack.c.l.b16 %v788
        %v801 = vunpack.c.l.b16 %v789
        %v802 = vunpack.c.l.b16 %v790
        %v803 = vpack.c.b16 %v800, %v799
        %v804 = vpack.c.b16 %v802, %v801
        %v808 = vsel %vm745, %v786, 0
        %810 = vmatpush.bf16.msra.mxu0 0
        %811 = vmatpush.bf16.msra.mxu0 0
        %812 = vmatpush.bf16.msra.mxu0 0
        %813 = vmatpush.bf16.msra.mxu0 0
        %814 = vmatpush.bf16.msra.mxu0 0
        %815 = vmatpush.bf16.msra.mxu0 0
        %816 = vmatpush.bf16.msra.mxu0 %v804
        %817 = vmatpush.bf16.msra.mxu0 %v803
        %818 = vmatmul.bf16.gmra.mxu0 %v808
        %v819 = vpop.f32.mrf.mxu0
        %v820 = vadd.f32 %v793, %v819
        %v821 = vpop.f32.mrf.mxu0
        %822 = vdwg.mxu0
        %v823 = vld [vmem:[#allocation11] sm:$0xf]
        %v824 = vld [vmem:[#allocation11 + $0x4] sm:$0xf]
        %v825 = vld [vmem:[#allocation11 + $0x8] sm:$0xf]
        %v826 = vld [vmem:[#allocation11 + $0xc] sm:$0xf]
        %v827 = vld [vmem:[%s8] sm:$0x1]
        %v829 = vperm.slane %v827, 0
        %v835 = vunpack.c.l.b16 %v823
        %v836 = vunpack.c.l.b16 %v824
        %v837 = vunpack.c.l.b16 %v825
        %v838 = vunpack.c.l.b16 %v826
        %v839 = vpack.c.b16 %v836, %v835
        %v840 = vpack.c.b16 %v838, %v837
        %843 = vmatpush.bf16.msra.mxu0 0
        %844 = vmatpush.bf16.msra.mxu0 0
        %845 = vmatpush.bf16.msra.mxu0 0
        %846 = vmatpush.bf16.msra.mxu0 0
        %847 = vmatpush.bf16.msra.mxu0 0
        %848 = vmatpush.bf16.msra.mxu0 0
        %849 = vmatpush.bf16.msra.mxu0 %v840
        %850 = vmatpush.bf16.msra.mxu0 %v839
        %851 = vmatmul.bf16.gmra.mxu0 %v808
        %v852 = vpop.f32.mrf.mxu0
        %v853 = vadd.f32 %v829, %v852
        %v854 = vpop.f32.mrf.mxu0
        %855 = vdwg.mxu0
        %v856 = vld [vmem:[#allocation13] sm:$0xf]
        %v857 = vld [vmem:[#allocation13 + $0x4] sm:$0xf]
        %v858 = vld [vmem:[#allocation13 + $0x8] sm:$0xf]
        %v859 = vld [vmem:[#allocation13 + $0xc] sm:$0xf]
        %v860 = vld [vmem:[%s9] sm:$0x1]
        %v862 = vperm.slane %v860, 0
        %v868 = vunpack.c.l.b16 %v856
        %v869 = vunpack.c.l.b16 %v857
        %v870 = vunpack.c.l.b16 %v858
        %v871 = vunpack.c.l.b16 %v859
        %v872 = vpack.c.b16 %v869, %v868
        %v873 = vpack.c.b16 %v871, %v870
        %876 = vmatpush.bf16.msra.mxu0 0
        %877 = vmatpush.bf16.msra.mxu0 0
        %878 = vmatpush.bf16.msra.mxu0 0
        %879 = vmatpush.bf16.msra.mxu0 0
        %880 = vmatpush.bf16.msra.mxu0 0
        %881 = vmatpush.bf16.msra.mxu0 0
        %882 = vmatpush.bf16.msra.mxu0 %v873
        %883 = vmatpush.bf16.msra.mxu0 %v872
        %884 = vmatmul.bf16.gmra.mxu0 %v808
        %v885 = vpop.f32.mrf.mxu0
        %v886 = vadd.f32 %v862, %v885
        %v887 = vpop.f32.mrf.mxu0
        %888 = vdwg.mxu0
        %v889 = vpack.c.bf16 %v820, %v820
        %vm890 = vcmask 60416
        %891 = vst.msk [vmem:[#allocation2] sm:$0xf] %vm890, %v889
        %v892 = vpack.c.bf16 %v853, %v853
        %893 = vst.msk [vmem:[#allocation3] sm:$0xf] %vm890, %v892
        %v894 = vpack.c.bf16 %v886, %v886
        %895 = vst.msk [vmem:[#allocation4] sm:$0xf] %vm890, %v894
        %897 = vrot.lane.b32.xlu0 %v889, 120
        %v898 = vpop.permute.xlu0 %897
        %s900 = scalar_lea.vmem [#allocation2], 4
        %901 = vst.msk [vmem:[%s900] sm:$0xf] %vm890, %v898
        %903 = vrot.lane.b32.xlu0 %v892, 120
        %v904 = vpop.permute.xlu0 %903
        %s906 = scalar_lea.vmem [#allocation3], 4
        %907 = vst.msk [vmem:[%s906] sm:$0xf] %vm890, %v904
        %909 = vrot.lane.b32.xlu0 %v894, 120
        %v910 = vpop.permute.xlu0 %909
        %s912 = scalar_lea.vmem [#allocation4], 4
        %913 = vst.msk [vmem:[%s912] sm:$0xf] %vm890, %v910
        %914 = vrot.lane.b32.xlu0 %v889, 112
        %v915 = vpop.permute.xlu0 %914
        %s917 = scalar_lea.vmem [#allocation2], 8
        %918 = vst.msk [vmem:[%s917] sm:$0xf] %vm890, %v915
        %919 = vrot.lane.b32.xlu0 %v892, 112
        %v920 = vpop.permute.xlu0 %919
        %s922 = scalar_lea.vmem [#allocation3], 8
        %923 = vst.msk [vmem:[%s922] sm:$0xf] %vm890, %v920
        %924 = vrot.lane.b32.xlu0 %v894, 112
        %v925 = vpop.permute.xlu0 %924
        %s927 = scalar_lea.vmem [#allocation4], 8
        %928 = vst.msk [vmem:[%s927] sm:$0xf] %vm890, %v925
        %929 = vrot.lane.b32.xlu0 %v889, 104
        %v930 = vpop.permute.xlu0 %929
        %s932 = scalar_lea.vmem [#allocation2], 12
        %933 = vst.msk [vmem:[%s932] sm:$0xf] %vm890, %v930
        %934 = vrot.lane.b32.xlu0 %v892, 104
        %v935 = vpop.permute.xlu0 %934
        %s937 = scalar_lea.vmem [#allocation3], 12
        %938 = vst.msk [vmem:[%s937] sm:$0xf] %vm890, %v935
        %939 = vrot.lane.b32.xlu0 %v894, 104
        %v940 = vpop.permute.xlu0 %939
        %s942 = scalar_lea.vmem [#allocation4], 12
        %943 = vst.msk [vmem:[%s942] sm:$0xf] %vm890, %v940
        %v944 = vld [vmem:[#allocation2] sm:$0xf]
        %v945 = vld [vmem:[#allocation2 + $0x4] sm:$0xf]
        %v946 = vld [vmem:[#allocation2 + $0x8] sm:$0xf]
        %v947 = vld [vmem:[#allocation2 + $0xc] sm:$0xf]
        %v948 = vld [vmem:[%s644] sm:$0xff]
        %v949 = vld [vmem:[#allocation3] sm:$0xf]
        %v950 = vld [vmem:[#allocation3 + $0x4] sm:$0xf]
        %v951 = vld [vmem:[#allocation3 + $0x8] sm:$0xf]
        %v952 = vld [vmem:[#allocation3 + $0xc] sm:$0xf]
        %v953 = vld [vmem:[#allocation4] sm:$0xf]
        %v954 = vld [vmem:[#allocation4 + $0x4] sm:$0xf]
        %v955 = vld [vmem:[#allocation4 + $0x8] sm:$0xf]
        %v956 = vld [vmem:[#allocation4 + $0xc] sm:$0xf]
        %v957 = vld [vmem:[%s653] sm:$0x1]
        %v959 = vperm.slane %v957, 0
        %vm961 = vcmask 64512
        %v963 = vsel %vm961, %v944, 0
        %v966 = vsel %vm961, %v949, 0
        %968 = vmatpush.bf16.xpose.msra.mxu0 0
        %969 = vmatpush.bf16.xpose.msra.mxu0 0
        %970 = vmatpush.bf16.xpose.msra.mxu0 0
        %971 = vmatpush.bf16.xpose.msra.mxu0 0
        %972 = vmatpush.bf16.xpose.msra.mxu0 0
        %973 = vmatpush.bf16.xpose.msra.mxu0 0
        %974 = vmatpush.bf16.xpose.msra.mxu0 0
        %975 = vmatpush.bf16.xpose.msra.mxu0 %v966
        %976 = vmatmul.bf16.gmra.mxu0 %v963
        %v977 = vpop.f32.mrf.mxu0
        %v978 = vadd.f32 %v959, %v977
        %v979 = vpop.f32.mrf.mxu0
        %980 = vdwg.mxu0
        %v982 = vsel %vm961, %v945, 0
        %v985 = vsel %vm961, %v950, 0
        %987 = vmatpush.bf16.xpose.msra.mxu0 0
        %988 = vmatpush.bf16.xpose.msra.mxu0 0
        %989 = vmatpush.bf16.xpose.msra.mxu0 0
        %990 = vmatpush.bf16.xpose.msra.mxu0 0
        %991 = vmatpush.bf16.xpose.msra.mxu0 0
        %992 = vmatpush.bf16.xpose.msra.mxu0 0
        %993 = vmatpush.bf16.xpose.msra.mxu0 0
        %994 = vmatpush.bf16.xpose.msra.mxu0 %v985
        %995 = vmatmul.bf16.gmra.mxu0 %v982
        %v996 = vpop.f32.mrf.mxu0
        %v997 = vadd.f32 %v959, %v996
        %v998 = vpop.f32.mrf.mxu0
        %999 = vdwg.mxu0
        %v1001 = vsel %vm961, %v946, 0
        %v1004 = vsel %vm961, %v951, 0
        %1006 = vmatpush.bf16.xpose.msra.mxu0 0
        %1007 = vmatpush.bf16.xpose.msra.mxu0 0
        %1008 = vmatpush.bf16.xpose.msra.mxu0 0
        %1009 = vmatpush.bf16.xpose.msra.mxu0 0
        %1010 = vmatpush.bf16.xpose.msra.mxu0 0
        %1011 = vmatpush.bf16.xpose.msra.mxu0 0
        %1012 = vmatpush.bf16.xpose.msra.mxu0 0
        %1013 = vmatpush.bf16.xpose.msra.mxu0 %v1004
        %1014 = vmatmul.bf16.gmra.mxu0 %v1001
        %v1015 = vpop.f32.mrf.mxu0
        %v1016 = vadd.f32 %v959, %v1015
        %v1017 = vpop.f32.mrf.mxu0
        %1018 = vdwg.mxu0
        %v1020 = vsel %vm961, %v947, 0
        %v1023 = vsel %vm961, %v952, 0
        %1025 = vmatpush.bf16.xpose.msra.mxu0 0
        %1026 = vmatpush.bf16.xpose.msra.mxu0 0
        %1027 = vmatpush.bf16.xpose.msra.mxu0 0
        %1028 = vmatpush.bf16.xpose.msra.mxu0 0
        %1029 = vmatpush.bf16.xpose.msra.mxu0 0
        %1030 = vmatpush.bf16.xpose.msra.mxu0 0
        %1031 = vmatpush.bf16.xpose.msra.mxu0 0
        %1032 = vmatpush.bf16.xpose.msra.mxu0 %v1023
        %1033 = vmatmul.bf16.gmra.mxu0 %v1020
        %v1034 = vpop.f32.mrf.mxu0
        %v1035 = vadd.f32 %v959, %v1034
        %v1036 = vpop.f32.mrf.mxu0
        %1037 = vdwg.mxu0
        %v1038 = vsel %vm961, %v978, -inf
        %1039 = vmax.xlane.f32.xlu0 %v1038
        %v1040 = vpop.xlane.xlu0 %1039
        %v1041 = vsel %vm961, %v997, -inf
        %1042 = vmax.xlane.f32.xlu0 %v1041
        %v1043 = vpop.xlane.xlu0 %1042
        %v1044 = vsel %vm961, %v1016, -inf
        %1045 = vmax.xlane.f32.xlu0 %v1044
        %v1046 = vpop.xlane.xlu0 %1045
        %v1047 = vsel %vm961, %v1035, -inf
        %1048 = vmax.xlane.f32.xlu0 %v1047
        %v1049 = vpop.xlane.xlu0 %1048
        %v1050 = vmax.f32 %v1040, -1e+30
        %v1051 = vmax.f32 %v1043, -1e+30
        %v1052 = vmax.f32 %v1046, -1e+30
        %v1053 = vmax.f32 %v1049, -1e+30
        %v1054 = vsub.f32 -1e+30, %v1050
        %v1055 = vsub.f32 -1e+30, %v1051
        %v1056 = vsub.f32 -1e+30, %v1052
        %v1057 = vsub.f32 -1e+30, %v1053
        %v1058 = vmul.f32 %v1054, 1.442695
        %v1059 = vpow.pop %v1058
        %v1060 = vmul.f32 %v1055, 1.442695
        %v1061 = vpow.pop %v1060
        %v1062 = vmul.f32 %v1056, 1.442695
        %v1063 = vpow.pop %v1062
        %v1064 = vmul.f32 %v1057, 1.442695
        %v1065 = vpow.pop %v1064
        %v1066 = vsub.f32 %v978, %v1050
        %v1067 = vsub.f32 %v997, %v1051
        %v1068 = vsub.f32 %v1016, %v1052
        %v1069 = vsub.f32 %v1035, %v1053
        %v1070 = vmul.f32 %v1066, 1.442695
        %v1071 = vpow.pop %v1070
        %v1072 = vmul.f32 %v1067, 1.442695
        %v1073 = vpow.pop %v1072
        %v1074 = vmul.f32 %v1068, 1.442695
        %v1075 = vpow.pop %v1074
        %v1076 = vmul.f32 %v1069, 1.442695
        %v1077 = vpow.pop %v1076
        %v1078 = vmul.f32 %v1059, 0.0
        %v1079 = vmul.f32 %v1061, 0.0
        %v1080 = vmul.f32 %v1063, 0.0
        %v1081 = vmul.f32 %v1065, 0.0
        %v1082 = vsel %vm961, %v1071, 0.0
        %1083 = vadd.xlane.f32.xlu0 %v1082
        %v1084 = vpop.xlane.xlu0 %1083
        %v1085 = vsel %vm961, %v1073, 0.0
        %1086 = vadd.xlane.f32.xlu0 %v1085
        %v1087 = vpop.xlane.xlu0 %1086
        %v1088 = vsel %vm961, %v1075, 0.0
        %1089 = vadd.xlane.f32.xlu0 %v1088
        %v1090 = vpop.xlane.xlu0 %1089
        %v1091 = vsel %vm961, %v1077, 0.0
        %1092 = vadd.xlane.f32.xlu0 %v1091
        %v1093 = vpop.xlane.xlu0 %1092
        %v1094 = vadd.f32 %v1078, %v1084
        %v1095 = vadd.f32 %v1079, %v1087
        %v1096 = vadd.f32 %v1080, %v1090
        %v1097 = vadd.f32 %v1081, %v1093
        %v1098 = vpack.c.bf16 %v1071, %v1071
        %v1099 = vpack.c.bf16 %v1073, %v1073
        %v1100 = vpack.c.bf16 %v1075, %v1075
        %v1101 = vpack.c.bf16 %v1077, %v1077
        %v1103 = vsel %vm961, %v1098, 0
        %vm1105 = vcmask 1043456
        %v1107 = vsel %vm1105, %v953, 0
        %1109 = vmatpush.bf16.msra.mxu0 0
        %1110 = vmatpush.bf16.msra.mxu0 0
        %1111 = vmatpush.bf16.msra.mxu0 0
        %1112 = vmatpush.bf16.msra.mxu0 0
        %1113 = vmatpush.bf16.msra.mxu0 0
        %1114 = vmatpush.bf16.msra.mxu0 0
        %1115 = vmatpush.bf16.msra.mxu0 0
        %1116 = vmatpush.bf16.msra.mxu0 %v1107
        %1117 = vmatmul.bf16.gmra.mxu0 %v1103
        %v1118 = vpop.f32.mrf.mxu0
        %v1119 = vadd.f32 0.0, %v1118
        %v1120 = vpop.f32.mrf.mxu0
        %1121 = vdwg.mxu0
        %v1123 = vsel %vm961, %v1099, 0
        %v1126 = vsel %vm1105, %v954, 0
        %1128 = vmatpush.bf16.msra.mxu0 0
        %1129 = vmatpush.bf16.msra.mxu0 0
        %1130 = vmatpush.bf16.msra.mxu0 0
        %1131 = vmatpush.bf16.msra.mxu0 0
        %1132 = vmatpush.bf16.msra.mxu0 0
        %1133 = vmatpush.bf16.msra.mxu0 0
        %1134 = vmatpush.bf16.msra.mxu0 0
        %1135 = vmatpush.bf16.msra.mxu0 %v1126
        %1136 = vmatmul.bf16.gmra.mxu0 %v1123
        %v1137 = vpop.f32.mrf.mxu0
        %v1138 = vadd.f32 0.0, %v1137
        %v1139 = vpop.f32.mrf.mxu0
        %1140 = vdwg.mxu0
        %v1142 = vsel %vm961, %v1100, 0
        %v1145 = vsel %vm1105, %v955, 0
        %1147 = vmatpush.bf16.msra.mxu0 0
        %1148 = vmatpush.bf16.msra.mxu0 0
        %1149 = vmatpush.bf16.msra.mxu0 0
        %1150 = vmatpush.bf16.msra.mxu0 0
        %1151 = vmatpush.bf16.msra.mxu0 0
        %1152 = vmatpush.bf16.msra.mxu0 0
        %1153 = vmatpush.bf16.msra.mxu0 0
        %1154 = vmatpush.bf16.msra.mxu0 %v1145
        %1155 = vmatmul.bf16.gmra.mxu0 %v1142
        %v1156 = vpop.f32.mrf.mxu0
        %v1157 = vadd.f32 0.0, %v1156
        %v1158 = vpop.f32.mrf.mxu0
        %1159 = vdwg.mxu0
        %v1161 = vsel %vm961, %v1101, 0
        %v1164 = vsel %vm1105, %v956, 0
        %1166 = vmatpush.bf16.msra.mxu0 0
        %1167 = vmatpush.bf16.msra.mxu0 0
        %1168 = vmatpush.bf16.msra.mxu0 0
        %1169 = vmatpush.bf16.msra.mxu0 0
        %1170 = vmatpush.bf16.msra.mxu0 0
        %1171 = vmatpush.bf16.msra.mxu0 0
        %1172 = vmatpush.bf16.msra.mxu0 0
        %1173 = vmatpush.bf16.msra.mxu0 %v1164
        %1174 = vmatmul.bf16.gmra.mxu0 %v1161
        %v1175 = vpop.f32.mrf.mxu0
        %v1176 = vadd.f32 0.0, %v1175
        %v1177 = vpop.f32.mrf.mxu0
        %1178 = vdwg.mxu0
        %v1179 = vadd.f32 %v1078, %v1119
        %v1180 = vadd.f32 %v1079, %v1138
        %v1181 = vadd.f32 %v1080, %v1157
        %v1182 = vadd.f32 %v1081, %v1176
        %v1183 = vrcp.pop %v1094
        %v1184 = vmul.f32 %v1094, %v1183
        %v1185 = vsub.f32 1.0, %v1184
        %v1186 = vmul.f32 %v1183, %v1185
        %v1187 = vadd.f32 %v1183, %v1186
        %vm1188 = vweird.f32 %v1094
        %vm1189 = vweird.f32 %v1183
        %vm1190 = vmor %vm1188, %vm1189
        %v1191 = vsel %vm1190, %v1183, %v1187
        %v1192 = vand.u32 2147483647, %v1094
        %vm1193 = vcmp.eq.f32.partialorder %v1192, 8.507059e+37
        %v1194 = vand.u32 %v1094, 2147483648
        %v1195 = vor.u32 1.1754944e-38, %v1194
        %v1196 = vsel %vm1193, %v1195, %v1191
        %v1197 = vmul.f32 %v1179, %v1196
        %v1198 = vrcp.pop %v1095
        %v1199 = vmul.f32 %v1095, %v1198
        %v1200 = vsub.f32 1.0, %v1199
        %v1201 = vmul.f32 %v1198, %v1200
        %v1202 = vadd.f32 %v1198, %v1201
        %vm1203 = vweird.f32 %v1095
        %vm1204 = vweird.f32 %v1198
        %vm1205 = vmor %vm1203, %vm1204
        %v1206 = vsel %vm1205, %v1198, %v1202
        %v1207 = vand.u32 2147483647, %v1095
        %vm1208 = vcmp.eq.f32.partialorder %v1207, 8.507059e+37
        %v1209 = vand.u32 %v1095, 2147483648
        %v1210 = vor.u32 1.1754944e-38, %v1209
        %v1211 = vsel %vm1208, %v1210, %v1206
        %v1212 = vmul.f32 %v1180, %v1211
        %v1213 = vrcp.pop %v1096
        %v1214 = vmul.f32 %v1096, %v1213
        %v1215 = vsub.f32 1.0, %v1214
        %v1216 = vmul.f32 %v1213, %v1215
        %v1217 = vadd.f32 %v1213, %v1216
        %vm1218 = vweird.f32 %v1096
        %vm1219 = vweird.f32 %v1213
        %vm1220 = vmor %vm1218, %vm1219
        %v1221 = vsel %vm1220, %v1213, %v1217
        %v1222 = vand.u32 2147483647, %v1096
        %vm1223 = vcmp.eq.f32.partialorder %v1222, 8.507059e+37
        %v1224 = vand.u32 %v1096, 2147483648
        %v1225 = vor.u32 1.1754944e-38, %v1224
        %v1226 = vsel %vm1223, %v1225, %v1221
        %v1227 = vmul.f32 %v1181, %v1226
        %v1228 = vrcp.pop %v1097
        %v1229 = vmul.f32 %v1097, %v1228
        %v1230 = vsub.f32 1.0, %v1229
        %v1231 = vmul.f32 %v1228, %v1230
        %v1232 = vadd.f32 %v1228, %v1231
        %vm1233 = vweird.f32 %v1097
        %vm1234 = vweird.f32 %v1228
        %vm1235 = vmor %vm1233, %vm1234
        %v1236 = vsel %vm1235, %v1228, %v1232
        %v1237 = vand.u32 2147483647, %v1097
        %vm1238 = vcmp.eq.f32.partialorder %v1237, 8.507059e+37
        %v1239 = vand.u32 %v1097, 2147483648
        %v1240 = vor.u32 1.1754944e-38, %v1239
        %v1241 = vsel %vm1238, %v1240, %v1236
        %v1242 = vmul.f32 %v1182, %v1241
        %1244 = vrot.lane.b32.xlu0 %v1212, 8
        %v1245 = vpop.permute.xlu0 %1244
        %1248 = vrot.lane.b32.xlu0 %v1227, 16
        %v1249 = vpop.permute.xlu0 %1248
        %1252 = vrot.lane.b32.xlu0 %v1242, 24
        %v1253 = vpop.permute.xlu0 %1252
        %v1255 = vsel %vm961, %v1197, %v1245
        %vm1256 = vcmask 130048
        %v1257 = vsel %vm1256, %v1255, %v1249
        %vm1258 = vcmask 195584
        %v1259 = vsel %vm1258, %v1257, %v1253
        %v1260 = vpack.c.bf16 %v1259, %v1259
        %v1261 = vld [vmem:[#allocation14] sm:$0xf]
        %v1262 = vld [vmem:[#allocation14 + $0x4] sm:$0xf]
        %v1263 = vld [vmem:[#allocation14 + $0x8] sm:$0xf]
        %v1264 = vld [vmem:[#allocation14 + $0xc] sm:$0xf]
        %v1265 = vld [vmem:[%s11] sm:$0x1]
        %v1267 = vperm.slane %v1265, 0
        %v1273 = vunpack.c.l.b16 %v1261
        %v1274 = vunpack.c.l.b16 %v1262
        %v1275 = vunpack.c.l.b16 %v1263
        %v1276 = vunpack.c.l.b16 %v1264
        %v1277 = vpack.c.b16 %v1274, %v1273
        %v1278 = vpack.c.b16 %v1276, %v1275
        %v1282 = vsel %vm745, %v1260, 0
        %1284 = vmatpush.bf16.msra.mxu0 0
        %1285 = vmatpush.bf16.msra.mxu0 0
        %1286 = vmatpush.bf16.msra.mxu0 0
        %1287 = vmatpush.bf16.msra.mxu0 0
        %1288 = vmatpush.bf16.msra.mxu0 0
        %1289 = vmatpush.bf16.msra.mxu0 0
        %1290 = vmatpush.bf16.msra.mxu0 %v1278
        %1291 = vmatpush.bf16.msra.mxu0 %v1277
        %1292 = vmatmul.bf16.gmra.mxu0 %v1282
        %v1293 = vpop.f32.mrf.mxu0
        %v1294 = vadd.f32 %v1267, %v1293
        %v1295 = vpop.f32.mrf.mxu0
        %1296 = vdwg.mxu0
        %v1297 = vadd.f32 %v1294, %v948
        %v1298 = vld [vmem:[%s12] sm:$0x1]
        %v1299 = vld [vmem:[%s13] sm:$0x1]
        %v1300 = vsel %vm745, %v1297, 0.0
        %1301 = vadd.xlane.f32.xlu0 %v1300
        %v1302 = vpop.xlane.xlu0 %1301
        %v1303 = vmul.f32 %v1302, %v755
        %v1304 = vmul.f32 %v1297, %v1297
        %v1305 = vsel %vm745, %v1304, 0.0
        %1306 = vadd.xlane.f32.xlu0 %v1305
        %v1307 = vpop.xlane.xlu0 %1306
        %v1308 = vmul.f32 %v1307, %v755
        %v1309 = vmul.f32 %v1303, %v1303
        %v1310 = vsub.f32 %v1308, %v1309
        %v1311 = vmax.f32 %v1310, 0.0
        %v1312 = vsub.f32 %v1297, %v1303
        %v1313 = vadd.f32 %v1311, 1e-05
        %v1314 = vrsqrt.pop %v1313
        %v1315 = vmul.f32 %v1314, %v1313
        %v1316 = vmul.f32 %v1315, %v1314
        %v1317 = vmul.f32 0.5, %v1316
        %v1318 = vsub.f32 1.5, %v1317
        %v1319 = vmul.f32 %v1314, %v1318
        %vm1320 = vweird.f32 %v1313
        %vm1321 = vweird.f32 %v1314
        %vm1322 = vmor %vm1320, %vm1321
        %v1323 = vsel %vm1322, %v1314, %v1319
        %v1324 = vmul.f32 %v1312, %v1323
        %v1326 = vperm.slane %v1298, 0
        %v1328 = vmul.f32 %v1324, %v1326
        %v1330 = vperm.slane %v1299, 0
        %v1332 = vadd.f32 %v1328, %v1330
        %v1333 = vpack.c.bf16 %v1332, %v1332
        %v1334 = vld [vmem:[#allocation16] sm:$0xf]
        %v1335 = vld [vmem:[#allocation16 + $0x4] sm:$0xf]
        %v1336 = vld [vmem:[#allocation16 + $0x8] sm:$0xf]
        %v1337 = vld [vmem:[#allocation16 + $0xc] sm:$0xf]
        %v1338 = vld [vmem:[%s15] sm:$0x1]
        %v1340 = vperm.slane %v1338, 0
        %v1346 = vunpack.c.l.b16 %v1334
        %v1347 = vunpack.c.l.b16 %v1335
        %v1348 = vunpack.c.l.b16 %v1336
        %v1349 = vunpack.c.l.b16 %v1337
        %v1350 = vpack.c.b16 %v1347, %v1346
        %v1351 = vpack.c.b16 %v1349, %v1348
        %v1355 = vsel %vm745, %v1333, 0
        %1357 = vmatpush.bf16.msra.mxu0 0
        %1358 = vmatpush.bf16.msra.mxu0 0
        %1359 = vmatpush.bf16.msra.mxu0 0
        %1360 = vmatpush.bf16.msra.mxu0 0
        %1361 = vmatpush.bf16.msra.mxu0 0
        %1362 = vmatpush.bf16.msra.mxu0 0
        %1363 = vmatpush.bf16.msra.mxu0 %v1351
        %1364 = vmatpush.bf16.msra.mxu0 %v1350
        %1365 = vmatmul.bf16.gmra.mxu0 %v1355
        %v1366 = vpop.f32.mrf.mxu0
        %v1367 = vadd.f32 %v1340, %v1366
        %v1368 = vpop.f32.mrf.mxu0
        %1369 = vdwg.mxu0
        %v1370 = vmul.f32 %v1367, 0.5
        %v1371 = vmul.f32 %v1367, 0.70710677
        %v1372 = vmul.f32 %v1371, %v1371
        %v1373 = vmin.f32 16.0, %v1372
        %v1374 = vmul.f32 %v1373, 2.1237322e-06
        %v1375 = vadd.f32 %v1374, 0.00028619796
        %v1376 = vmul.f32 %v1373, %v1375
        %v1377 = vadd.f32 %v1376, 0.0036580483
        %v1378 = vmul.f32 %v1373, %v1377
        %v1379 = vadd.f32 %v1378, 0.05243302
        %v1380 = vmul.f32 %v1373, %v1379
        %v1381 = vadd.f32 %v1380, 0.18741608
        %v1382 = vmul.f32 %v1373, %v1381
        %v1383 = vadd.f32 %v1382, 1.1283791
        %v1384 = vmul.f32 %v1371, %v1383
        %v1385 = vmul.f32 %v1373, 3.8918573e-05
        %v1386 = vadd.f32 %v1385, 0.001143296
        %v1387 = vmul.f32 %v1373, %v1386
        %v1388 = vadd.f32 %v1387, 0.014752088
        %v1389 = vmul.f32 %v1373, %v1388
        %v1390 = vadd.f32 %v1389, 0.112945676
        %v1391 = vmul.f32 %v1373, %v1390
        %v1392 = vadd.f32 %v1391, 0.4994258
        %v1393 = vmul.f32 %v1373, %v1392
        %v1394 = vadd.f32 %v1393, 1.0
        %v1395 = vrcp.pop %v1394
        %v1396 = vmul.f32 %v1394, %v1395
        %v1397 = vsub.f32 1.0, %v1396
        %v1398 = vmul.f32 %v1395, %v1397
        %v1399 = vadd.f32 %v1395, %v1398
        %vm1400 = vweird.f32 %v1394
        %vm1401 = vweird.f32 %v1395
        %vm1402 = vmor %vm1400, %vm1401
        %v1403 = vsel %vm1402, %v1395, %v1399
        %v1404 = vand.u32 2147483647, %v1394
        %vm1405 = vcmp.eq.f32.partialorder %v1404, 8.507059e+37
        %v1406 = vand.u32 %v1394, 2147483648
        %v1407 = vor.u32 1.1754944e-38, %v1406
        %v1408 = vsel %vm1405, %v1407, %v1403
        %v1409 = vmul.f32 %v1384, %v1408
        %v1410 = vmin.f32 %v1409, 1.0
        %v1411 = vmax.f32 %v1410, -1.0
        %v1412 = vadd.f32 %v1411, 1.0
        %v1413 = vmul.f32 %v1370, %v1412
        %v1414 = vpack.c.bf16 %v1413, %v1413
        %v1415 = vld [vmem:[#allocation17] sm:$0xf]
        %v1416 = vld [vmem:[#allocation17 + $0x4] sm:$0xf]
        %v1417 = vld [vmem:[#allocation17 + $0x8] sm:$0xf]
        %v1418 = vld [vmem:[#allocation17 + $0xc] sm:$0xf]
        %v1419 = vld [vmem:[%s17] sm:$0x1]
        %v1421 = vperm.slane %v1419, 0
        %v1427 = vunpack.c.l.b16 %v1415
        %v1428 = vunpack.c.l.b16 %v1416
        %v1429 = vunpack.c.l.b16 %v1417
        %v1430 = vunpack.c.l.b16 %v1418
        %v1431 = vpack.c.b16 %v1428, %v1427
        %v1432 = vpack.c.b16 %v1430, %v1429
        %v1436 = vsel %vm745, %v1414, 0
        %1438 = vmatpush.bf16.msra.mxu0 0
        %1439 = vmatpush.bf16.msra.mxu0 0
        %1440 = vmatpush.bf16.msra.mxu0 0
        %1441 = vmatpush.bf16.msra.mxu0 0
        %1442 = vmatpush.bf16.msra.mxu0 0
        %1443 = vmatpush.bf16.msra.mxu0 0
        %1444 = vmatpush.bf16.msra.mxu0 %v1432
        %1445 = vmatpush.bf16.msra.mxu0 %v1431
        %1446 = vmatmul.bf16.gmra.mxu0 %v1436
        %v1447 = vpop.f32.mrf.mxu0
        %v1448 = vadd.f32 %v1421, %v1447
        %v1449 = vpop.f32.mrf.mxu0
        %1450 = vdwg.mxu0
        %v1451 = vadd.f32 %v1297, %v1448
        %1452 = vst.msk [vmem:[%s740] sm:$0xff] %vm745, %v1451
        %s1453 = sand.u32 %s451, 1
        %s1454 = scalar_lea.sflag [#allocation7], %s1453
        %s1455 = sand.u32 %s451, 1
        %s1456 = smul.addr %s1455, 8
        %s1457 = scalar_lea.vmem [#allocation19], %s1456
        // Predicated region
        $region125: #{tpu_custom_call.1} parent=91 // pred_check
          %p1458 = pneg %p461
        $region126: #{tpu_custom_call.1} parent=91 // pred_check_branch
          %1460 = sbr.rel (%p1458) target = $region128
        $region127: #{tpu_custom_call.1} parent=91 // pred_region
          %1462 = vsyncadd %s1454, 0
          %s1463 = sadd.s32 %s46, %s45
          %s1464 = smul.addr %s1463, 8
          %s1465 = scalar_lea.hbm %s18, %s1464
          %s1467 = sshll.u32 %s1457, 4
          %s1468 = int_to_ptr.vmem [resolvable:$true] %s1467
          %s1469 = sshll.u32 %s1465, 4
          %s1470 = int_to_ptr.hbm [resolvable:$true] %s1469
          %1472 = dma.vmem_to_hbm [thread:$0]  %s1468, 128, %s1470, %s1454
        $region128: #{tpu_custom_call.1} parent=91 // pred_fallthru
          _
      $region92: #{tpu_custom_call.1} parent=5 // pred_fallthru
        _
      %p1473 = scmp.le.s32.totalorder 2, %s36
      // Predicated region
      $region129: #{tpu_custom_call.1} parent=5 // pred_check
        %p1474 = pneg %p1473
      $region130: #{tpu_custom_call.1} parent=5 // pred_check_branch
        %1476 = sbr.rel (%p1474) target = $region132
      $region131: #{tpu_custom_call.1} parent=5 // pred_region
        %s1477 = ssub.s32 %s36, 2
        // Predicated region
        $region133: #{tpu_custom_call.1} parent=131 // pred_check
          %p1478 = pneg %p467
        $region134: #{tpu_custom_call.1} parent=131 // pred_check_branch
          %1480 = sbr.rel (%p1478) target = $region136
        $region135: #{tpu_custom_call.1} parent=131 // pred_region
          %s1481 = sand.u32 %s452, 1
          %s1482 = scalar_lea.sflag [#allocation7], %s1481
          %s1483 = sand.u32 %s452, 1
          %s1484 = smul.addr %s1483, 8
          %s1485 = scalar_lea.vmem [#allocation19], %s1484
          %1487 = dma.done %s1482, 128
        $region136: #{tpu_custom_call.1} parent=131 // pred_fallthru
          _
      $region132: #{tpu_custom_call.1} parent=5 // pred_fallthru
        _
    $region6: #{tpu_custom_call.1} parent=1 // loop_footer
      %s40 = sadd.s32 1, %s36
    $region7: #{tpu_custom_call.1} parent=1 // loop_footer_branch
      %35 = sbr.rel target = $region3
    $region8: #{tpu_custom_call.1} parent=1 // loop_exit
      _
    %1488 = vsyncpa [#allocation6], 1
    %s1489 = scalar_lea.sflag [#allocation6], 1
    %1490 = vsyncpa %s1489, 1
    %1491 = vsyncpa [#allocation9], 1
    %s1492 = scalar_lea.sflag [#allocation9], 1
    %1493 = vsyncpa %s1492, 1
    %1494 = vsyncpa [#allocation12], 1
    %1495 = vsyncpa [#allocation15], 1
    %1496 = vsyncpa [#allocation18], 1
    %1497 = vsyncpa [#allocation7], 1
    %s1498 = scalar_lea.sflag [#allocation7], 1
    %1499 = vsyncpa %s1498, 1

// kernel: tpu_custom_call.1
$region0: #{tpu_custom_call.1}
  #allocation0 [shape = 'u32[]', space=smem, size = 0x4, offset = 0x4, fixed_abs, tag = 'smem constant byte address 0x4 - core index']
  #allocation1 [shape = 'u32[72,128]{1,0:T(1,128)}', space=vmem, size = 0x9000, scoped, tag = 'internal scratch']
  #allocation2 [shape = 'bf16[4,8,8]{2,1,0:T(8,128)(2,1)}', space=vmem, size = 0x2000, scoped, tag = 'scratch operand']
  #allocation3 [shape = 'bf16[4,8,8]{2,1,0:T(8,128)(2,1)}', space=vmem, size = 0x2000, scoped, tag = 'scratch operand']
  #allocation4 [shape = 'bf16[4,8,8]{2,1,0:T(8,128)(2,1)}', space=vmem, size = 0x2000, scoped, tag = 'scratch operand']
  %s0 = inlined_call_operand.hbm [shape: f32[2,8,32], index: 0, kind: input, shape index: {}]
  %s1 = inlined_call_operand.hbm [shape: f32[2,1,8], index: 1, kind: input, shape index: {}]
  %s2 = inlined_call_operand.vmem [shape: f32[1,32], index: 2, kind: input, shape index: {}]
  %s3 = inlined_call_operand.vmem [shape: f32[1,32], index: 3, kind: input, shape index: {}]
  %s4 = inlined_call_operand.hbm [shape: bf16[32,32], index: 4, kind: input, shape index: {}]
  %s5 = inlined_call_operand.hbm [shape: bf16[32,32], index: 5, kind: input, shape index: {}]
  %s6 = inlined_call_operand.hbm [shape: bf16[32,32], index: 6, kind: input, shape index: {}]
  %s7 = inlined_call_operand.vmem [shape: f32[1,32], index: 7, kind: input, shape index: {}]
  %s8 = inlined_call_operand.vmem [shape: f32[1,32], index: 8, kind: input, shape index: {}]
  %s9 = inlined_call_operand.vmem [shape: f32[1,32], index: 9, kind: input, shape index: {}]
  %s10 = inlined_call_operand.hbm [shape: bf16[32,32], index: 10, kind: input, shape index: {}]
  %s11 = inlined_call_operand.vmem [shape: f32[1,32], index: 11, kind: input, shape index: {}]
  %s12 = inlined_call_operand.vmem [shape: f32[1,32], index: 12, kind: input, shape index: {}]
  %s13 = inlined_call_operand.vmem [shape: f32[1,32], index: 13, kind: input, shape index: {}]
  %s14 = inlined_call_operand.hbm [shape: bf16[32,32], index: 14, kind: input, shape index: {}]
  %s15 = inlined_call_operand.vmem [shape: f32[1,32], index: 15, kind: input, shape index: {}]
  %s16 = inlined_call_operand.hbm [shape: bf16[32,32], index: 16, kind: input, shape index: {}]
  %s17 = inlined_call_operand.vmem [shape: f32[1,32], index: 17, kind: input, shape index: {}]
  %s18 = inlined_call_operand.hbm [shape: f32[2,8,32], index: 18, kind: output, shape index: {}]
  %s19 = sld [smem:[#allocation0]]
  $region137: #{tpu_custom_call.1} parent=0
    _
  %s21 = ssub.s32 1, %s19
  %s22 = scalar_select 0, %s21, %s19
  $region1: #{tpu_custom_call.1} parent=0
    #allocation5 [shape = 'u8[8192]{0}', space=vmem, size = 0x2000, scoped, tag = 'input window, operand 0']
    #allocation6 [shape = 's32[2]{0}', space=sflag, size = 0x8, scoped, tag = 'scoped memory for tpu_custom_call.1']
    #allocation7 [shape = 's32[2]{0}', space=sflag, size = 0x8, scoped, tag = 'scoped memory for tpu_custom_call.1']
    #allocation8 [shape = 'u8[1024]{0}', space=vmem, size = 0x400, scoped, tag = 'input window, operand 1']
    #allocation9 [shape = 's32[2]{0}', space=sflag, size = 0x8, scoped, tag = 'scoped memory for tpu_custom_call.1']
    #allocation10 [shape = 'u8[8192]{0}', space=vmem, size = 0x2000, scoped, tag = 'input window, operand 4, single buffered']
    #allocation11 [shape = 'u8[8192]{0}', space=vmem, size = 0x2000, scoped, tag = 'input window, operand 5, single buffered']
    #allocation12 [shape = 's32[1]{0}', space=sflag, size = 0x4, scoped, tag = 'scoped memory for tpu_custom_call.1']
    #allocation13 [shape = 'u8[8192]{0}', space=vmem, size = 0x2000, scoped, tag = 'input window, operand 6, single buffered']
    #allocation14 [shape = 'u8[8192]{0}', space=vmem, size = 0x2000, scoped, tag = 'input window, operand 10, single buffered']
    #allocation15 [shape = 's32[1]{0}', space=sflag, size = 0x4, scoped, tag = 'scoped memory for tpu_custom_call.1']
    #allocation16 [shape = 'u8[8192]{0}', space=vmem, size = 0x2000, scoped, tag = 'input window, operand 14, single buffered']
    #allocation17 [shape = 'u8[8192]{0}', space=vmem, size = 0x2000, scoped, tag = 'input window, operand 16, single buffered']
    #allocation18 [shape = 's32[1]{0}', space=sflag, size = 0x4, scoped, tag = 'scoped memory for tpu_custom_call.1']
    #allocation19 [shape = 'u8[8192]{0}', space=vmem, size = 0x2000, scoped, tag = 'output window, operand 0']
    %23 = vsyncpa [#allocation6], 0
    %s24 = scalar_lea.sflag [#allocation6], 1
    %25 = vsyncpa %s24, 0
    %26 = vsyncpa [#allocation9], 0
    %s27 = scalar_lea.sflag [#allocation9], 1
    %28 = vsyncpa %s27, 0
    %29 = vsyncpa [#allocation12], 0
    %30 = vsyncpa [#allocation15], 0
    %31 = vsyncpa [#allocation18], 0
    %32 = vsyncpa [#allocation7], 0
    %s33 = scalar_lea.sflag [#allocation7], 1
    %34 = vsyncpa %s33, 0
    loop: start=0, step=1, limit=4
    $region2: #{tpu_custom_call.1} parent=1 // loop_pre_header
      _
    $region3: #{tpu_custom_call.1} parent=1 // loop_header
      %s36 = sphi 0, %s40
      %p37 = scmp.ge.s32.totalorder %s36, 4
      %s43 = sphi 0, %s55
      %s44 = sphi 0, %s51
      %s45 = sphi 0, %s43
      %s46 = sphi 0, %s44
      %s47 = sphi 0, %s45
      %s48 = sphi 0, %s46
      %s58 = sphi 0, %s60
      %s61 = sphi 0, %s58
      %s62 = sphi 0, %s61
      %s78 = sphi 0, %s62
      %s84 = sphi 0, %s86
      %s87 = sphi 0, %s84
      %s88 = sphi 0, %s87
      %s104 = sphi 0, %s88
      %s108 = sphi 0, %s108
      %s110 = sphi 0, %s108
      %s111 = sphi 0, %s110
      %s125 = sphi 0, %s111
      %s129 = sphi 0, %s129
      %s131 = sphi 0, %s129
      %s132 = sphi 0, %s131
      %s146 = sphi 0, %s132
      %s150 = sphi 0, %s150
      %s152 = sphi 0, %s150
      %s153 = sphi 0, %s152
      %s167 = sphi 0, %s153
      %s171 = sphi 0, %s171
      %s173 = sphi 0, %s171
      %s174 = sphi 0, %s173
      %s188 = sphi 0, %s174
      %s192 = sphi 0, %s192
      %s194 = sphi 0, %s192
      %s195 = sphi 0, %s194
      %s209 = sphi 0, %s195
      %s213 = sphi 0, %s213
      %s215 = sphi 0, %s213
      %s216 = sphi 0, %s215
      %s230 = sphi 0, %s216
      %s234 = sphi 0, %s234
      %s236 = sphi 0, %s234
      %s237 = sphi 0, %s236
      %s251 = sphi 0, %s237
      %s255 = sphi 0, %s255
      %s257 = sphi 0, %s255
      %s258 = sphi 0, %s257
      %s272 = sphi 0, %s258
      %s276 = sphi 0, %s276
      %s278 = sphi 0, %s276
      %s279 = sphi 0, %s278
      %s293 = sphi 0, %s279
      %s297 = sphi 0, %s297
      %s299 = sphi 0, %s297
      %s300 = sphi 0, %s299
      %s314 = sphi 0, %s300
      %s318 = sphi 0, %s318
      %s320 = sphi 0, %s318
      %s321 = sphi 0, %s320
      %s335 = sphi 0, %s321
      %s339 = sphi 0, %s339
      %s341 = sphi 0, %s339
      %s342 = sphi 0, %s341
      %s356 = sphi 0, %s342
      %s360 = sphi 0, %s360
      %s362 = sphi 0, %s360
      %s363 = sphi 0, %s362
      %s377 = sphi 0, %s363
      %s381 = sphi 0, %s381
      %s383 = sphi 0, %s381
      %s384 = sphi 0, %s383
      %s398 = sphi 0, %s384
      %s402 = sphi 0, %s402
      %s404 = sphi 0, %s402
      %s405 = sphi 0, %s404
      %s419 = sphi 0, %s405
      %s423 = sphi 0, %s423
      %s425 = sphi 0, %s423
      %s426 = sphi 0, %s425
      %s440 = sphi 0, %s426
      %s448 = sphi 0, %s450
      %s451 = sphi 0, %s448
      %s452 = sphi 0, %s451
      %s468 = sphi 0, %s452
    $region4: #{tpu_custom_call.1} parent=1 // loop_header_branch
      %39 = sbr.rel (%p37) target = $region8
    $region5: #{tpu_custom_call.1} parent=1 // loop_body
      %s41 = ssub.s32 %s36, 1
      %s42 = ssub.s32 %s36, 2
      %s49 = sadd.s32 1, %s44
      %p50 = scmp.ge.s32.totalorder %s49, 1
      %s51 = scalar_select %p50, 0, %s49
      %s52 = sadd.s32 1, %s43
      %s53 = scalar_select %p50, %s52, %s43
      %p54 = scmp.ge.s32.totalorder %s53, 2
      %s55 = scalar_select %p54, 0, %s53
      %s56 = ssub.s32 %s43, %s55
      %p57 = scmp.eq.s32.totalorder %s56, 0
      %s59 = sadd.s32 %s58, 1
      %s60 = scalar_select %p57, %s58, %s59
      %p63 = pneg %p57
      %p64 = scmp.eq.s32.totalorder %s36, 1
      %p65 = por %p63, %p64
      %p66 = scmp.ne.s32.totalorder %s58, %s61
      %p67 = scmp.eq.s32.totalorder %s36, 0
      %p68 = por %p66, %p67
      %p69 = scmp.ne.s32.totalorder %s58, %s61
      %p70 = scmp.eq.s32.totalorder %s41, 1
      %p71 = por %p69, %p70
      %p72 = scmp.ne.s32.totalorder %s61, %s62
      %p73 = scmp.eq.s32.totalorder %s41, 0
      %p74 = por %p72, %p73
      %p75 = scmp.ne.s32.totalorder %s61, %s62
      %p76 = scmp.eq.s32.totalorder %s42, 1
      %p77 = por %p75, %p76
      %p79 = scmp.ne.s32.totalorder %s62, %s78
      %p80 = scmp.eq.s32.totalorder %s42, 0
      %p81 = por %p79, %p80
      %s82 = ssub.s32 %s43, %s55
      %p83 = scmp.eq.s32.totalorder %s82, 0
      %s85 = sadd.s32 %s84, 1
      %s86 = scalar_select %p83, %s84, %s85
      %p89 = pneg %p83
      %p90 = scmp.eq.s32.totalorder %s36, 1
      %p91 = por %p89, %p90
      %p92 = scmp.ne.s32.totalorder %s84, %s87
      %p93 = scmp.eq.s32.totalorder %s36, 0
      %p94 = por %p92, %p93
      %p95 = scmp.ne.s32.totalorder %s84, %s87
      %p96 = scmp.eq.s32.totalorder %s41, 1
      %p97 = por %p95, %p96
      %p98 = scmp.ne.s32.totalorder %s87, %s88
      %p99 = scmp.eq.s32.totalorder %s41, 0
      %p100 = por %p98, %p99
      %p101 = scmp.ne.s32.totalorder %s87, %s88
      %p102 = scmp.eq.s32.totalorder %s42, 1
      %p103 = por %p101, %p102
      %p105 = scmp.ne.s32.totalorder %s88, %s104
      %p106 = scmp.eq.s32.totalorder %s42, 0
      %p107 = por %p105, %p106
      %s109 = sadd.s32 %s108, 1
      %p112 = scmp.eq.s32.totalorder %s36, 1
      %p113 = scmp.ne.s32.totalorder %s108, %s110
      %p114 = scmp.eq.s32.totalorder %s36, 0
      %p115 = por %p113, %p114
      %p116 = scmp.ne.s32.totalorder %s108, %s110
      %p117 = scmp.eq.s32.totalorder %s41, 1
      %p118 = por %p116, %p117
      %p119 = scmp.ne.s32.totalorder %s110, %s111
      %p120 = scmp.eq.s32.totalorder %s41, 0
      %p121 = por %p119, %p120
      %p122 = scmp.ne.s32.totalorder %s110, %s111
      %p123 = scmp.eq.s32.totalorder %s42, 1
      %p124 = por %p122, %p123
      %p126 = scmp.ne.s32.totalorder %s111, %s125
      %p127 = scmp.eq.s32.totalorder %s42, 0
      %p128 = por %p126, %p127
      %s130 = sadd.s32 %s129, 1
      %p133 = scmp.eq.s32.totalorder %s36, 1
      %p134 = scmp.ne.s32.totalorder %s129, %s131
      %p135 = scmp.eq.s32.totalorder %s36, 0
      %p136 = por %p134, %p135
      %p137 = scmp.ne.s32.totalorder %s129, %s131
      %p138 = scmp.eq.s32.totalorder %s41, 1
      %p139 = por %p137, %p138
      %p140 = scmp.ne.s32.totalorder %s131, %s132
      %p141 = scmp.eq.s32.totalorder %s41, 0
      %p142 = por %p140, %p141
      %p143 = scmp.ne.s32.totalorder %s131, %s132
      %p144 = scmp.eq.s32.totalorder %s42, 1
      %p145 = por %p143, %p144
      %p147 = scmp.ne.s32.totalorder %s132, %s146
      %p148 = scmp.eq.s32.totalorder %s42, 0
      %p149 = por %p147, %p148
      %s151 = sadd.s32 %s150, 1
      %p154 = scmp.eq.s32.totalorder %s36, 1
      %p155 = scmp.ne.s32.totalorder %s150, %s152
      %p156 = scmp.eq.s32.totalorder %s36, 0
      %p157 = por %p155, %p156
      %p158 = scmp.ne.s32.totalorder %s150, %s152
      %p159 = scmp.eq.s32.totalorder %s41, 1
      %p160 = por %p158, %p159
      %p161 = scmp.ne.s32.totalorder %s152, %s153
      %p162 = scmp.eq.s32.totalorder %s41, 0
      %p163 = por %p161, %p162
      %p164 = scmp.ne.s32.totalorder %s152, %s153
      %p165 = scmp.eq.s32.totalorder %s42, 1
      %p166 = por %p164, %p165
      %p168 = scmp.ne.s32.totalorder %s153, %s167
      %p169 = scmp.eq.s32.totalorder %s42, 0
      %p170 = por %p168, %p169
      %s172 = sadd.s32 %s171, 1
      %p175 = scmp.eq.s32.totalorder %s36, 1
      %p176 = scmp.ne.s32.totalorder %s171, %s173
      %p177 = scmp.eq.s32.totalorder %s36, 0
      %p178 = por %p176, %p177
      %p179 = scmp.ne.s32.totalorder %s171, %s173
      %p180 = scmp.eq.s32.totalorder %s41, 1
      %p181 = por %p179, %p180
      %p182 = scmp.ne.s32.totalorder %s173, %s174
      %p183 = scmp.eq.s32.totalorder %s41, 0
      %p184 = por %p182, %p183
      %p185 = scmp.ne.s32.totalorder %s173, %s174
      %p186 = scmp.eq.s32.totalorder %s42, 1
      %p187 = por %p185, %p186
      %p189 = scmp.ne.s32.totalorder %s174, %s188
      %p190 = scmp.eq.s32.totalorder %s42, 0
      %p191 = por %p189, %p190
      %s193 = sadd.s32 %s192, 1
      %p196 = scmp.eq.s32.totalorder %s36, 1
      %p197 = scmp.ne.s32.totalorder %s192, %s194
      %p198 = scmp.eq.s32.totalorder %s36, 0
      %p199 = por %p197, %p198
      %p200 = scmp.ne.s32.totalorder %s192, %s194
      %p201 = scmp.eq.s32.totalorder %s41, 1
      %p202 = por %p200, %p201
      %p203 = scmp.ne.s32.totalorder %s194, %s195
      %p204 = scmp.eq.s32.totalorder %s41, 0
      %p205 = por %p203, %p204
      %p206 = scmp.ne.s32.totalorder %s194, %s195
      %p207 = scmp.eq.s32.totalorder %s42, 1
      %p208 = por %p206, %p207
      %p210 = scmp.ne.s32.totalorder %s195, %s209
      %p211 = scmp.eq.s32.totalorder %s42, 0
      %p212 = por %p210, %p211
      %s214 = sadd.s32 %s213, 1
      %p217 = scmp.eq.s32.totalorder %s36, 1
      %p218 = scmp.ne.s32.totalorder %s213, %s215
      %p219 = scmp.eq.s32.totalorder %s36, 0
      %p220 = por %p218, %p219
      %p221 = scmp.ne.s32.totalorder %s213, %s215
      %p222 = scmp.eq.s32.totalorder %s41, 1
      %p223 = por %p221, %p222
      %p224 = scmp.ne.s32.totalorder %s215, %s216
      %p225 = scmp.eq.s32.totalorder %s41, 0
      %p226 = por %p224, %p225
      %p227 = scmp.ne.s32.totalorder %s215, %s216
      %p228 = scmp.eq.s32.totalorder %s42, 1
      %p229 = por %p227, %p228
      %p231 = scmp.ne.s32.totalorder %s216, %s230
      %p232 = scmp.eq.s32.totalorder %s42, 0
      %p233 = por %p231, %p232
      %s235 = sadd.s32 %s234, 1
      %p238 = scmp.eq.s32.totalorder %s36, 1
      %p239 = scmp.ne.s32.totalorder %s234, %s236
      %p240 = scmp.eq.s32.totalorder %s36, 0
      %p241 = por %p239, %p240
      %p242 = scmp.ne.s32.totalorder %s234, %s236
      %p243 = scmp.eq.s32.totalorder %s41, 1
      %p244 = por %p242, %p243
      %p245 = scmp.ne.s32.totalorder %s236, %s237
      %p246 = scmp.eq.s32.totalorder %s41, 0
      %p247 = por %p245, %p246
      %p248 = scmp.ne.s32.totalorder %s236, %s237
      %p249 = scmp.eq.s32.totalorder %s42, 1
      %p250 = por %p248, %p249
      %p252 = scmp.ne.s32.totalorder %s237, %s251
      %p253 = scmp.eq.s32.totalorder %s42, 0
      %p254 = por %p252, %p253
      %s256 = sadd.s32 %s255, 1
      %p259 = scmp.eq.s32.totalorder %s36, 1
      %p260 = scmp.ne.s32.totalorder %s255, %s257
      %p261 = scmp.eq.s32.totalorder %s36, 0
      %p262 = por %p260, %p261
      %p263 = scmp.ne.s32.totalorder %s255, %s257
      %p264 = scmp.eq.s32.totalorder %s41, 1
      %p265 = por %p263, %p264
      %p266 = scmp.ne.s32.totalorder %s257, %s258
      %p267 = scmp.eq.s32.totalorder %s41, 0
      %p268 = por %p266, %p267
      %p269 = scmp.ne.s32.totalorder %s257, %s258
      %p270 = scmp.eq.s32.totalorder %s42, 1
      %p271 = por %p269, %p270
      %p273 = scmp.ne.s32.totalorder %s258, %s272
      %p274 = scmp.eq.s32.totalorder %s42, 0
      %p275 = por %p273, %p274
      %s277 = sadd.s32 %s276, 1
      %p280 = scmp.eq.s32.totalorder %s36, 1
      %p281 = scmp.ne.s32.totalorder %s276, %s278
      %p282 = scmp.eq.s32.totalorder %s36, 0
      %p283 = por %p281, %p282
      %p284 = scmp.ne.s32.totalorder %s276, %s278
      %p285 = scmp.eq.s32.totalorder %s41, 1
      %p286 = por %p284, %p285
      %p287 = scmp.ne.s32.totalorder %s278, %s279
      %p288 = scmp.eq.s32.totalorder %s41, 0
      %p289 = por %p287, %p288
      %p290 = scmp.ne.s32.totalorder %s278, %s279
      %p291 = scmp.eq.s32.totalorder %s42, 1
      %p292 = por %p290, %p291
      %p294 = scmp.ne.s32.totalorder %s279, %s293
      %p295 = scmp.eq.s32.totalorder %s42, 0
      %p296 = por %p294, %p295
      %s298 = sadd.s32 %s297, 1
      %p301 = scmp.eq.s32.totalorder %s36, 1
      %p302 = scmp.ne.s32.totalorder %s297, %s299
      %p303 = scmp.eq.s32.totalorder %s36, 0
      %p304 = por %p302, %p303
      %p305 = scmp.ne.s32.totalorder %s297, %s299
      %p306 = scmp.eq.s32.totalorder %s41, 1
      %p307 = por %p305, %p306
      %p308 = scmp.ne.s32.totalorder %s299, %s300
      %p309 = scmp.eq.s32.totalorder %s41, 0
      %p310 = por %p308, %p309
      %p311 = scmp.ne.s32.totalorder %s299, %s300
      %p312 = scmp.eq.s32.totalorder %s42, 1
      %p313 = por %p311, %p312
      %p315 = scmp.ne.s32.totalorder %s300, %s314
      %p316 = scmp.eq.s32.totalorder %s42, 0
      %p317 = por %p315, %p316
      %s319 = sadd.s32 %s318, 1
      %p322 = scmp.eq.s32.totalorder %s36, 1
      %p323 = scmp.ne.s32.totalorder %s318, %s320
      %p324 = scmp.eq.s32.totalorder %s36, 0
      %p325 = por %p323, %p324
      %p326 = scmp.ne.s32.totalorder %s318, %s320
      %p327 = scmp.eq.s32.totalorder %s41, 1
      %p328 = por %p326, %p327
      %p329 = scmp.ne.s32.totalorder %s320, %s321
      %p330 = scmp.eq.s32.totalorder %s41, 0
      %p331 = por %p329, %p330
      %p332 = scmp.ne.s32.totalorder %s320, %s321
      %p333 = scmp.eq.s32.totalorder %s42, 1
      %p334 = por %p332, %p333
      %p336 = scmp.ne.s32.totalorder %s321, %s335
      %p337 = scmp.eq.s32.totalorder %s42, 0
      %p338 = por %p336, %p337
      %s340 = sadd.s32 %s339, 1
      %p343 = scmp.eq.s32.totalorder %s36, 1
      %p344 = scmp.ne.s32.totalorder %s339, %s341
      %p345 = scmp.eq.s32.totalorder %s36, 0
      %p346 = por %p344, %p345
      %p347 = scmp.ne.s32.totalorder %s339, %s341
      %p348 = scmp.eq.s32.totalorder %s41, 1
      %p349 = por %p347, %p348
      %p350 = scmp.ne.s32.totalorder %s341, %s342
      %p351 = scmp.eq.s32.totalorder %s41, 0
      %p352 = por %p350, %p351
      %p353 = scmp.ne.s32.totalorder %s341, %s342
      %p354 = scmp.eq.s32.totalorder %s42, 1
      %p355 = por %p353, %p354
      %p357 = scmp.ne.s32.totalorder %s342, %s356
      %p358 = scmp.eq.s32.totalorder %s42, 0
      %p359 = por %p357, %p358
      %s361 = sadd.s32 %s360, 1
      %p364 = scmp.eq.s32.totalorder %s36, 1
      %p365 = scmp.ne.s32.totalorder %s360, %s362
      %p366 = scmp.eq.s32.totalorder %s36, 0
      %p367 = por %p365, %p366
      %p368 = scmp.ne.s32.totalorder %s360, %s362
      %p369 = scmp.eq.s32.totalorder %s41, 1
      %p370 = por %p368, %p369
      %p371 = scmp.ne.s32.totalorder %s362, %s363
      %p372 = scmp.eq.s32.totalorder %s41, 0
      %p373 = por %p371, %p372
      %p374 = scmp.ne.s32.totalorder %s362, %s363
      %p375 = scmp.eq.s32.totalorder %s42, 1
      %p376 = por %p374, %p375
      %p378 = scmp.ne.s32.totalorder %s363, %s377
      %p379 = scmp.eq.s32.totalorder %s42, 0
      %p380 = por %p378, %p379
      %s382 = sadd.s32 %s381, 1
      %p385 = scmp.eq.s32.totalorder %s36, 1
      %p386 = scmp.ne.s32.totalorder %s381, %s383
      %p387 = scmp.eq.s32.totalorder %s36, 0
      %p388 = por %p386, %p387
      %p389 = scmp.ne.s32.totalorder %s381, %s383
      %p390 = scmp.eq.s32.totalorder %s41, 1
      %p391 = por %p389, %p390
      %p392 = scmp.ne.s32.totalorder %s383, %s384
      %p393 = scmp.eq.s32.totalorder %s41, 0
      %p394 = por %p392, %p393
      %p395 = scmp.ne.s32.totalorder %s383, %s384
      %p396 = scmp.eq.s32.totalorder %s42, 1
      %p397 = por %p395, %p396
      %p399 = scmp.ne.s32.totalorder %s384, %s398
      %p400 = scmp.eq.s32.totalorder %s42, 0
      %p401 = por %p399, %p400
      %s403 = sadd.s32 %s402, 1
      %p406 = scmp.eq.s32.totalorder %s36, 1
      %p407 = scmp.ne.s32.totalorder %s402, %s404
      %p408 = scmp.eq.s32.totalorder %s36, 0
      %p409 = por %p407, %p408
      %p410 = scmp.ne.s32.totalorder %s402, %s404
      %p411 = scmp.eq.s32.totalorder %s41, 1
      %p412 = por %p410, %p411
      %p413 = scmp.ne.s32.totalorder %s404, %s405
      %p414 = scmp.eq.s32.totalorder %s41, 0
      %p415 = por %p413, %p414
      %p416 = scmp.ne.s32.totalorder %s404, %s405
      %p417 = scmp.eq.s32.totalorder %s42, 1
      %p418 = por %p416, %p417
      %p420 = scmp.ne.s32.totalorder %s405, %s419
      %p421 = scmp.eq.s32.totalorder %s42, 0
      %p422 = por %p420, %p421
      %s424 = sadd.s32 %s423, 1
      %p427 = scmp.eq.s32.totalorder %s36, 1
      %p428 = scmp.ne.s32.totalorder %s423, %s425
      %p429 = scmp.eq.s32.totalorder %s36, 0
      %p430 = por %p428, %p429
      %p431 = scmp.ne.s32.totalorder %s423, %s425
      %p432 = scmp.eq.s32.totalorder %s41, 1
      %p433 = por %p431, %p432
      %p434 = scmp.ne.s32.totalorder %s425, %s426
      %p435 = scmp.eq.s32.totalorder %s41, 0
      %p436 = por %p434, %p435
      %p437 = scmp.ne.s32.totalorder %s425, %s426
      %p438 = scmp.eq.s32.totalorder %s42, 1
      %p439 = por %p437, %p438
      %p441 = scmp.ne.s32.totalorder %s426, %s440
      %p442 = scmp.eq.s32.totalorder %s42, 0
      %p443 = por %p441, %p442
      %s444 = ssub.s32 %s43, %s55
      %s445 = ssub.s32 %s44, %s51
      %s446 = sor.u32 %s444, %s445
      %p447 = scmp.eq.s32.totalorder %s446, 0
      %s449 = sadd.s32 %s448, 1
      %s450 = scalar_select %p447, %s448, %s449
      %p453 = pneg %p447
      %p454 = scmp.eq.s32.totalorder %s36, 1
      %p455 = por %p453, %p454
      %p456 = scmp.ne.s32.totalorder %s448, %s451
      %p457 = scmp.eq.s32.totalorder %s36, 0
      %p458 = por %p456, %p457
      %p459 = scmp.ne.s32.totalorder %s448, %s451
      %p460 = scmp.eq.s32.totalorder %s41, 1
      %p461 = por %p459, %p460
      %p462 = scmp.ne.s32.totalorder %s451, %s452
      %p463 = scmp.eq.s32.totalorder %s41, 0
      %p464 = por %p462, %p463
      %p465 = scmp.ne.s32.totalorder %s451, %s452
      %p466 = scmp.eq.s32.totalorder %s42, 1
      %p467 = por %p465, %p466
      %p469 = scmp.ne.s32.totalorder %s452, %s468
      %p470 = scmp.eq.s32.totalorder %s42, 0
      %p471 = por %p469, %p470
      %p472 = scmp.le.s32.totalorder 1, %s36
      %p473 = scmp.lt.s32.totalorder %s36, 3
      %p474 = pnand %p472, %p473
      %p475 = pneg %p474
      // Predicated region
      $region9: #{tpu_custom_call.1} parent=5 // pred_check
        _
      $region10: #{tpu_custom_call.1} parent=5 // pred_check_branch
        %477 = sbr.rel (%p474) target = $region12
      $region11: #{tpu_custom_call.1} parent=5 // pred_region
        %s478 = ssub.s32 %s36, 1
        // Predicated region
        $region13: #{tpu_custom_call.1} parent=11 // pred_check
          %p479 = pneg %p121
        $region14: #{tpu_custom_call.1} parent=11 // pred_check_branch
          %481 = sbr.rel (%p479) target = $region16
        $region15: #{tpu_custom_call.1} parent=11 // pred_region
          _
        $region16: #{tpu_custom_call.1} parent=11 // pred_fallthru
          _
        // Predicated region
        $region17: #{tpu_custom_call.1} parent=11 // pred_check
          %p482 = pneg %p142
        $region18: #{tpu_custom_call.1} parent=11 // pred_check_branch
          %484 = sbr.rel (%p482) target = $region20
        $region19: #{tpu_custom_call.1} parent=11 // pred_region
          _
        $region20: #{tpu_custom_call.1} parent=11 // pred_fallthru
          _
        // Predicated region
        $region21: #{tpu_custom_call.1} parent=11 // pred_check
          %p485 = pneg %p163
        $region22: #{tpu_custom_call.1} parent=11 // pred_check_branch
          %487 = sbr.rel (%p485) target = $region24
        $region23: #{tpu_custom_call.1} parent=11 // pred_region
          %489 = vsyncadd [#allocation9], 0
          %s490 = sshll.u32 %s4, 4
          %s491 = int_to_ptr.hbm [resolvable:$true] %s490
          %s492 = sshll.u32 [#allocation10], 4
          %s493 = int_to_ptr.vmem [resolvable:$true] %s492
          %498 = dma.hbm_to_vmem [thread:$0]  %s491, 256, %s493, [#allocation9], 64, 64, 4
        $region24: #{tpu_custom_call.1} parent=11 // pred_fallthru
          _
        // Predicated region
        $region25: #{tpu_custom_call.1} parent=11 // pred_check
          %p499 = pneg %p184
        $region26: #{tpu_custom_call.1} parent=11 // pred_check_branch
          %501 = sbr.rel (%p499) target = $region28
        $region27: #{tpu_custom_call.1} parent=11 // pred_region
          %503 = vsyncadd [#allocation12], 0
          %s504 = sshll.u32 %s5, 4
          %s505 = int_to_ptr.hbm [resolvable:$true] %s504
          %s506 = sshll.u32 [#allocation11], 4
          %s507 = int_to_ptr.vmem [resolvable:$true] %s506
          %512 = dma.hbm_to_vmem [thread:$0]  %s505, 256, %s507, [#allocation12], 64, 64, 4
        $region28: #{tpu_custom_call.1} parent=11 // pred_fallthru
          _
        // Predicated region
        $region29: #{tpu_custom_call.1} parent=11 // pred_check
          %p513 = pneg %p205
        $region30: #{tpu_custom_call.1} parent=11 // pred_check_branch
          %515 = sbr.rel (%p513) target = $region32
        $region31: #{tpu_custom_call.1} parent=11 // pred_region
          %517 = vsyncadd [#allocation12], 0
          %s518 = sshll.u32 %s6, 4
          %s519 = int_to_ptr.hbm [resolvable:$true] %s518
          %s520 = sshll.u32 [#allocation13], 4
          %s521 = int_to_ptr.vmem [resolvable:$true] %s520
          %526 = dma.hbm_to_vmem [thread:$0]  %s519, 256, %s521, [#allocation12], 64, 64, 4
        $region32: #{tpu_custom_call.1} parent=11 // pred_fallthru
          _
        // Predicated region
        $region33: #{tpu_custom_call.1} parent=11 // pred_check
          %p527 = pneg %p226
        $region34: #{tpu_custom_call.1} parent=11 // pred_check_branch
          %529 = sbr.rel (%p527) target = $region36
        $region35: #{tpu_custom_call.1} parent=11 // pred_region
          _
        $region36: #{tpu_custom_call.1} parent=11 // pred_fallthru
          _
        // Predicated region
        $region37: #{tpu_custom_call.1} parent=11 // pred_check
          %p530 = pneg %p247
        $region38: #{tpu_custom_call.1} parent=11 // pred_check_branch
          %532 = sbr.rel (%p530) target = $region40
        $region39: #{tpu_custom_call.1} parent=11 // pred_region
          _
        $region40: #{tpu_custom_call.1} parent=11 // pred_fallthru
          _
        // Predicated region
        $region41: #{tpu_custom_call.1} parent=11 // pred_check
          %p533 = pneg %p268
        $region42: #{tpu_custom_call.1} parent=11 // pred_check_branch
          %535 = sbr.rel (%p533) target = $region44
        $region43: #{tpu_custom_call.1} parent=11 // pred_region
          _
        $region44: #{tpu_custom_call.1} parent=11 // pred_fallthru
          _
        // Predicated region
        $region45: #{tpu_custom_call.1} parent=11 // pred_check
          %p536 = pneg %p289
        $region46: #{tpu_custom_call.1} parent=11 // pred_check_branch
          %538 = sbr.rel (%p536) target = $region48
        $region47: #{tpu_custom_call.1} parent=11 // pred_region
          %540 = vsyncadd [#allocation15], 0
          %s541 = sshll.u32 %s10, 4
          %s542 = int_to_ptr.hbm [resolvable:$true] %s541
          %s543 = sshll.u32 [#allocation14], 4
          %s544 = int_to_ptr.vmem [resolvable:$true] %s543
          %549 = dma.hbm_to_vmem [thread:$0]  %s542, 256, %s544, [#allocation15], 64, 64, 4
        $region48: #{tpu_custom_call.1} parent=11 // pred_fallthru
          _
        // Predicated region
        $region49: #{tpu_custom_call.1} parent=11 // pred_check
          %p550 = pneg %p310
        $region50: #{tpu_custom_call.1} parent=11 // pred_check_branch
          %552 = sbr.rel (%p550) target = $region52
        $region51: #{tpu_custom_call.1} parent=11 // pred_region
          _
        $region52: #{tpu_custom_call.1} parent=11 // pred_fallthru
          _
        // Predicated region
        $region53: #{tpu_custom_call.1} parent=11 // pred_check
          %p553 = pneg %p331
        $region54: #{tpu_custom_call.1} parent=11 // pred_check_branch
          %555 = sbr.rel (%p553) target = $region56
        $region55: #{tpu_custom_call.1} parent=11 // pred_region
          _
        $region56: #{tpu_custom_call.1} parent=11 // pred_fallthru
          _
        // Predicated region
        $region57: #{tpu_custom_call.1} parent=11 // pred_check
          %p556 = pneg %p352
        $region58: #{tpu_custom_call.1} parent=11 // pred_check_branch
          %558 = sbr.rel (%p556) target = $region60
        $region59: #{tpu_custom_call.1} parent=11 // pred_region
          _
        $region60: #{tpu_custom_call.1} parent=11 // pred_fallthru
          _
        // Predicated region
        $region61: #{tpu_custom_call.1} parent=11 // pred_check
          %p559 = pneg %p373
        $region62: #{tpu_custom_call.1} parent=11 // pred_check_branch
          %561 = sbr.rel (%p559) target = $region64
        $region63: #{tpu_custom_call.1} parent=11 // pred_region
          %563 = vsyncadd [#allocation15], 0
          %s564 = sshll.u32 %s14, 4
          %s565 = int_to_ptr.hbm [resolvable:$true] %s564
          %s566 = sshll.u32 [#allocation16], 4
          %s567 = int_to_ptr.vmem [resolvable:$true] %s566
          %572 = dma.hbm_to_vmem [thread:$0]  %s565, 256, %s567, [#allocation15], 64, 64, 4
        $region64: #{tpu_custom_call.1} parent=11 // pred_fallthru
          _
        // Predicated region
        $region65: #{tpu_custom_call.1} parent=11 // pred_check
          %p573 = pneg %p394
        $region66: #{tpu_custom_call.1} parent=11 // pred_check_branch
          %575 = sbr.rel (%p573) target = $region68
        $region67: #{tpu_custom_call.1} parent=11 // pred_region
          _
        $region68: #{tpu_custom_call.1} parent=11 // pred_fallthru
          _
        // Predicated region
        $region69: #{tpu_custom_call.1} parent=11 // pred_check
          %p576 = pneg %p415
        $region70: #{tpu_custom_call.1} parent=11 // pred_check_branch
          %578 = sbr.rel (%p576) target = $region72
        $region71: #{tpu_custom_call.1} parent=11 // pred_region
          %580 = vsyncadd [#allocation18], 0
          %s581 = sshll.u32 %s16, 4
          %s582 = int_to_ptr.hbm [resolvable:$true] %s581
          %s583 = sshll.u32 [#allocation17], 4
          %s584 = int_to_ptr.vmem [resolvable:$true] %s583
          %589 = dma.hbm_to_vmem [thread:$0]  %s582, 256, %s584, [#allocation18], 64, 64, 4
        $region72: #{tpu_custom_call.1} parent=11 // pred_fallthru
          _
        // Predicated region
        $region73: #{tpu_custom_call.1} parent=11 // pred_check
          %p590 = pneg %p436
        $region74: #{tpu_custom_call.1} parent=11 // pred_check_branch
          %592 = sbr.rel (%p590) target = $region76
        $region75: #{tpu_custom_call.1} parent=11 // pred_region
          _
        $region76: #{tpu_custom_call.1} parent=11 // pred_fallthru
          _
      $region12: #{tpu_custom_call.1} parent=5 // pred_fallthru
        _
      %p593 = scmp.lt.s32.totalorder %s36, 2
      // Predicated region
      $region77: #{tpu_custom_call.1} parent=5 // pred_check
        %p594 = pneg %p593
      $region78: #{tpu_custom_call.1} parent=5 // pred_check_branch
        %596 = sbr.rel (%p594) target = $region80
      $region79: #{tpu_custom_call.1} parent=5 // pred_region
        // Predicated region
        $region81: #{tpu_custom_call.1} parent=79 // pred_check
          %p597 = pneg %p68
        $region82: #{tpu_custom_call.1} parent=79 // pred_check_branch
          %599 = sbr.rel (%p597) target = $region84
        $region83: #{tpu_custom_call.1} parent=79 // pred_region
          %s600 = sand.u32 %s58, 1
          %s601 = scalar_lea.sflag [#allocation6], %s600
          %s602 = sand.u32 %s58, 1
          %s603 = smul.addr %s602, 8
          %s604 = scalar_lea.vmem [#allocation5], %s603
          %606 = vsyncadd %s601, 0
          %s607 = smul.addr %s43, 8
          %s608 = scalar_lea.hbm %s0, %s607
          %s610 = sshll.u32 %s608, 4
          %s611 = int_to_ptr.hbm [resolvable:$true] %s610
          %s612 = sshll.u32 %s604, 4
          %s613 = int_to_ptr.vmem [resolvable:$true] %s612
          %615 = dma.hbm_to_vmem [thread:$0]  %s611, 128, %s613, %s601
        $region84: #{tpu_custom_call.1} parent=79 // pred_fallthru
          _
        // Predicated region
        $region85: #{tpu_custom_call.1} parent=79 // pred_check
          %p616 = pneg %p94
        $region86: #{tpu_custom_call.1} parent=79 // pred_check_branch
          %618 = sbr.rel (%p616) target = $region88
        $region87: #{tpu_custom_call.1} parent=79 // pred_region
          %s619 = sand.u32 %s36, 1
          %s620 = scalar_lea.sflag [#allocation9], %s619
          %s621 = sand.u32 %s84, 1
          %s622 = scalar_lea.vmem [#allocation8], %s621
          %624 = vsyncadd %s620, 0
          %s625 = scalar_lea.hbm %s1, %s43
          %s627 = sshll.u32 %s625, 4
          %s628 = int_to_ptr.hbm [resolvable:$true] %s627
          %s629 = sshll.u32 %s622, 4
          %s630 = int_to_ptr.vmem [resolvable:$true] %s629
          %632 = dma.hbm_to_vmem [thread:$0]  %s628, 16, %s630, %s620
        $region88: #{tpu_custom_call.1} parent=79 // pred_fallthru
          _
      $region80: #{tpu_custom_call.1} parent=5 // pred_fallthru
        _
      %p633 = scmp.le.s32.totalorder 1, %s36
      %p634 = scmp.lt.s32.totalorder %s36, 3
      %p635 = pnand %p633, %p634
      %p636 = pneg %p635
      // Predicated region
      $region89: #{tpu_custom_call.1} parent=5 // pred_check
        _
      $region90: #{tpu_custom_call.1} parent=5 // pred_check_branch
        %638 = sbr.rel (%p635) target = $region92
      $region91: #{tpu_custom_call.1} parent=5 // pred_region
        %s639 = ssub.s32 %s36, 1
        %s640 = sand.u32 %s61, 1
        %s641 = scalar_lea.sflag [#allocation6], %s640
        %s642 = sand.u32 %s61, 1
        %s643 = smul.addr %s642, 8
        %s644 = scalar_lea.vmem [#allocation5], %s643
        // Predicated region
        $region93: #{tpu_custom_call.1} parent=91 // pred_check
          %p645 = pneg %p74
        $region94: #{tpu_custom_call.1} parent=91 // pred_check_branch
          %647 = sbr.rel (%p645) target = $region96
        $region95: #{tpu_custom_call.1} parent=91 // pred_region
          %649 = dma.done %s641, 128
        $region96: #{tpu_custom_call.1} parent=91 // pred_fallthru
          _
        %s650 = sand.u32 %s41, 1
        %s651 = scalar_lea.sflag [#allocation9], %s650
        %s652 = sand.u32 %s87, 1
        %s653 = scalar_lea.vmem [#allocation8], %s652
        // Predicated region
        $region97: #{tpu_custom_call.1} parent=91 // pred_check
          %p654 = pneg %p100
        $region98: #{tpu_custom_call.1} parent=91 // pred_check_branch
          %656 = sbr.rel (%p654) target = $region100
        $region99: #{tpu_custom_call.1} parent=91 // pred_region
          %658 = dma.done %s651, 16
        $region100: #{tpu_custom_call.1} parent=91 // pred_fallthru
          _
        // Predicated region
        $region101: #{tpu_custom_call.1} parent=91 // pred_check
          %p659 = pneg %p163
        $region102: #{tpu_custom_call.1} parent=91 // pred_check_branch
          %661 = sbr.rel (%p659) target = $region104
        $region103: #{tpu_custom_call.1} parent=91 // pred_region
          %663 = dma.done [#allocation9], 256
        $region104: #{tpu_custom_call.1} parent=91 // pred_fallthru
          _
        // Predicated region
        $region105: #{tpu_custom_call.1} parent=91 // pred_check
          %p664 = pneg %p184
        $region106: #{tpu_custom_call.1} parent=91 // pred_check_branch
          %666 = sbr.rel (%p664) target = $region108
        $region107: #{tpu_custom_call.1} parent=91 // pred_region
          %668 = dma.done [#allocation12], 256
        $region108: #{tpu_custom_call.1} parent=91 // pred_fallthru
          _
        // Predicated region
        $region109: #{tpu_custom_call.1} parent=91 // pred_check
          %p669 = pneg %p205
        $region110: #{tpu_custom_call.1} parent=91 // pred_check_branch
          %671 = sbr.rel (%p669) target = $region112
        $region111: #{tpu_custom_call.1} parent=91 // pred_region
          %673 = dma.done [#allocation12], 256
        $region112: #{tpu_custom_call.1} parent=91 // pred_fallthru
          _
        // Predicated region
        $region113: #{tpu_custom_call.1} parent=91 // pred_check
          %p674 = pneg %p289
        $region114: #{tpu_custom_call.1} parent=91 // pred_check_branch
          %676 = sbr.rel (%p674) target = $region116
        $region115: #{tpu_custom_call.1} parent=91 // pred_region
          %678 = dma.done [#allocation15], 256
        $region116: #{tpu_custom_call.1} parent=91 // pred_fallthru
          _
        // Predicated region
        $region117: #{tpu_custom_call.1} parent=91 // pred_check
          %p679 = pneg %p373
        $region118: #{tpu_custom_call.1} parent=91 // pred_check_branch
          %681 = sbr.rel (%p679) target = $region120
        $region119: #{tpu_custom_call.1} parent=91 // pred_region
          %683 = dma.done [#allocation15], 256
        $region120: #{tpu_custom_call.1} parent=91 // pred_fallthru
          _
        // Predicated region
        $region121: #{tpu_custom_call.1} parent=91 // pred_check
          %p684 = pneg %p415
        $region122: #{tpu_custom_call.1} parent=91 // pred_check_branch
          %686 = sbr.rel (%p684) target = $region124
        $region123: #{tpu_custom_call.1} parent=91 // pred_region
          %688 = dma.done [#allocation18], 256
        $region124: #{tpu_custom_call.1} parent=91 // pred_fallthru
          _
        %s689 = sand.u32 %s61, 1
        %s690 = scalar_lea.sflag [#allocation6], %s689
        %s691 = sand.u32 %s61, 1
        %s692 = smul.addr %s691, 8
        %s693 = scalar_lea.vmem [#allocation5], %s692
        %p694 = pneg %p74
        %p695 = pneg %p71
        %s696 = sand.u32 %s41, 1
        %s697 = scalar_lea.sflag [#allocation9], %s696
        %s698 = sand.u32 %s87, 1
        %s699 = scalar_lea.vmem [#allocation8], %s698
        %p700 = pneg %p100
        %p701 = pneg %p97
        %p702 = pneg %p121
        %p703 = pneg %p118
        %p704 = pneg %p142
        %p705 = pneg %p139
        %p706 = pneg %p163
        %p707 = pneg %p160
        %p708 = pneg %p184
        %p709 = pneg %p181
        %p710 = pneg %p205
        %p711 = pneg %p202
        %p712 = pneg %p226
        %p713 = pneg %p223
        %p714 = pneg %p247
        %p715 = pneg %p244
        %p716 = pneg %p268
        %p717 = pneg %p265
        %p718 = pneg %p289
        %p719 = pneg %p286
        %p720 = pneg %p310
        %p721 = pneg %p307
        %p722 = pneg %p331
        %p723 = pneg %p328
        %p724 = pneg %p352
        %p725 = pneg %p349
        %p726 = pneg %p373
        %p727 = pneg %p370
        %p728 = pneg %p394
        %p729 = pneg %p391
        %p730 = pneg %p415
        %p731 = pneg %p412
        %p732 = pneg %p436
        %p733 = pneg %p433
        %p734 = pneg %p464
        %p735 = pneg %p461
        %s736 = sand.u32 %s451, 1
        %s737 = scalar_lea.sflag [#allocation7], %s736
        %s738 = sand.u32 %s451, 1
        %s739 = smul.addr %s738, 8
        %s740 = scalar_lea.vmem [#allocation19], %s739
        %v742 = vld [vmem:[%s644] sm:$0xff]
        %v743 = vld [vmem:[%s2] sm:$0x1]
        %v744 = vld [vmem:[%s3] sm:$0x1]
        %vm745 = vcmask 261120
        %v746 = vsel %vm745, %v742, 0.0
        %747 = vadd.xlane.f32.xlu0 %v746
        %v748 = vpop.xlane.xlu0 %747
        %v749 = vrcp.pop 32.0
        %v750 = vmul.f32 32.0, %v749
        %v751 = vsub.f32 1.0, %v750
        %v752 = vmul.f32 %v749, %v751
        %v753 = vadd.f32 %v749, %v752
        %vm754 = vweird.f32 %v749
        %v755 = vsel %vm754, %v749, %v753
        %v756 = vmul.f32 %v748, %v755
        %v757 = vmul.f32 %v742, %v742
        %v758 = vsel %vm745, %v757, 0.0
        %759 = vadd.xlane.f32.xlu0 %v758
        %v760 = vpop.xlane.xlu0 %759
        %v761 = vmul.f32 %v760, %v755
        %v762 = vmul.f32 %v756, %v756
        %v763 = vsub.f32 %v761, %v762
        %v764 = vmax.f32 %v763, 0.0
        %v765 = vsub.f32 %v742, %v756
        %v766 = vadd.f32 %v764, 1e-05
        %v767 = vrsqrt.pop %v766
        %v768 = vmul.f32 %v767, %v766
        %v769 = vmul.f32 %v768, %v767
        %v770 = vmul.f32 0.5, %v769
        %v771 = vsub.f32 1.5, %v770
        %v772 = vmul.f32 %v767, %v771
        %vm773 = vweird.f32 %v766
        %vm774 = vweird.f32 %v767
        %vm775 = vmor %vm773, %vm774
        %v776 = vsel %vm775, %v767, %v772
        %v777 = vmul.f32 %v765, %v776
        %v779 = vperm.slane %v743, 0
        %v781 = vmul.f32 %v777, %v779
        %v783 = vperm.slane %v744, 0
        %v785 = vadd.f32 %v781, %v783
        %v786 = vpack.c.bf16 %v785, %v785
        %v787 = vld [vmem:[#allocation10] sm:$0xf]
        %v788 = vld [vmem:[#allocation10 + $0x4] sm:$0xf]
        %v789 = vld [vmem:[#allocation10 + $0x8] sm:$0xf]
        %v790 = vld [vmem:[#allocation10 + $0xc] sm:$0xf]
        %v791 = vld [vmem:[%s7] sm:$0x1]
        %v793 = vperm.slane %v791, 0
        %v799 = vunpack.c.l.b16 %v787
        %v800 = vunpack.c.l.b16 %v788
        %v801 = vunpack.c.l.b16 %v789
        %v802 = vunpack.c.l.b16 %v790
        %v803 = vpack.c.b16 %v800, %v799
        %v804 = vpack.c.b16 %v802, %v801
        %v808 = vsel %vm745, %v786, 0
        %810 = vmatpush.bf16.msra.mxu0 0
        %811 = vmatpush.bf16.msra.mxu0 0
        %812 = vmatpush.bf16.msra.mxu0 0
        %813 = vmatpush.bf16.msra.mxu0 0
        %814 = vmatpush.bf16.msra.mxu0 0
        %815 = vmatpush.bf16.msra.mxu0 0
        %816 = vmatpush.bf16.msra.mxu0 %v804
        %817 = vmatpush.bf16.msra.mxu0 %v803
        %818 = vmatmul.bf16.gmra.mxu0 %v808
        %v819 = vpop.f32.mrf.mxu0
        %v820 = vadd.f32 %v793, %v819
        %v821 = vpop.f32.mrf.mxu0
        %822 = vdwg.mxu0
        %v823 = vld [vmem:[#allocation11] sm:$0xf]
        %v824 = vld [vmem:[#allocation11 + $0x4] sm:$0xf]
        %v825 = vld [vmem:[#allocation11 + $0x8] sm:$0xf]
        %v826 = vld [vmem:[#allocation11 + $0xc] sm:$0xf]
        %v827 = vld [vmem:[%s8] sm:$0x1]
        %v829 = vperm.slane %v827, 0
        %v835 = vunpack.c.l.b16 %v823
        %v836 = vunpack.c.l.b16 %v824
        %v837 = vunpack.c.l.b16 %v825
        %v838 = vunpack.c.l.b16 %v826
        %v839 = vpack.c.b16 %v836, %v835
        %v840 = vpack.c.b16 %v838, %v837
        %843 = vmatpush.bf16.msra.mxu0 0
        %844 = vmatpush.bf16.msra.mxu0 0
        %845 = vmatpush.bf16.msra.mxu0 0
        %846 = vmatpush.bf16.msra.mxu0 0
        %847 = vmatpush.bf16.msra.mxu0 0
        %848 = vmatpush.bf16.msra.mxu0 0
        %849 = vmatpush.bf16.msra.mxu0 %v840
        %850 = vmatpush.bf16.msra.mxu0 %v839
        %851 = vmatmul.bf16.gmra.mxu0 %v808
        %v852 = vpop.f32.mrf.mxu0
        %v853 = vadd.f32 %v829, %v852
        %v854 = vpop.f32.mrf.mxu0
        %855 = vdwg.mxu0
        %v856 = vld [vmem:[#allocation13] sm:$0xf]
        %v857 = vld [vmem:[#allocation13 + $0x4] sm:$0xf]
        %v858 = vld [vmem:[#allocation13 + $0x8] sm:$0xf]
        %v859 = vld [vmem:[#allocation13 + $0xc] sm:$0xf]
        %v860 = vld [vmem:[%s9] sm:$0x1]
        %v862 = vperm.slane %v860, 0
        %v868 = vunpack.c.l.b16 %v856
        %v869 = vunpack.c.l.b16 %v857
        %v870 = vunpack.c.l.b16 %v858
        %v871 = vunpack.c.l.b16 %v859
        %v872 = vpack.c.b16 %v869, %v868
        %v873 = vpack.c.b16 %v871, %v870
        %876 = vmatpush.bf16.msra.mxu0 0
        %877 = vmatpush.bf16.msra.mxu0 0
        %878 = vmatpush.bf16.msra.mxu0 0
        %879 = vmatpush.bf16.msra.mxu0 0
        %880 = vmatpush.bf16.msra.mxu0 0
        %881 = vmatpush.bf16.msra.mxu0 0
        %882 = vmatpush.bf16.msra.mxu0 %v873
        %883 = vmatpush.bf16.msra.mxu0 %v872
        %884 = vmatmul.bf16.gmra.mxu0 %v808
        %v885 = vpop.f32.mrf.mxu0
        %v886 = vadd.f32 %v862, %v885
        %v887 = vpop.f32.mrf.mxu0
        %888 = vdwg.mxu0
        %v889 = vpack.c.bf16 %v820, %v820
        %vm890 = vcmask 60416
        %891 = vst.msk [vmem:[#allocation2] sm:$0xf] %vm890, %v889
        %v892 = vpack.c.bf16 %v853, %v853
        %893 = vst.msk [vmem:[#allocation3] sm:$0xf] %vm890, %v892
        %v894 = vpack.c.bf16 %v886, %v886
        %895 = vst.msk [vmem:[#allocation4] sm:$0xf] %vm890, %v894
        %897 = vrot.lane.b32.xlu0 %v889, 120
        %v898 = vpop.permute.xlu0 %897
        %s900 = scalar_lea.vmem [#allocation2], 4
        %901 = vst.msk [vmem:[%s900] sm:$0xf] %vm890, %v898
        %903 = vrot.lane.b32.xlu0 %v892, 120
        %v904 = vpop.permute.xlu0 %903
        %s906 = scalar_lea.vmem [#allocation3], 4
        %907 = vst.msk [vmem:[%s906] sm:$0xf] %vm890, %v904
        %909 = vrot.lane.b32.xlu0 %v894, 120
        %v910 = vpop.permute.xlu0 %909
        %s912 = scalar_lea.vmem [#allocation4], 4
        %913 = vst.msk [vmem:[%s912] sm:$0xf] %vm890, %v910
        %914 = vrot.lane.b32.xlu0 %v889, 112
        %v915 = vpop.permute.xlu0 %914
        %s917 = scalar_lea.vmem [#allocation2], 8
        %918 = vst.msk [vmem:[%s917] sm:$0xf] %vm890, %v915
        %919 = vrot.lane.b32.xlu0 %v892, 112
        %v920 = vpop.permute.xlu0 %919
        %s922 = scalar_lea.vmem [#allocation3], 8
        %923 = vst.msk [vmem:[%s922] sm:$0xf] %vm890, %v920
        %924 = vrot.lane.b32.xlu0 %v894, 112
        %v925 = vpop.permute.xlu0 %924
        %s927 = scalar_lea.vmem [#allocation4], 8
        %928 = vst.msk [vmem:[%s927] sm:$0xf] %vm890, %v925
        %929 = vrot.lane.b32.xlu0 %v889, 104
        %v930 = vpop.permute.xlu0 %929
        %s932 = scalar_lea.vmem [#allocation2], 12
        %933 = vst.msk [vmem:[%s932] sm:$0xf] %vm890, %v930
        %934 = vrot.lane.b32.xlu0 %v892, 104
        %v935 = vpop.permute.xlu0 %934
        %s937 = scalar_lea.vmem [#allocation3], 12
        %938 = vst.msk [vmem:[%s937] sm:$0xf] %vm890, %v935
        %939 = vrot.lane.b32.xlu0 %v894, 104
        %v940 = vpop.permute.xlu0 %939
        %s942 = scalar_lea.vmem [#allocation4], 12
        %943 = vst.msk [vmem:[%s942] sm:$0xf] %vm890, %v940
        %v944 = vld [vmem:[#allocation2] sm:$0xf]
        %v945 = vld [vmem:[#allocation2 + $0x4] sm:$0xf]
        %v946 = vld [vmem:[#allocation2 + $0x8] sm:$0xf]
        %v947 = vld [vmem:[#allocation2 + $0xc] sm:$0xf]
        %v948 = vld [vmem:[%s644] sm:$0xff]
        %v949 = vld [vmem:[#allocation3] sm:$0xf]
        %v950 = vld [vmem:[#allocation3 + $0x4] sm:$0xf]
        %v951 = vld [vmem:[#allocation3 + $0x8] sm:$0xf]
        %v952 = vld [vmem:[#allocation3 + $0xc] sm:$0xf]
        %v953 = vld [vmem:[#allocation4] sm:$0xf]
        %v954 = vld [vmem:[#allocation4 + $0x4] sm:$0xf]
        %v955 = vld [vmem:[#allocation4 + $0x8] sm:$0xf]
        %v956 = vld [vmem:[#allocation4 + $0xc] sm:$0xf]
        %v957 = vld [vmem:[%s653] sm:$0x1]
        %v959 = vperm.slane %v957, 0
        %vm961 = vcmask 64512
        %v963 = vsel %vm961, %v944, 0
        %v966 = vsel %vm961, %v949, 0
        %968 = vmatpush.bf16.xpose.msra.mxu0 0
        %969 = vmatpush.bf16.xpose.msra.mxu0 0
        %970 = vmatpush.bf16.xpose.msra.mxu0 0
        %971 = vmatpush.bf16.xpose.msra.mxu0 0
        %972 = vmatpush.bf16.xpose.msra.mxu0 0
        %973 = vmatpush.bf16.xpose.msra.mxu0 0
        %974 = vmatpush.bf16.xpose.msra.mxu0 0
        %975 = vmatpush.bf16.xpose.msra.mxu0 %v966
        %976 = vmatmul.bf16.gmra.mxu0 %v963
        %v977 = vpop.f32.mrf.mxu0
        %v978 = vadd.f32 %v959, %v977
        %v979 = vpop.f32.mrf.mxu0
        %980 = vdwg.mxu0
        %v982 = vsel %vm961, %v945, 0
        %v985 = vsel %vm961, %v950, 0
        %987 = vmatpush.bf16.xpose.msra.mxu0 0
        %988 = vmatpush.bf16.xpose.msra.mxu0 0
        %989 = vmatpush.bf16.xpose.msra.mxu0 0
        %990 = vmatpush.bf16.xpose.msra.mxu0 0
        %991 = vmatpush.bf16.xpose.msra.mxu0 0
        %992 = vmatpush.bf16.xpose.msra.mxu0 0
        %993 = vmatpush.bf16.xpose.msra.mxu0 0
        %994 = vmatpush.bf16.xpose.msra.mxu0 %v985
        %995 = vmatmul.bf16.gmra.mxu0 %v982
        %v996 = vpop.f32.mrf.mxu0
        %v997 = vadd.f32 %v959, %v996
        %v998 = vpop.f32.mrf.mxu0
        %999 = vdwg.mxu0
        %v1001 = vsel %vm961, %v946, 0
        %v1004 = vsel %vm961, %v951, 0
        %1006 = vmatpush.bf16.xpose.msra.mxu0 0
        %1007 = vmatpush.bf16.xpose.msra.mxu0 0
        %1008 = vmatpush.bf16.xpose.msra.mxu0 0
        %1009 = vmatpush.bf16.xpose.msra.mxu0 0
        %1010 = vmatpush.bf16.xpose.msra.mxu0 0
        %1011 = vmatpush.bf16.xpose.msra.mxu0 0
        %1012 = vmatpush.bf16.xpose.msra.mxu0 0
        %1013 = vmatpush.bf16.xpose.msra.mxu0 %v1004
        %1014 = vmatmul.bf16.gmra.mxu0 %v1001
        %v1015 = vpop.f32.mrf.mxu0
        %v1016 = vadd.f32 %v959, %v1015
        %v1017 = vpop.f32.mrf.mxu0
        %1018 = vdwg.mxu0
        %v1020 = vsel %vm961, %v947, 0
        %v1023 = vsel %vm961, %v952, 0
        %1025 = vmatpush.bf16.xpose.msra.mxu0 0
        %1026 = vmatpush.bf16.xpose.msra.mxu0 0
        %1027 = vmatpush.bf16.xpose.msra.mxu0 0
        %1028 = vmatpush.bf16.xpose.msra.mxu0 0
        %1029 = vmatpush.bf16.xpose.msra.mxu0 0
        %1030 = vmatpush.bf16.xpose.msra.mxu0 0
        %1031 = vmatpush.bf16.xpose.msra.mxu0 0
        %1032 = vmatpush.bf16.xpose.msra.mxu0 %v1023
        %1033 = vmatmul.bf16.gmra.mxu0 %v1020
        %v1034 = vpop.f32.mrf.mxu0
        %v1035 = vadd.f32 %v959, %v1034
        %v1036 = vpop.f32.mrf.mxu0
        %1037 = vdwg.mxu0
        %v1038 = vsel %vm961, %v978, -inf
        %1039 = vmax.xlane.f32.xlu0 %v1038
        %v1040 = vpop.xlane.xlu0 %1039
        %v1041 = vsel %vm961, %v997, -inf
        %1042 = vmax.xlane.f32.xlu0 %v1041
        %v1043 = vpop.xlane.xlu0 %1042
        %v1044 = vsel %vm961, %v1016, -inf
        %1045 = vmax.xlane.f32.xlu0 %v1044
        %v1046 = vpop.xlane.xlu0 %1045
        %v1047 = vsel %vm961, %v1035, -inf
        %1048 = vmax.xlane.f32.xlu0 %v1047
        %v1049 = vpop.xlane.xlu0 %1048
        %v1050 = vmax.f32 %v1040, -1e+30
        %v1051 = vmax.f32 %v1043, -1e+30
        %v1052 = vmax.f32 %v1046, -1e+30
        %v1053 = vmax.f32 %v1049, -1e+30
        %v1054 = vsub.f32 -1e+30, %v1050
        %v1055 = vsub.f32 -1e+30, %v1051
        %v1056 = vsub.f32 -1e+30, %v1052
        %v1057 = vsub.f32 -1e+30, %v1053
        %v1058 = vmul.f32 %v1054, 1.442695
        %v1059 = vpow.pop %v1058
        %v1060 = vmul.f32 %v1055, 1.442695
        %v1061 = vpow.pop %v1060
        %v1062 = vmul.f32 %v1056, 1.442695
        %v1063 = vpow.pop %v1062
        %v1064 = vmul.f32 %v1057, 1.442695
        %v1065 = vpow.pop %v1064
        %v1066 = vsub.f32 %v978, %v1050
        %v1067 = vsub.f32 %v997, %v1051
        %v1068 = vsub.f32 %v1016, %v1052
        %v1069 = vsub.f32 %v1035, %v1053
        %v1070 = vmul.f32 %v1066, 1.442695
        %v1071 = vpow.pop %v1070
        %v1072 = vmul.f32 %v1067, 1.442695
        %v1073 = vpow.pop %v1072
        %v1074 = vmul.f32 %v1068, 1.442695
        %v1075 = vpow.pop %v1074
        %v1076 = vmul.f32 %v1069, 1.442695
        %v1077 = vpow.pop %v1076
        %v1078 = vmul.f32 %v1059, 0.0
        %v1079 = vmul.f32 %v1061, 0.0
        %v1080 = vmul.f32 %v1063, 0.0
        %v1081 = vmul.f32 %v1065, 0.0
        %v1082 = vsel %vm961, %v1071, 0.0
        %1083 = vadd.xlane.f32.xlu0 %v1082
        %v1084 = vpop.xlane.xlu0 %1083
        %v1085 = vsel %vm961, %v1073, 0.0
        %1086 = vadd.xlane.f32.xlu0 %v1085
        %v1087 = vpop.xlane.xlu0 %1086
        %v1088 = vsel %vm961, %v1075, 0.0
        %1089 = vadd.xlane.f32.xlu0 %v1088
        %v1090 = vpop.xlane.xlu0 %1089
        %v1091 = vsel %vm961, %v1077, 0.0
        %1092 = vadd.xlane.f32.xlu0 %v1091
        %v1093 = vpop.xlane.xlu0 %1092
        %v1094 = vadd.f32 %v1078, %v1084
        %v1095 = vadd.f32 %v1079, %v1087
        %v1096 = vadd.f32 %v1080, %v1090
        %v1097 = vadd.f32 %v1081, %v1093
        %v1098 = vpack.c.bf16 %v1071, %v1071
        %v1099 = vpack.c.bf16 %v1073, %v1073
        %v1100 = vpack.c.bf16 %v1075, %v1075
        %v1101 = vpack.c.bf16 %v1077, %v1077
        %v1103 = vsel %vm961, %v1098, 0
        %vm1105 = vcmask 1043456
        %v1107 = vsel %vm1105, %v953, 0
        %1109 = vmatpush.bf16.msra.mxu0 0
        %1110 = vmatpush.bf16.msra.mxu0 0
        %1111 = vmatpush.bf16.msra.mxu0 0
        %1112 = vmatpush.bf16.msra.mxu0 0
        %1113 = vmatpush.bf16.msra.mxu0 0
        %1114 = vmatpush.bf16.msra.mxu0 0
        %1115 = vmatpush.bf16.msra.mxu0 0
        %1116 = vmatpush.bf16.msra.mxu0 %v1107
        %1117 = vmatmul.bf16.gmra.mxu0 %v1103
        %v1118 = vpop.f32.mrf.mxu0
        %v1119 = vadd.f32 0.0, %v1118
        %v1120 = vpop.f32.mrf.mxu0
        %1121 = vdwg.mxu0
        %v1123 = vsel %vm961, %v1099, 0
        %v1126 = vsel %vm1105, %v954, 0
        %1128 = vmatpush.bf16.msra.mxu0 0
        %1129 = vmatpush.bf16.msra.mxu0 0
        %1130 = vmatpush.bf16.msra.mxu0 0
        %1131 = vmatpush.bf16.msra.mxu0 0
        %1132 = vmatpush.bf16.msra.mxu0 0
        %1133 = vmatpush.bf16.msra.mxu0 0
        %1134 = vmatpush.bf16.msra.mxu0 0
        %1135 = vmatpush.bf16.msra.mxu0 %v1126
        %1136 = vmatmul.bf16.gmra.mxu0 %v1123
        %v1137 = vpop.f32.mrf.mxu0
        %v1138 = vadd.f32 0.0, %v1137
        %v1139 = vpop.f32.mrf.mxu0
        %1140 = vdwg.mxu0
        %v1142 = vsel %vm961, %v1100, 0
        %v1145 = vsel %vm1105, %v955, 0
        %1147 = vmatpush.bf16.msra.mxu0 0
        %1148 = vmatpush.bf16.msra.mxu0 0
        %1149 = vmatpush.bf16.msra.mxu0 0
        %1150 = vmatpush.bf16.msra.mxu0 0
        %1151 = vmatpush.bf16.msra.mxu0 0
        %1152 = vmatpush.bf16.msra.mxu0 0
        %1153 = vmatpush.bf16.msra.mxu0 0
        %1154 = vmatpush.bf16.msra.mxu0 %v1145
        %1155 = vmatmul.bf16.gmra.mxu0 %v1142
        %v1156 = vpop.f32.mrf.mxu0
        %v1157 = vadd.f32 0.0, %v1156
        %v1158 = vpop.f32.mrf.mxu0
        %1159 = vdwg.mxu0
        %v1161 = vsel %vm961, %v1101, 0
        %v1164 = vsel %vm1105, %v956, 0
        %1166 = vmatpush.bf16.msra.mxu0 0
        %1167 = vmatpush.bf16.msra.mxu0 0
        %1168 = vmatpush.bf16.msra.mxu0 0
        %1169 = vmatpush.bf16.msra.mxu0 0
        %1170 = vmatpush.bf16.msra.mxu0 0
        %1171 = vmatpush.bf16.msra.mxu0 0
        %1172 = vmatpush.bf16.msra.mxu0 0
        %1173 = vmatpush.bf16.msra.mxu0 %v1164
        %1174 = vmatmul.bf16.gmra.mxu0 %v1161
        %v1175 = vpop.f32.mrf.mxu0
        %v1176 = vadd.f32 0.0, %v1175
        %v1177 = vpop.f32.mrf.mxu0
        %1178 = vdwg.mxu0
        %v1179 = vadd.f32 %v1078, %v1119
        %v1180 = vadd.f32 %v1079, %v1138
        %v1181 = vadd.f32 %v1080, %v1157
        %v1182 = vadd.f32 %v1081, %v1176
        %v1183 = vrcp.pop %v1094
        %v1184 = vmul.f32 %v1094, %v1183
        %v1185 = vsub.f32 1.0, %v1184
        %v1186 = vmul.f32 %v1183, %v1185
        %v1187 = vadd.f32 %v1183, %v1186
        %vm1188 = vweird.f32 %v1094
        %vm1189 = vweird.f32 %v1183
        %vm1190 = vmor %vm1188, %vm1189
        %v1191 = vsel %vm1190, %v1183, %v1187
        %v1192 = vand.u32 2147483647, %v1094
        %vm1193 = vcmp.eq.f32.partialorder %v1192, 8.507059e+37
        %v1194 = vand.u32 %v1094, 2147483648
        %v1195 = vor.u32 1.1754944e-38, %v1194
        %v1196 = vsel %vm1193, %v1195, %v1191
        %v1197 = vmul.f32 %v1179, %v1196
        %v1198 = vrcp.pop %v1095
        %v1199 = vmul.f32 %v1095, %v1198
        %v1200 = vsub.f32 1.0, %v1199
        %v1201 = vmul.f32 %v1198, %v1200
        %v1202 = vadd.f32 %v1198, %v1201
        %vm1203 = vweird.f32 %v1095
        %vm1204 = vweird.f32 %v1198
        %vm1205 = vmor %vm1203, %vm1204
        %v1206 = vsel %vm1205, %v1198, %v1202
        %v1207 = vand.u32 2147483647, %v1095
        %vm1208 = vcmp.eq.f32.partialorder %v1207, 8.507059e+37
        %v1209 = vand.u32 %v1095, 2147483648
        %v1210 = vor.u32 1.1754944e-38, %v1209
        %v1211 = vsel %vm1208, %v1210, %v1206
        %v1212 = vmul.f32 %v1180, %v1211
        %v1213 = vrcp.pop %v1096
        %v1214 = vmul.f32 %v1096, %v1213
        %v1215 = vsub.f32 1.0, %v1214
        %v1216 = vmul.f32 %v1213, %v1215
        %v1217 = vadd.f32 %v1213, %v1216
        %vm1218 = vweird.f32 %v1096
        %vm1219 = vweird.f32 %v1213
        %vm1220 = vmor %vm1218, %vm1219
        %v1221 = vsel %vm1220, %v1213, %v1217
        %v1222 = vand.u32 2147483647, %v1096
        %vm1223 = vcmp.eq.f32.partialorder %v1222, 8.507059e+37
        %v1224 = vand.u32 %v1096, 2147483648
        %v1225 = vor.u32 1.1754944e-38, %v1224
        %v1226 = vsel %vm1223, %v1225, %v1221
        %v1227 = vmul.f32 %v1181, %v1226
        %v1228 = vrcp.pop %v1097
        %v1229 = vmul.f32 %v1097, %v1228
        %v1230 = vsub.f32 1.0, %v1229
        %v1231 = vmul.f32 %v1228, %v1230
        %v1232 = vadd.f32 %v1228, %v1231
        %vm1233 = vweird.f32 %v1097
        %vm1234 = vweird.f32 %v1228
        %vm1235 = vmor %vm1233, %vm1234
        %v1236 = vsel %vm1235, %v1228, %v1232
        %v1237 = vand.u32 2147483647, %v1097
        %vm1238 = vcmp.eq.f32.partialorder %v1237, 8.507059e+37
        %v1239 = vand.u32 %v1097, 2147483648
        %v1240 = vor.u32 1.1754944e-38, %v1239
        %v1241 = vsel %vm1238, %v1240, %v1236
        %v1242 = vmul.f32 %v1182, %v1241
        %1244 = vrot.lane.b32.xlu0 %v1212, 8
        %v1245 = vpop.permute.xlu0 %1244
        %1248 = vrot.lane.b32.xlu0 %v1227, 16
        %v1249 = vpop.permute.xlu0 %1248
        %1252 = vrot.lane.b32.xlu0 %v1242, 24
        %v1253 = vpop.permute.xlu0 %1252
        %v1255 = vsel %vm961, %v1197, %v1245
        %vm1256 = vcmask 130048
        %v1257 = vsel %vm1256, %v1255, %v1249
        %vm1258 = vcmask 195584
        %v1259 = vsel %vm1258, %v1257, %v1253
        %v1260 = vpack.c.bf16 %v1259, %v1259
        %v1261 = vld [vmem:[#allocation14] sm:$0xf]
        %v1262 = vld [vmem:[#allocation14 + $0x4] sm:$0xf]
        %v1263 = vld [vmem:[#allocation14 + $0x8] sm:$0xf]
        %v1264 = vld [vmem:[#allocation14 + $0xc] sm:$0xf]
        %v1265 = vld [vmem:[%s11] sm:$0x1]
        %v1267 = vperm.slane %v1265, 0
        %v1273 = vunpack.c.l.b16 %v1261
        %v1274 = vunpack.c.l.b16 %v1262
        %v1275 = vunpack.c.l.b16 %v1263
        %v1276 = vunpack.c.l.b16 %v1264
        %v1277 = vpack.c.b16 %v1274, %v1273
        %v1278 = vpack.c.b16 %v1276, %v1275
        %v1282 = vsel %vm745, %v1260, 0
        %1284 = vmatpush.bf16.msra.mxu0 0
        %1285 = vmatpush.bf16.msra.mxu0 0
        %1286 = vmatpush.bf16.msra.mxu0 0
        %1287 = vmatpush.bf16.msra.mxu0 0
        %1288 = vmatpush.bf16.msra.mxu0 0
        %1289 = vmatpush.bf16.msra.mxu0 0
        %1290 = vmatpush.bf16.msra.mxu0 %v1278
        %1291 = vmatpush.bf16.msra.mxu0 %v1277
        %1292 = vmatmul.bf16.gmra.mxu0 %v1282
        %v1293 = vpop.f32.mrf.mxu0
        %v1294 = vadd.f32 %v1267, %v1293
        %v1295 = vpop.f32.mrf.mxu0
        %1296 = vdwg.mxu0
        %v1297 = vadd.f32 %v1294, %v948
        %v1298 = vld [vmem:[%s12] sm:$0x1]
        %v1299 = vld [vmem:[%s13] sm:$0x1]
        %v1300 = vsel %vm745, %v1297, 0.0
        %1301 = vadd.xlane.f32.xlu0 %v1300
        %v1302 = vpop.xlane.xlu0 %1301
        %v1303 = vmul.f32 %v1302, %v755
        %v1304 = vmul.f32 %v1297, %v1297
        %v1305 = vsel %vm745, %v1304, 0.0
        %1306 = vadd.xlane.f32.xlu0 %v1305
        %v1307 = vpop.xlane.xlu0 %1306
        %v1308 = vmul.f32 %v1307, %v755
        %v1309 = vmul.f32 %v1303, %v1303
        %v1310 = vsub.f32 %v1308, %v1309
        %v1311 = vmax.f32 %v1310, 0.0
        %v1312 = vsub.f32 %v1297, %v1303
        %v1313 = vadd.f32 %v1311, 1e-05
        %v1314 = vrsqrt.pop %v1313
        %v1315 = vmul.f32 %v1314, %v1313
        %v1316 = vmul.f32 %v1315, %v1314
        %v1317 = vmul.f32 0.5, %v1316
        %v1318 = vsub.f32 1.5, %v1317
        %v1319 = vmul.f32 %v1314, %v1318
        %vm1320 = vweird.f32 %v1313
        %vm1321 = vweird.f32 %v1314
        %vm1322 = vmor %vm1320, %vm1321
        %v1323 = vsel %vm1322, %v1314, %v1319
        %v1324 = vmul.f32 %v1312, %v1323
        %v1326 = vperm.slane %v1298, 0
        %v1328 = vmul.f32 %v1324, %v1326
        %v1330 = vperm.slane %v1299, 0
        %v1332 = vadd.f32 %v1328, %v1330
        %v1333 = vpack.c.bf16 %v1332, %v1332
        %v1334 = vld [vmem:[#allocation16] sm:$0xf]
        %v1335 = vld [vmem:[#allocation16 + $0x4] sm:$0xf]
        %v1336 = vld [vmem:[#allocation16 + $0x8] sm:$0xf]
        %v1337 = vld [vmem:[#allocation16 + $0xc] sm:$0xf]
        %v1338 = vld [vmem:[%s15] sm:$0x1]
        %v1340 = vperm.slane %v1338, 0
        %v1346 = vunpack.c.l.b16 %v1334
        %v1347 = vunpack.c.l.b16 %v1335
        %v1348 = vunpack.c.l.b16 %v1336
        %v1349 = vunpack.c.l.b16 %v1337
        %v1350 = vpack.c.b16 %v1347, %v1346
        %v1351 = vpack.c.b16 %v1349, %v1348
        %v1355 = vsel %vm745, %v1333, 0
        %1357 = vmatpush.bf16.msra.mxu0 0
        %1358 = vmatpush.bf16.msra.mxu0 0
        %1359 = vmatpush.bf16.msra.mxu0 0
        %1360 = vmatpush.bf16.msra.mxu0 0
        %1361 = vmatpush.bf16.msra.mxu0 0
        %1362 = vmatpush.bf16.msra.mxu0 0
        %1363 = vmatpush.bf16.msra.mxu0 %v1351
        %1364 = vmatpush.bf16.msra.mxu0 %v1350
        %1365 = vmatmul.bf16.gmra.mxu0 %v1355
        %v1366 = vpop.f32.mrf.mxu0
        %v1367 = vadd.f32 %v1340, %v1366
        %v1368 = vpop.f32.mrf.mxu0
        %1369 = vdwg.mxu0
        %v1370 = vmul.f32 %v1367, 0.5
        %v1371 = vmul.f32 %v1367, 0.70710677
        %v1372 = vmul.f32 %v1371, %v1371
        %v1373 = vmin.f32 16.0, %v1372
        %v1374 = vmul.f32 %v1373, 2.1237322e-06
        %v1375 = vadd.f32 %v1374, 0.00028619796
        %v1376 = vmul.f32 %v1373, %v1375
        %v1377 = vadd.f32 %v1376, 0.0036580483
        %v1378 = vmul.f32 %v1373, %v1377
        %v1379 = vadd.f32 %v1378, 0.05243302
        %v1380 = vmul.f32 %v1373, %v1379
        %v1381 = vadd.f32 %v1380, 0.18741608
        %v1382 = vmul.f32 %v1373, %v1381
        %v1383 = vadd.f32 %v1382, 1.1283791
        %v1384 = vmul.f32 %v1371, %v1383
        %v1385 = vmul.f32 %v1373, 3.8918573e-05
        %v1386 = vadd.f32 %v1385, 0.001143296
        %v1387 = vmul.f32 %v1373, %v1386
        %v1388 = vadd.f32 %v1387, 0.014752088
        %v1389 = vmul.f32 %v1373, %v1388
        %v1390 = vadd.f32 %v1389, 0.112945676
        %v1391 = vmul.f32 %v1373, %v1390
        %v1392 = vadd.f32 %v1391, 0.4994258
        %v1393 = vmul.f32 %v1373, %v1392
        %v1394 = vadd.f32 %v1393, 1.0
        %v1395 = vrcp.pop %v1394
        %v1396 = vmul.f32 %v1394, %v1395
        %v1397 = vsub.f32 1.0, %v1396
        %v1398 = vmul.f32 %v1395, %v1397
        %v1399 = vadd.f32 %v1395, %v1398
        %vm1400 = vweird.f32 %v1394
        %vm1401 = vweird.f32 %v1395
        %vm1402 = vmor %vm1400, %vm1401
        %v1403 = vsel %vm1402, %v1395, %v1399
        %v1404 = vand.u32 2147483647, %v1394
        %vm1405 = vcmp.eq.f32.partialorder %v1404, 8.507059e+37
        %v1406 = vand.u32 %v1394, 2147483648
        %v1407 = vor.u32 1.1754944e-38, %v1406
        %v1408 = vsel %vm1405, %v1407, %v1403
        %v1409 = vmul.f32 %v1384, %v1408
        %v1410 = vmin.f32 %v1409, 1.0
        %v1411 = vmax.f32 %v1410, -1.0
        %v1412 = vadd.f32 %v1411, 1.0
        %v1413 = vmul.f32 %v1370, %v1412
        %v1414 = vpack.c.bf16 %v1413, %v1413
        %v1415 = vld [vmem:[#allocation17] sm:$0xf]
        %v1416 = vld [vmem:[#allocation17 + $0x4] sm:$0xf]
        %v1417 = vld [vmem:[#allocation17 + $0x8] sm:$0xf]
        %v1418 = vld [vmem:[#allocation17 + $0xc] sm:$0xf]
        %v1419 = vld [vmem:[%s17] sm:$0x1]
        %v1421 = vperm.slane %v1419, 0
        %v1427 = vunpack.c.l.b16 %v1415
        %v1428 = vunpack.c.l.b16 %v1416
        %v1429 = vunpack.c.l.b16 %v1417
        %v1430 = vunpack.c.l.b16 %v1418
        %v1431 = vpack.c.b16 %v1428, %v1427
        %v1432 = vpack.c.b16 %v1430, %v1429
        %v1436 = vsel %vm745, %v1414, 0
        %1438 = vmatpush.bf16.msra.mxu0 0
        %1439 = vmatpush.bf16.msra.mxu0 0
        %1440 = vmatpush.bf16.msra.mxu0 0
        %1441 = vmatpush.bf16.msra.mxu0 0
        %1442 = vmatpush.bf16.msra.mxu0 0
        %1443 = vmatpush.bf16.msra.mxu0 0
        %1444 = vmatpush.bf16.msra.mxu0 %v1432
        %1445 = vmatpush.bf16.msra.mxu0 %v1431
        %1446 = vmatmul.bf16.gmra.mxu0 %v1436
        %v1447 = vpop.f32.mrf.mxu0
        %v1448 = vadd.f32 %v1421, %v1447
        %v1449 = vpop.f32.mrf.mxu0
        %1450 = vdwg.mxu0
        %v1451 = vadd.f32 %v1297, %v1448
        %1452 = vst.msk [vmem:[%s740] sm:$0xff] %vm745, %v1451
        %s1453 = sand.u32 %s451, 1
        %s1454 = scalar_lea.sflag [#allocation7], %s1453
        %s1455 = sand.u32 %s451, 1
        %s1456 = smul.addr %s1455, 8
        %s1457 = scalar_lea.vmem [#allocation19], %s1456
        // Predicated region
        $region125: #{tpu_custom_call.1} parent=91 // pred_check
          %p1458 = pneg %p461
        $region126: #{tpu_custom_call.1} parent=91 // pred_check_branch
          %1460 = sbr.rel (%p1458) target = $region128
        $region127: #{tpu_custom_call.1} parent=91 // pred_region
          %1462 = vsyncadd %s1454, 0
          %s1463 = sadd.s32 %s46, %s45
          %s1464 = smul.addr %s1463, 8
          %s1465 = scalar_lea.hbm %s18, %s1464
          %s1467 = sshll.u32 %s1457, 4
          %s1468 = int_to_ptr.vmem [resolvable:$true] %s1467
          %s1469 = sshll.u32 %s1465, 4
          %s1470 = int_to_ptr.hbm [resolvable:$true] %s1469
          %1472 = dma.vmem_to_hbm [thread:$0]  %s1468, 128, %s1470, %s1454
        $region128: #{tpu_custom_call.1} parent=91 // pred_fallthru
          _
      $region92: #{tpu_custom_call.1} parent=5 // pred_fallthru
        _
      %p1473 = scmp.le.s32.totalorder 2, %s36
      // Predicated region
      $region129: #{tpu_custom_call.1} parent=5 // pred_check
        %p1474 = pneg %p1473
      $region130: #{tpu_custom_call.1} parent=5 // pred_check_branch
        %1476 = sbr.rel (%p1474) target = $region132
      $region131: #{tpu_custom_call.1} parent=5 // pred_region
        %s1477 = ssub.s32 %s36, 2
        // Predicated region
        $region133: #{tpu_custom_call.1} parent=131 // pred_check
          %p1478 = pneg %p467
        $region134: #{tpu_custom_call.1} parent=131 // pred_check_branch
          %1480 = sbr.rel (%p1478) target = $region136
        $region135: #{tpu_custom_call.1} parent=131 // pred_region
          %s1481 = sand.u32 %s452, 1
          %s1482 = scalar_lea.sflag [#allocation7], %s1481
          %s1483 = sand.u32 %s452, 1
          %s1484 = smul.addr %s1483, 8
          %s1485 = scalar_lea.vmem [#allocation19], %s1484
          %1487 = dma.done %s1482, 128
        $region136: #{tpu_custom_call.1} parent=131 // pred_fallthru
          _
      $region132: #{tpu_custom_call.1} parent=5 // pred_fallthru
        _
    $region6: #{tpu_custom_call.1} parent=1 // loop_footer
      %s40 = sadd.s32 1, %s36
    $region7: #{tpu_custom_call.1} parent=1 // loop_footer_branch
      %35 = sbr.rel target = $region3
    $region8: #{tpu_custom_call.1} parent=1 // loop_exit
      _
    %1488 = vsyncpa [#allocation6], 1
    %s1489 = scalar_lea.sflag [#allocation6], 1
    %1490 = vsyncpa %s1489, 1
    %1491 = vsyncpa [#allocation9], 1
    %s1492 = scalar_lea.sflag [#allocation9], 1
    %1493 = vsyncpa %s1492, 1
    %1494 = vsyncpa [#allocation12], 1
    %1495 = vsyncpa [#allocation15], 1
    %1496 = vsyncpa [#allocation18], 1
    %1497 = vsyncpa [#allocation7], 1
    %s1498 = scalar_lea.sflag [#allocation7], 1
    %1499 = vsyncpa %s1498, 1

</llo_original>
